<compile_context>
chip_gen: v7x
topology: tpu7x:2x2x1
jax: 0.10.0
libtpu: 0.0.40
codegen_flags: <defaults>
</compile_context>

<pallas_src>
import functools

import jax
import jax.numpy as jnp
from jax import lax
from jax.experimental import pallas as pl
from jax.experimental.pallas import tpu as pltpu


BB_REAL = 1000          # backbone feature dim in the PyTorch spec
BB_PAD = 1024           # lane-aligned padded backbone dim (extra cols/rows are zero)
BR_REAL = 64            # per-branch feature dim (fc_*_2 output)
BR_PAD = 128            # lane-aligned per-branch slot
EMBED_REAL = 5 * BR_REAL   # 320
EMBED_PAD = 5 * BR_PAD     # 640: each 64-wide part sits in its own 128-lane slot
HEAD_PAD = 128          # logits padded 2 -> 128 lanes (sliced outside the kernel)


# ----------------------------- Pallas kernel ------------------------------- #

def fused_net_kernel(x_ref, wb_ref, bb_ref, w1_ref, b1_ref, w2_ref, b2_ref,
                     wf1_ref, bf1_ref, wf2_ref, bf2_ref,
                     embed_ref, logits_ref, *, mblk):
    """One batch block of Net.forward.

    x_ref     : (5*mblk, feat) bf16, rows = [large | tl | tr | bl | br] groups
    wb_ref    : (feat, 2048)  [backbone_large | backbone_small]  (N-concat)
    w1_ref    : (1024, 512)   [fc_large_1 | fc_small_1]
    w2_ref    : (256, 256)    [fc_large_2 pad->128 | fc_small_2 pad->128]
    wf1_ref   : (640, 64)     fc1; each 64-row part zero-padded into a 128-row slot
    wf2_ref   : (64, 128)     fc2; output padded 2 -> 128
    embed_ref : (mblk, 640)   5 parts x 128 lanes (real data in the low 64 of each)
    logits_ref: (mblk, 128)
    """
    rows = 5 * mblk
    x = x_ref[...]                                                # (5M, feat) bf16

    # Row-group mask: first mblk rows are the large branch; the 4 quadrant
    # groups read the other 128-aligned lane half of every merged matmul.
    row_ids = lax.broadcasted_iota(jnp.int32, (rows, 1), 0)
    is_large = row_ids < mblk

    def merged_stage(x_bf16, w_ref, b_ref, half, relu):
        y = jnp.dot(x_bf16, w_ref[...], preferred_element_type=jnp.float32)
        y = y + b_ref[...]
        if relu:
            y = jnp.maximum(y, 0.0)
        # 128-aligned lane halves: large rows take [:, :half], small rows the rest.
        return jnp.where(is_large, y[:, :half], y[:, half:])

    f = merged_stage(x, wb_ref, bb_ref, half=BB_PAD, relu=False)             # (5M, 1024)
    h = merged_stage(f.astype(jnp.bfloat16), w1_ref, b1_ref, 256, True)      # (5M, 256)
    h = merged_stage(h.astype(jnp.bfloat16), w2_ref, b2_ref, BR_PAD, True)   # (5M, 128)

    # embed (lane-padded slots) + head fc1 as a sum of 5 partial dots — no
    # in-vreg concatenate, all stores 128-lane aligned.
    acc = jnp.zeros((mblk, BR_REAL), jnp.float32)
    for p in range(5):                                  # large, tl, tr, bl, br
        part = h[p * mblk:(p + 1) * mblk, :]                                 # (M, 128)
        embed_ref[:, p * BR_PAD:(p + 1) * BR_PAD] = part
        acc = acc + jnp.dot(part.astype(jnp.bfloat16),
                            wf1_ref[p * BR_PAD:(p + 1) * BR_PAD, :],
                            preferred_element_type=jnp.float32)
    hh = jnp.maximum(acc + bf1_ref[...], 0.0)                                # (M, 64)
    logits_ref[...] = jnp.dot(hh.astype(jnp.bfloat16), wf2_ref[...],
                              preferred_element_type=jnp.float32) + bf2_ref[...]
    # nn.Dropout layers are identity in inference mode.


# ------------------------------ Parameters --------------------------------- #

def _torch_linear(key, fan_in, fan_out):
    """torch-Linear-like init U(-1/sqrt(fan_in), 1/sqrt(fan_in)); w=(in,out)."""
    kw, kb = jax.random.split(key)
    bound = 1.0 / float(fan_in) ** 0.5
    w = jax.random.uniform(kw, (fan_in, fan_out), jnp.float32, -bound, bound)
    b = jax.random.uniform(kb, (1, fan_out), jnp.float32, -bound, bound)
    return w, b


def _pad(a, rows=None, cols=None):
    r = 0 if rows is None else rows - a.shape[0]
    c = 0 if cols is None else cols - a.shape[1]
    return jnp.pad(a, ((0, r), (0, c)))


def make_params(key, *, channels, patch_size):
    """Torch-like Linear inits, merged & lane-padded into the kernel operands.
    Padded rows/cols AND padded bias entries are zero, so results equal the
    unpadded original."""
    feat = channels * patch_size * patch_size
    k = jax.random.split(key, 8)
    # Stand-in backbones (flatten -> Linear(feat, 1000)).
    # TODO(synk): real ResNet backbone weights are external to this module.
    wbl, bbl = _torch_linear(k[0], feat, BB_REAL)
    wbs, bbs = _torch_linear(k[1], feat, BB_REAL)
    wl1, bl1 = _torch_linear(k[2], BB_REAL, 256)
    wl2, bl2 = _torch_linear(k[3], 256, BR_REAL)
    ws1, bs1 = _torch_linear(k[4], BB_REAL, 256)
    ws2, bs2 = _torch_linear(k[5], 256, BR_REAL)
    wf1, bf1 = _torch_linear(k[6], EMBED_REAL, 64)
    wf2, bf2 = _torch_linear(k[7], 64, 2)

    p = {}
    # Stage 1: [backbone_large | backbone_small], each 1000 -> 1024 zero cols.
    p["wb"] = jnp.concatenate([_pad(wbl, cols=BB_PAD), _pad(wbs, cols=BB_PAD)],
                              axis=1).astype(jnp.bfloat16)                # (feat, 2048)
    p["bb"] = jnp.concatenate([_pad(bbl, cols=BB_PAD), _pad(bbs, cols=BB_PAD)],
                              axis=1)                                     # (1, 2048)
    # Stage 2: [fc_large_1 | fc_small_1], K padded 1000 -> 1024 zero rows.
    p["w1"] = jnp.concatenate([_pad(wl1, rows=BB_PAD), _pad(ws1, rows=BB_PAD)],
                              axis=1).astype(jnp.bfloat16)                # (1024, 512)
    p["b1"] = jnp.concatenate([bl1, bs1], axis=1)                         # (1, 512)
    # Stage 3: [fc_large_2 | fc_small_2], N padded 64 -> 128 zero cols each.
    p["w2"] = jnp.concatenate([_pad(wl2, cols=BR_PAD), _pad(ws2, cols=BR_PAD)],
                              axis=1).astype(jnp.bfloat16)                # (256, 256)
    p["b2"] = jnp.concatenate([_pad(bl2, cols=BR_PAD), _pad(bs2, cols=BR_PAD)],
                              axis=1)                                     # (1, 256)
    # Head fc1: each 64-row part of (320, 64) zero-padded into a 128-row slot so
    # partial dots consume the lane-padded branch features directly.
    wf1_parts = [_pad(wf1[q * BR_REAL:(q + 1) * BR_REAL, :], rows=BR_PAD)
                 for q in range(5)]
    p["wf1"] = jnp.concatenate(wf1_parts, axis=0).astype(jnp.bfloat16)    # (640, 64)
    p["bf1"] = bf1                                                        # (1, 64)
    # Head fc2: logits padded 2 -> 128 lanes.
    p["wf2"] = _pad(wf2, cols=HEAD_PAD).astype(jnp.bfloat16)              # (64, 128)
    p["bf2"] = _pad(bf2, cols=HEAD_PAD)                                   # (1, 128)
    return p


_WEIGHT_KEYS = ("wb", "bb", "w1", "b1", "w2", "b2", "wf1", "bf1", "wf2", "bf2")


# ------------------------------- Forward ------------------------------------ #

def _round_up(n, m):
    return ((n + m - 1) // m) * m


def net_forward(x, params, *, patch_size):
    """Mirrors Net.forward.  x: (B, C, H, W) NCHW float32 -> (logits, embed)."""
    B, C, H, W = x.shape
    # Stand-in backbone flattens its input, so quadrants must match the resized
    # full image's feature size.
    assert H // 2 == patch_size and W // 2 == patch_size, (H, W, patch_size)

    # torch.chunk(x, 2, axis=2/3): four quadrants.
    x_t, x_b = jnp.split(x, 2, axis=2)
    x_tl, x_tr = jnp.split(x_t, 2, axis=3)
    x_bl, x_br = jnp.split(x_b, 2, axis=3)
    # transforms.Resize(patch_size) on the full image.
    x_rs = jax.image.resize(x, (B, C, patch_size, patch_size), method="bilinear")

    feat = C * patch_size * patch_size
    parts = [x_rs, x_tl, x_tr, x_bl, x_br]               # order matches torch.cat
    x5 = jnp.stack([p.reshape(B, feat) for p in parts], axis=0)      # (5, B, feat)

    # Batch-block grid: weights are grid-invariant (constant index_map, DMA'd
    # once, resident in VMEM); activations/outputs are tiled mblk rows per step.
    mblk = min(64, _round_up(B, 8))
    bp = _round_up(B, mblk)
    nblk = bp // mblk
    x5 = jnp.pad(x5, ((0, 0), (0, bp - B), (0, 0)))
    # Each grid step wants rows [large|tl|tr|bl|br] of ONE batch block:
    # (5, bp, feat) -> (nblk, 5, mblk, feat) -> (5*bp, feat) block-major.
    x_all = (x5.reshape(5, nblk, mblk, feat)
                 .transpose(1, 0, 2, 3)
                 .reshape(5 * bp, feat)
                 .astype(jnp.bfloat16))

    weight_specs = [pl.BlockSpec(params[k].shape, lambda i: (0, 0))
                    for k in _WEIGHT_KEYS]

    flops = (2 * 5 * bp * (feat * 2 * BB_PAD + BB_PAD * 512 + 256 * 256
                           + BR_PAD * 64)
             + 2 * bp * 64 * HEAD_PAD)
    weight_bytes = sum(int(params[k].size) * params[k].dtype.itemsize
                       for k in _WEIGHT_KEYS)
    bytes_accessed = int(weight_bytes
                         + x_all.size * x_all.dtype.itemsize
                         + 4 * bp * (EMBED_PAD + HEAD_PAD))

    kernel = functools.partial(fused_net_kernel, mblk=mblk)
    embed_pad, logits_pad = pl.pallas_call(
        kernel,
        grid=(nblk,),
        out_shape=(jax.ShapeDtypeStruct((bp, EMBED_PAD), jnp.float32),
                   jax.ShapeDtypeStruct((bp, HEAD_PAD), jnp.float32)),
        in_specs=[pl.BlockSpec((5 * mblk, feat), lambda i: (i, 0))] + weight_specs,
        out_specs=(pl.BlockSpec((mblk, EMBED_PAD), lambda i: (i, 0)),
                   pl.BlockSpec((mblk, HEAD_PAD), lambda i: (i, 0))),
        compiler_params=pltpu.CompilerParams(
            dimension_semantics=("parallel",),
            vmem_limit_bytes=32 * 1024 * 1024),
        cost_estimate=pl.CostEstimate(flops=flops, transcendentals=0,
                                      bytes_accessed=bytes_accessed),
    )(x_all, *[params[k] for k in _WEIGHT_KEYS])

    # Drop padding: each 128-lane embed slot holds a real 64-wide part.
    embed = (embed_pad[:B].reshape(B, 5, BR_PAD)[:, :, :BR_REAL]
             .reshape(B, EMBED_REAL))
    logits = logits_pad[:B, :2]
    return logits, embed


# ------------------------- Pure-JAX f32 reference --------------------------- #

def net_reference(x, params, *, patch_size):
    B, C, H, W = x.shape
    x_t, x_b = jnp.split(x, 2, axis=2)
    x_tl, x_tr = jnp.split(x_t, 2, axis=3)
    x_bl, x_br = jnp.split(x_b, 2, axis=3)
    x_rs = jax.image.resize(x, (B, C, patch_size, patch_size), method="bilinear")
    feat = C * patch_size * patch_size

    wb = params["wb"].astype(jnp.float32); bb = params["bb"]
    w1 = params["w1"].astype(jnp.float32); b1 = params["b1"]
    w2 = params["w2"].astype(jnp.float32); b2 = params["b2"]
    wf1 = params["wf1"].astype(jnp.float32); bf1 = params["bf1"]
    wf2 = params["wf2"].astype(jnp.float32); bf2 = params["bf2"]

    def branch(v, lo):
        f = v @ wb[:, lo * BB_PAD:(lo + 1) * BB_PAD] + bb[:, lo * BB_PAD:(lo + 1) * BB_PAD]
        h = jax.nn.relu(f @ w1[:, lo * 256:(lo + 1) * 256] + b1[:, lo * 256:(lo + 1) * 256])
        h = jax.nn.relu(h @ w2[:, lo * BR_PAD:lo * BR_PAD + BR_REAL]
                        + b2[:, lo * BR_PAD:lo * BR_PAD + BR_REAL])
        return h

    hl = branch(x_rs.reshape(B, feat), 0)
    hq = [branch(q.reshape(B, feat), 1) for q in (x_tl, x_tr, x_bl, x_br)]
    embed = jnp.concatenate([hl] + hq, axis=1)
    wf1_real = jnp.concatenate(
        [wf1[p * BR_PAD:p * BR_PAD + BR_REAL, :] for p in range(5)], axis=0)
    h = jax.nn.relu(embed @ wf1_real + bf1)
    logits = (h @ wf2 + bf2)[:, :2]
    return logits, embed


# --------------------------------- Main -------------------------------------- #

if __name__ == "__main__":
    key = jax.random.PRNGKey(0)
    k_x, k_p = jax.random.split(key)

    B, C, H, W = 2, 4, 16, 16       # small NCHW input
    PATCH_SIZE = 8                  # quadrants are already (8, 8)

    x = jax.random.normal(k_x, (B, C, H, W), dtype=jnp.float32)
    params = make_params(k_p, channels=C, patch_size=PATCH_SIZE)

    fwd = jax.jit(functools.partial(net_forward, patch_size=PATCH_SIZE))
    logits, embed = fwd(x, params)
    jax.block_until_ready((logits, embed))

    assert logits.shape == (B, 2), logits.shape
    assert embed.shape == (B, EMBED_REAL), embed.shape

    ref_logits, ref_embed = jax.jit(
        functools.partial(net_reference, patch_size=PATCH_SIZE))(x, params)
    err_l = float(jnp.max(jnp.abs(logits - ref_logits)))
    err_e = float(jnp.max(jnp.abs(embed - ref_embed)))
    # bf16 matmul inputs with f32 accumulation: tolerance check, not bit match.
    assert err_l < 5e-2 and err_e < 5e-2, (err_l, err_e)

    print("KERNEL_OK")
</pallas_src>

<mosaic_0001>
module attributes {stable_mosaic.version = 11 : i64} {
  func.func @fused_net_kernel(%arg0: i32, %arg1: memref<40x256xbf16, #tpu.memory_space<vmem>>, %arg2: memref<256x2048xbf16, #tpu.memory_space<vmem>>, %arg3: memref<1x2048xf32, #tpu.memory_space<vmem>>, %arg4: memref<1024x512xbf16, #tpu.memory_space<vmem>>, %arg5: memref<1x512xf32, #tpu.memory_space<vmem>>, %arg6: memref<256x256xbf16, #tpu.memory_space<vmem>>, %arg7: memref<1x256xf32, #tpu.memory_space<vmem>>, %arg8: memref<640x64xbf16, #tpu.memory_space<vmem>>, %arg9: memref<1x64xf32, #tpu.memory_space<vmem>>, %arg10: memref<64x128xbf16, #tpu.memory_space<vmem>>, %arg11: memref<1x128xf32, #tpu.memory_space<vmem>>, %arg12: memref<8x640xf32, #tpu.memory_space<vmem>>, %arg13: memref<8x128xf32, #tpu.memory_space<vmem>>) attributes {dimension_semantics = [#tpu.dimension_semantics<parallel>], iteration_bounds = array<i64: 1>, scalar_prefetch = 0 : i64, scratch_operands = 0 : i64, tpu.core_type = #tpu.core_type<tc>, window_params = [{transform_indices = @transform_0, window_bounds = array<i64: 40, 256>}, {pipeline_mode = #tpu.pipeline_mode<synchronous>, transform_indices = @transform_1, window_bounds = array<i64: 256, 2048>}, {pipeline_mode = #tpu.pipeline_mode<synchronous>, transform_indices = @transform_2, window_bounds = array<i64: 1, 2048>}, {pipeline_mode = #tpu.pipeline_mode<synchronous>, transform_indices = @transform_3, window_bounds = array<i64: 1024, 512>}, {pipeline_mode = #tpu.pipeline_mode<synchronous>, transform_indices = @transform_4, window_bounds = array<i64: 1, 512>}, {pipeline_mode = #tpu.pipeline_mode<synchronous>, transform_indices = @transform_5, window_bounds = array<i64: 256, 256>}, {pipeline_mode = #tpu.pipeline_mode<synchronous>, transform_indices = @transform_6, window_bounds = array<i64: 1, 256>}, {pipeline_mode = #tpu.pipeline_mode<synchronous>, transform_indices = @transform_7, window_bounds = array<i64: 640, 64>}, {pipeline_mode = #tpu.pipeline_mode<synchronous>, transform_indices = @transform_8, window_bounds = array<i64: 1, 64>}, {pipeline_mode = #tpu.pipeline_mode<synchronous>, transform_indices = @transform_9, window_bounds = array<i64: 64, 128>}, {pipeline_mode = #tpu.pipeline_mode<synchronous>, transform_indices = @transform_10, window_bounds = array<i64: 1, 128>}, {transform_indices = @transform_11, window_bounds = array<i64: 8, 640>}, {transform_indices = @transform_12, window_bounds = array<i64: 8, 128>}]} {
    %c0 = arith.constant 0 : index
    %c0_0 = arith.constant 0 : index
    %0 = vector.load %arg1[%c0, %c0_0] : memref<40x256xbf16, #tpu.memory_space<vmem>>, vector<40x256xbf16>
    %1 = tpu.iota {dimensions = array<i32: 0>} : vector<40x1xi32>
    %c8_i32 = arith.constant 8 : i32
    %2 = vector.broadcast %c8_i32 : i32 to vector<40x1xi32>
    %3 = arith.cmpi slt, %1, %2 : vector<40x1xi32>
    %c0_1 = arith.constant 0 : index
    %c0_2 = arith.constant 0 : index
    %4 = vector.load %arg2[%c0_1, %c0_2] : memref<256x2048xbf16, #tpu.memory_space<vmem>>, vector<256x2048xbf16>
    %cst = arith.constant dense<0.000000e+00> : vector<40x2048xf32>
    %5 = tpu.matmul %0, %4, %cst {dimension_numbers = #tpu.dot_dimension_numbers<[1], [0], [0], [1], [0, 0, 1, 1], [], []>} : vector<40x256xbf16>, vector<256x2048xbf16>, vector<40x2048xf32> -> vector<40x2048xf32>
    %c0_3 = arith.constant 0 : index
    %c0_4 = arith.constant 0 : index
    %6 = vector.load %arg3[%c0_3, %c0_4] : memref<1x2048xf32, #tpu.memory_space<vmem>>, vector<1x2048xf32>
    %7 = vector.broadcast %6 : vector<1x2048xf32> to vector<40x2048xf32>
    %8 = arith.addf %5, %7 : vector<40x2048xf32>
    %9 = vector.extract_strided_slice %8 {offsets = [0, 0], sizes = [40, 1024], strides = [1, 1]} : vector<40x2048xf32> to vector<40x1024xf32>
    %10 = vector.extract_strided_slice %8 {offsets = [0, 1024], sizes = [40, 1024], strides = [1, 1]} : vector<40x2048xf32> to vector<40x1024xf32>
    %11 = vector.shape_cast %3 : vector<40x1xi1> to vector<40x1xi1>
    %12 = vector.broadcast %11 : vector<40x1xi1> to vector<40x1024xi1>
    %13 = arith.select %12, %9, %10 : vector<40x1024xi1>, vector<40x1024xf32>
    %14 = arith.truncf %13 : vector<40x1024xf32> to vector<40x1024xbf16>
    %c0_5 = arith.constant 0 : index
    %c0_6 = arith.constant 0 : index
    %15 = vector.load %arg4[%c0_5, %c0_6] : memref<1024x512xbf16, #tpu.memory_space<vmem>>, vector<1024x512xbf16>
    %cst_7 = arith.constant dense<0.000000e+00> : vector<40x512xf32>
    %16 = tpu.matmul %14, %15, %cst_7 {dimension_numbers = #tpu.dot_dimension_numbers<[1], [0], [0], [1], [0, 0, 1, 1], [], []>} : vector<40x1024xbf16>, vector<1024x512xbf16>, vector<40x512xf32> -> vector<40x512xf32>
    %c0_8 = arith.constant 0 : index
    %c0_9 = arith.constant 0 : index
    %17 = vector.load %arg5[%c0_8, %c0_9] : memref<1x512xf32, #tpu.memory_space<vmem>>, vector<1x512xf32>
    %18 = vector.broadcast %17 : vector<1x512xf32> to vector<40x512xf32>
    %19 = arith.addf %16, %18 : vector<40x512xf32>
    %cst_10 = arith.constant 0.000000e+00 : f32
    %20 = vector.broadcast %cst_10 : f32 to vector<40x512xf32>
    %21 = arith.maximumf %19, %20 : vector<40x512xf32>
    %22 = vector.extract_strided_slice %21 {offsets = [0, 0], sizes = [40, 256], strides = [1, 1]} : vector<40x512xf32> to vector<40x256xf32>
    %23 = vector.extract_strided_slice %21 {offsets = [0, 256], sizes = [40, 256], strides = [1, 1]} : vector<40x512xf32> to vector<40x256xf32>
    %24 = vector.shape_cast %3 : vector<40x1xi1> to vector<40x1xi1>
    %25 = vector.broadcast %24 : vector<40x1xi1> to vector<40x256xi1>
    %26 = arith.select %25, %22, %23 : vector<40x256xi1>, vector<40x256xf32>
    %27 = arith.truncf %26 : vector<40x256xf32> to vector<40x256xbf16>
    %c0_11 = arith.constant 0 : index
    %c0_12 = arith.constant 0 : index
    %28 = vector.load %arg6[%c0_11, %c0_12] : memref<256x256xbf16, #tpu.memory_space<vmem>>, vector<256x256xbf16>
    %cst_13 = arith.constant dense<0.000000e+00> : vector<40x256xf32>
    %29 = tpu.matmul %27, %28, %cst_13 {dimension_numbers = #tpu.dot_dimension_numbers<[1], [0], [0], [1], [0, 0, 1, 1], [], []>} : vector<40x256xbf16>, vector<256x256xbf16>, vector<40x256xf32> -> vector<40x256xf32>
    %c0_14 = arith.constant 0 : index
    %c0_15 = arith.constant 0 : index
    %30 = vector.load %arg7[%c0_14, %c0_15] : memref<1x256xf32, #tpu.memory_space<vmem>>, vector<1x256xf32>
    %31 = vector.broadcast %30 : vector<1x256xf32> to vector<40x256xf32>
    %32 = arith.addf %29, %31 : vector<40x256xf32>
    %cst_16 = arith.constant 0.000000e+00 : f32
    %33 = vector.broadcast %cst_16 : f32 to vector<40x256xf32>
    %34 = arith.maximumf %32, %33 : vector<40x256xf32>
    %35 = vector.extract_strided_slice %34 {offsets = [0, 0], sizes = [40, 128], strides = [1, 1]} : vector<40x256xf32> to vector<40x128xf32>
    %36 = vector.extract_strided_slice %34 {offsets = [0, 128], sizes = [40, 128], strides = [1, 1]} : vector<40x256xf32> to vector<40x128xf32>
    %37 = vector.shape_cast %3 : vector<40x1xi1> to vector<40x1xi1>
    %38 = vector.broadcast %37 : vector<40x1xi1> to vector<40x128xi1>
    %39 = arith.select %38, %35, %36 : vector<40x128xi1>, vector<40x128xf32>
    %cst_17 = arith.constant 0.000000e+00 : f32
    %40 = vector.broadcast %cst_17 : f32 to vector<8x64xf32>
    %41 = vector.extract_strided_slice %39 {offsets = [0, 0], sizes = [8, 128], strides = [1, 1]} : vector<40x128xf32> to vector<8x128xf32>
    %c0_18 = arith.constant 0 : index
    %c0_19 = arith.constant 0 : index
    %42 = vector.load %arg12[%c0_18, %c0_19] : memref<8x640xf32, #tpu.memory_space<vmem>>, vector<8x128xf32>
    tpu.vector_store %arg12[%c0_18, %c0_19], %41 {strides = array<i32>} : memref<8x640xf32, #tpu.memory_space<vmem>>, vector<8x128xf32>,
    %43 = arith.truncf %41 : vector<8x128xf32> to vector<8x128xbf16>
    %c0_20 = arith.constant 0 : index
    %c0_21 = arith.constant 0 : index
    %44 = vector.load %arg8[%c0_20, %c0_21] : memref<640x64xbf16, #tpu.memory_space<vmem>>, vector<128x64xbf16>
    %cst_22 = arith.constant dense<0.000000e+00> : vector<8x64xf32>
    %45 = tpu.matmul %43, %44, %cst_22 {dimension_numbers = #tpu.dot_dimension_numbers<[1], [0], [0], [1], [0, 0, 1, 1], [], []>} : vector<8x128xbf16>, vector<128x64xbf16>, vector<8x64xf32> -> vector<8x64xf32>
    %46 = arith.addf %40, %45 : vector<8x64xf32>
    %47 = vector.extract_strided_slice %39 {offsets = [8, 0], sizes = [8, 128], strides = [1, 1]} : vector<40x128xf32> to vector<8x128xf32>
    %c0_23 = arith.constant 0 : index
    %c128 = arith.constant 128 : index
    %48 = vector.load %arg12[%c0_23, %c128] : memref<8x640xf32, #tpu.memory_space<vmem>>, vector<8x128xf32>
    tpu.vector_store %arg12[%c0_23, %c128], %47 {strides = array<i32>} : memref<8x640xf32, #tpu.memory_space<vmem>>, vector<8x128xf32>,
    %49 = arith.truncf %47 : vector<8x128xf32> to vector<8x128xbf16>
    %c128_24 = arith.constant 128 : index
    %c0_25 = arith.constant 0 : index
    %50 = vector.load %arg8[%c128_24, %c0_25] : memref<640x64xbf16, #tpu.memory_space<vmem>>, vector<128x64xbf16>
    %cst_26 = arith.constant dense<0.000000e+00> : vector<8x64xf32>
    %51 = tpu.matmul %49, %50, %cst_26 {dimension_numbers = #tpu.dot_dimension_numbers<[1], [0], [0], [1], [0, 0, 1, 1], [], []>} : vector<8x128xbf16>, vector<128x64xbf16>, vector<8x64xf32> -> vector<8x64xf32>
    %52 = arith.addf %46, %51 : vector<8x64xf32>
    %53 = vector.extract_strided_slice %39 {offsets = [16, 0], sizes = [8, 128], strides = [1, 1]} : vector<40x128xf32> to vector<8x128xf32>
    %c0_27 = arith.constant 0 : index
    %c256 = arith.constant 256 : index
    %54 = vector.load %arg12[%c0_27, %c256] : memref<8x640xf32, #tpu.memory_space<vmem>>, vector<8x128xf32>
    tpu.vector_store %arg12[%c0_27, %c256], %53 {strides = array<i32>} : memref<8x640xf32, #tpu.memory_space<vmem>>, vector<8x128xf32>,
    %55 = arith.truncf %53 : vector<8x128xf32> to vector<8x128xbf16>
    %c256_28 = arith.constant 256 : index
    %c0_29 = arith.constant 0 : index
    %56 = vector.load %arg8[%c256_28, %c0_29] : memref<640x64xbf16, #tpu.memory_space<vmem>>, vector<128x64xbf16>
    %cst_30 = arith.constant dense<0.000000e+00> : vector<8x64xf32>
    %57 = tpu.matmul %55, %56, %cst_30 {dimension_numbers = #tpu.dot_dimension_numbers<[1], [0], [0], [1], [0, 0, 1, 1], [], []>} : vector<8x128xbf16>, vector<128x64xbf16>, vector<8x64xf32> -> vector<8x64xf32>
    %58 = arith.addf %52, %57 : vector<8x64xf32>
    %59 = vector.extract_strided_slice %39 {offsets = [24, 0], sizes = [8, 128], strides = [1, 1]} : vector<40x128xf32> to vector<8x128xf32>
    %c0_31 = arith.constant 0 : index
    %c384 = arith.constant 384 : index
    %60 = vector.load %arg12[%c0_31, %c384] : memref<8x640xf32, #tpu.memory_space<vmem>>, vector<8x128xf32>
    tpu.vector_store %arg12[%c0_31, %c384], %59 {strides = array<i32>} : memref<8x640xf32, #tpu.memory_space<vmem>>, vector<8x128xf32>,
    %61 = arith.truncf %59 : vector<8x128xf32> to vector<8x128xbf16>
    %c384_32 = arith.constant 384 : index
    %c0_33 = arith.constant 0 : index
    %62 = vector.load %arg8[%c384_32, %c0_33] : memref<640x64xbf16, #tpu.memory_space<vmem>>, vector<128x64xbf16>
    %cst_34 = arith.constant dense<0.000000e+00> : vector<8x64xf32>
    %63 = tpu.matmul %61, %62, %cst_34 {dimension_numbers = #tpu.dot_dimension_numbers<[1], [0], [0], [1], [0, 0, 1, 1], [], []>} : vector<8x128xbf16>, vector<128x64xbf16>, vector<8x64xf32> -> vector<8x64xf32>
    %64 = arith.addf %58, %63 : vector<8x64xf32>
    %65 = vector.extract_strided_slice %39 {offsets = [32, 0], sizes = [8, 128], strides = [1, 1]} : vector<40x128xf32> to vector<8x128xf32>
    %c0_35 = arith.constant 0 : index
    %c512 = arith.constant 512 : index
    %66 = vector.load %arg12[%c0_35, %c512] : memref<8x640xf32, #tpu.memory_space<vmem>>, vector<8x128xf32>
    tpu.vector_store %arg12[%c0_35, %c512], %65 {strides = array<i32>} : memref<8x640xf32, #tpu.memory_space<vmem>>, vector<8x128xf32>,
    %67 = arith.truncf %65 : vector<8x128xf32> to vector<8x128xbf16>
    %c512_36 = arith.constant 512 : index
    %c0_37 = arith.constant 0 : index
    %68 = vector.load %arg8[%c512_36, %c0_37] : memref<640x64xbf16, #tpu.memory_space<vmem>>, vector<128x64xbf16>
    %cst_38 = arith.constant dense<0.000000e+00> : vector<8x64xf32>
    %69 = tpu.matmul %67, %68, %cst_38 {dimension_numbers = #tpu.dot_dimension_numbers<[1], [0], [0], [1], [0, 0, 1, 1], [], []>} : vector<8x128xbf16>, vector<128x64xbf16>, vector<8x64xf32> -> vector<8x64xf32>
    %70 = arith.addf %64, %69 : vector<8x64xf32>
    %c0_39 = arith.constant 0 : index
    %c0_40 = arith.constant 0 : index
    %71 = vector.load %arg9[%c0_39, %c0_40] : memref<1x64xf32, #tpu.memory_space<vmem>>, vector<1x64xf32>
    %72 = vector.broadcast %71 : vector<1x64xf32> to vector<8x64xf32>
    %73 = arith.addf %70, %72 : vector<8x64xf32>
    %cst_41 = arith.constant 0.000000e+00 : f32
    %74 = vector.broadcast %cst_41 : f32 to vector<8x64xf32>
    %75 = arith.maximumf %73, %74 : vector<8x64xf32>
    %76 = arith.truncf %75 : vector<8x64xf32> to vector<8x64xbf16>
    %c0_42 = arith.constant 0 : index
    %c0_43 = arith.constant 0 : index
    %77 = vector.load %arg10[%c0_42, %c0_43] : memref<64x128xbf16, #tpu.memory_space<vmem>>, vector<64x128xbf16>
    %cst_44 = arith.constant dense<0.000000e+00> : vector<8x128xf32>
    %78 = tpu.matmul %76, %77, %cst_44 {dimension_numbers = #tpu.dot_dimension_numbers<[1], [0], [0], [1], [0, 0, 1, 1], [], []>} : vector<8x64xbf16>, vector<64x128xbf16>, vector<8x128xf32> -> vector<8x128xf32>
    %c0_45 = arith.constant 0 : index
    %c0_46 = arith.constant 0 : index
    %79 = vector.load %arg11[%c0_45, %c0_46] : memref<1x128xf32, #tpu.memory_space<vmem>>, vector<1x128xf32>
    %80 = vector.broadcast %79 : vector<1x128xf32> to vector<8x128xf32>
    %81 = arith.addf %78, %80 : vector<8x128xf32>
    %c0_47 = arith.constant 0 : index
    %c0_48 = arith.constant 0 : index
    %82 = vector.load %arg13[%c0_47, %c0_48] : memref<8x128xf32, #tpu.memory_space<vmem>>, vector<8x128xf32>
    tpu.vector_store %arg13[%c0_47, %c0_48], %81 {strides = array<i32>} : memref<8x128xf32, #tpu.memory_space<vmem>>, vector<8x128xf32>,
    return
  }
  func.func @transform_0(%arg0: i32) -> (i32, i32) {
    %c0_i32 = arith.constant 0 : i32
    %c0_i32_0 = arith.constant 0 : i32
    return %arg0, %c0_i32 : i32, i32
  }
  func.func @transform_1(%arg0: i32) -> (i32, i32) {
    %c0_i32 = arith.constant 0 : i32
    %c0_i32_0 = arith.constant 0 : i32
    %c0_i32_1 = arith.constant 0 : i32
    return %c0_i32, %c0_i32_0 : i32, i32
  }
  func.func @transform_2(%arg0: i32) -> (i32, i32) {
    %c0_i32 = arith.constant 0 : i32
    %c0_i32_0 = arith.constant 0 : i32
    %c0_i32_1 = arith.constant 0 : i32
    return %c0_i32, %c0_i32_0 : i32, i32
  }
  func.func @transform_3(%arg0: i32) -> (i32, i32) {
    %c0_i32 = arith.constant 0 : i32
    %c0_i32_0 = arith.constant 0 : i32
    %c0_i32_1 = arith.constant 0 : i32
    return %c0_i32, %c0_i32_0 : i32, i32
  }
  func.func @transform_4(%arg0: i32) -> (i32, i32) {
    %c0_i32 = arith.constant 0 : i32
    %c0_i32_0 = arith.constant 0 : i32
    %c0_i32_1 = arith.constant 0 : i32
    return %c0_i32, %c0_i32_0 : i32, i32
  }
  func.func @transform_5(%arg0: i32) -> (i32, i32) {
    %c0_i32 = arith.constant 0 : i32
    %c0_i32_0 = arith.constant 0 : i32
    %c0_i32_1 = arith.constant 0 : i32
    return %c0_i32, %c0_i32_0 : i32, i32
  }
  func.func @transform_6(%arg0: i32) -> (i32, i32) {
    %c0_i32 = arith.constant 0 : i32
    %c0_i32_0 = arith.constant 0 : i32
    %c0_i32_1 = arith.constant 0 : i32
    return %c0_i32, %c0_i32_0 : i32, i32
  }
  func.func @transform_7(%arg0: i32) -> (i32, i32) {
    %c0_i32 = arith.constant 0 : i32
    %c0_i32_0 = arith.constant 0 : i32
    %c0_i32_1 = arith.constant 0 : i32
    return %c0_i32, %c0_i32_0 : i32, i32
  }
  func.func @transform_8(%arg0: i32) -> (i32, i32) {
    %c0_i32 = arith.constant 0 : i32
    %c0_i32_0 = arith.constant 0 : i32
    %c0_i32_1 = arith.constant 0 : i32
    return %c0_i32, %c0_i32_0 : i32, i32
  }
  func.func @transform_9(%arg0: i32) -> (i32, i32) {
    %c0_i32 = arith.constant 0 : i32
    %c0_i32_0 = arith.constant 0 : i32
    %c0_i32_1 = arith.constant 0 : i32
    return %c0_i32, %c0_i32_0 : i32, i32
  }
  func.func @transform_10(%arg0: i32) -> (i32, i32) {
    %c0_i32 = arith.constant 0 : i32
    %c0_i32_0 = arith.constant 0 : i32
    %c0_i32_1 = arith.constant 0 : i32
    return %c0_i32, %c0_i32_0 : i32, i32
  }
  func.func @transform_11(%arg0: i32) -> (i32, i32) {
    %c0_i32 = arith.constant 0 : i32
    %c0_i32_0 = arith.constant 0 : i32
    return %arg0, %c0_i32 : i32, i32
  }
  func.func @transform_12(%arg0: i32) -> (i32, i32) {
    %c0_i32 = arith.constant 0 : i32
    %c0_i32_0 = arith.constant 0 : i32
    return %arg0, %c0_i32 : i32, i32
  }
}

</mosaic_0001>

<llo_original>
// kernel: net_forward.1
$region0: #{net_forward.1}
  #allocation0 [shape = 'u32[]', space=smem, size = 0x4, offset = 0x4, fixed_abs, tag = 'smem constant byte address 0x4 - core index']
  #allocation1 [shape = 'u32[144,128]{1,0:T(1,128)}', space=vmem, size = 0x12000, scoped, tag = 'internal scratch']
  %s0 = inlined_call_operand.vmem [shape: bf16[40,256], index: 0, kind: input, shape index: {}]
  %s1 = inlined_call_operand.vmem [shape: bf16[256,2048], index: 1, kind: input, shape index: {}]
  %s2 = inlined_call_operand.hbm [shape: f32[1,2048], index: 2, kind: input, shape index: {}]
  %s3 = inlined_call_operand.hbm [shape: bf16[1024,512], index: 3, kind: input, shape index: {}]
  %s4 = inlined_call_operand.hbm [shape: f32[1,512], index: 4, kind: input, shape index: {}]
  %s5 = inlined_call_operand.hbm [shape: bf16[256,256], index: 5, kind: input, shape index: {}]
  %s6 = inlined_call_operand.hbm [shape: f32[1,256], index: 6, kind: input, shape index: {}]
  %s7 = inlined_call_operand.vmem [shape: bf16[640,64], index: 7, kind: input, shape index: {}]
  %s8 = inlined_call_operand.vmem [shape: f32[1,64], index: 8, kind: input, shape index: {}]
  %s9 = inlined_call_operand.vmem [shape: bf16[64,128], index: 9, kind: input, shape index: {}]
  %s10 = inlined_call_operand.hbm [shape: f32[1,128], index: 10, kind: input, shape index: {}]
  %s11 = inlined_call_operand.vmem [shape: f32[8,640], index: 11, kind: output, shape index: {0}]
  %s12 = inlined_call_operand.vmem [shape: f32[8,128], index: 12, kind: output, shape index: {1}]
  %13 = xla_tuple %s11, %s12
  %s14 = sld [smem:[#allocation0]]
  $region86: #{net_forward.1} parent=0
    _
  %s16 = ssub.s32 1, %s14
  %s17 = scalar_select 0, %s16, %s14
  $region1: #{net_forward.1} parent=0
    #allocation2 [shape = 'u8[8192]{0}', space=vmem, size = 0x2000, scoped, tag = 'input window, operand 2, single buffered']
    #allocation3 [shape = 's32[1]{0}', space=sflag, size = 0x4, scoped, tag = 'scoped memory for net_forward.1']
    #allocation4 [shape = 'u8[1048576]{0}', space=vmem, size = 0x100000, scoped, tag = 'input window, operand 3, single buffered']
    #allocation5 [shape = 's32[1]{0}', space=sflag, size = 0x4, scoped, tag = 'scoped memory for net_forward.1']
    #allocation6 [shape = 'u8[2048]{0}', space=vmem, size = 0x800, scoped, tag = 'input window, operand 4, single buffered']
    #allocation7 [shape = 'u8[131072]{0}', space=vmem, size = 0x20000, scoped, tag = 'input window, operand 5, single buffered']
    #allocation8 [shape = 's32[1]{0}', space=sflag, size = 0x4, scoped, tag = 'scoped memory for net_forward.1']
    #allocation9 [shape = 'u8[1024]{0}', space=vmem, size = 0x400, scoped, tag = 'input window, operand 6, single buffered']
    #allocation10 [shape = 'u8[512]{0}', space=vmem, size = 0x400, scoped, tag = 'input window, operand 10, single buffered']
    #allocation11 [shape = 's32[1]{0}', space=sflag, size = 0x4, scoped, tag = 'scoped memory for net_forward.1']
    %18 = vsyncpa [#allocation3], 0
    %19 = vsyncpa [#allocation5], 0
    %20 = vsyncpa [#allocation8], 0
    %21 = vsyncpa [#allocation11], 0
    // Predicated region
    $region2: #{net_forward.1} parent=1 // pred_check
      _
    $region3: #{net_forward.1} parent=1 // pred_check_branch
      %23 = sbr.rel (0) target = $region5
    $region4: #{net_forward.1} parent=1 // pred_region
      _
    $region5: #{net_forward.1} parent=1 // pred_fallthru
      _
    // Predicated region
    $region6: #{net_forward.1} parent=1 // pred_check
      _
    $region7: #{net_forward.1} parent=1 // pred_check_branch
      %25 = sbr.rel (0) target = $region9
    $region8: #{net_forward.1} parent=1 // pred_region
      _
    $region9: #{net_forward.1} parent=1 // pred_fallthru
      _
    // Predicated region
    $region10: #{net_forward.1} parent=1 // pred_check
      _
    $region11: #{net_forward.1} parent=1 // pred_check_branch
      %27 = sbr.rel (0) target = $region13
    $region12: #{net_forward.1} parent=1 // pred_region
      %s29 = ssub.s32 256, 256
      %30 = vsyncadd [#allocation3], %s29
      %s32 = sshll.u32 [#allocation2], 4
      %s33 = int_to_ptr.vmem [resolvable:$true] %s32
      %35 = dma.hbm_to_vmem [thread:$0]  %s2, 256, %s33, [#allocation3]
    $region13: #{net_forward.1} parent=1 // pred_fallthru
      _
    // Predicated region
    $region14: #{net_forward.1} parent=1 // pred_check
      _
    $region15: #{net_forward.1} parent=1 // pred_check_branch
      %37 = sbr.rel (0) target = $region17
    $region16: #{net_forward.1} parent=1 // pred_region
      %s39 = ssub.s32 32768, 32768
      %40 = vsyncadd [#allocation5], %s39
      %s41 = sshll.u32 [#allocation4], 4
      %s42 = int_to_ptr.vmem [resolvable:$true] %s41
      %47 = dma.hbm_to_vmem [thread:$0]  %s3, 32768, %s42, [#allocation5], 256, 256, 16
    $region17: #{net_forward.1} parent=1 // pred_fallthru
      _
    // Predicated region
    $region18: #{net_forward.1} parent=1 // pred_check
      _
    $region19: #{net_forward.1} parent=1 // pred_check_branch
      %49 = sbr.rel (0) target = $region21
    $region20: #{net_forward.1} parent=1 // pred_region
      %s51 = ssub.s32 64, 64
      %52 = vsyncadd [#allocation5], %s51
      %s54 = sshll.u32 [#allocation6], 4
      %s55 = int_to_ptr.vmem [resolvable:$true] %s54
      %57 = dma.hbm_to_vmem [thread:$0]  %s4, 64, %s55, [#allocation5]
    $region21: #{net_forward.1} parent=1 // pred_fallthru
      _
    // Predicated region
    $region22: #{net_forward.1} parent=1 // pred_check
      _
    $region23: #{net_forward.1} parent=1 // pred_check_branch
      %59 = sbr.rel (0) target = $region25
    $region24: #{net_forward.1} parent=1 // pred_region
      %s61 = ssub.s32 4096, 4096
      %62 = vsyncadd [#allocation8], %s61
      %s63 = sshll.u32 [#allocation7], 4
      %s64 = int_to_ptr.vmem [resolvable:$true] %s63
      %69 = dma.hbm_to_vmem [thread:$0]  %s5, 4096, %s64, [#allocation8], 128, 128, 8
    $region25: #{net_forward.1} parent=1 // pred_fallthru
      _
    // Predicated region
    $region26: #{net_forward.1} parent=1 // pred_check
      _
    $region27: #{net_forward.1} parent=1 // pred_check_branch
      %71 = sbr.rel (0) target = $region29
    $region28: #{net_forward.1} parent=1 // pred_region
      %s73 = ssub.s32 32, 32
      %74 = vsyncadd [#allocation8], %s73
      %s76 = sshll.u32 [#allocation9], 4
      %s77 = int_to_ptr.vmem [resolvable:$true] %s76
      %79 = dma.hbm_to_vmem [thread:$0]  %s6, 32, %s77, [#allocation8]
    $region29: #{net_forward.1} parent=1 // pred_fallthru
      _
    // Predicated region
    $region30: #{net_forward.1} parent=1 // pred_check
      _
    $region31: #{net_forward.1} parent=1 // pred_check_branch
      %81 = sbr.rel (0) target = $region33
    $region32: #{net_forward.1} parent=1 // pred_region
      _
    $region33: #{net_forward.1} parent=1 // pred_fallthru
      _
    // Predicated region
    $region34: #{net_forward.1} parent=1 // pred_check
      _
    $region35: #{net_forward.1} parent=1 // pred_check_branch
      %83 = sbr.rel (0) target = $region37
    $region36: #{net_forward.1} parent=1 // pred_region
      _
    $region37: #{net_forward.1} parent=1 // pred_fallthru
      _
    // Predicated region
    $region38: #{net_forward.1} parent=1 // pred_check
      _
    $region39: #{net_forward.1} parent=1 // pred_check_branch
      %85 = sbr.rel (0) target = $region41
    $region40: #{net_forward.1} parent=1 // pred_region
      _
    $region41: #{net_forward.1} parent=1 // pred_fallthru
      _
    // Predicated region
    $region42: #{net_forward.1} parent=1 // pred_check
      _
    $region43: #{net_forward.1} parent=1 // pred_check_branch
      %87 = sbr.rel (0) target = $region45
    $region44: #{net_forward.1} parent=1 // pred_region
      %s89 = ssub.s32 16, 16
      %90 = vsyncadd [#allocation11], %s89
      %s92 = sshll.u32 [#allocation10], 4
      %s93 = int_to_ptr.vmem [resolvable:$true] %s92
      %95 = dma.hbm_to_vmem [thread:$0]  %s10, 16, %s93, [#allocation11]
    $region45: #{net_forward.1} parent=1 // pred_fallthru
      _
    // Predicated region
    $region46: #{net_forward.1} parent=1 // pred_check
      _
    $region47: #{net_forward.1} parent=1 // pred_check_branch
      %97 = sbr.rel (0) target = $region49
    $region48: #{net_forward.1} parent=1 // pred_region
      %98 = dma.done [#allocation3], 256
    $region49: #{net_forward.1} parent=1 // pred_fallthru
      _
    // Predicated region
    $region50: #{net_forward.1} parent=1 // pred_check
      _
    $region51: #{net_forward.1} parent=1 // pred_check_branch
      %100 = sbr.rel (0) target = $region53
    $region52: #{net_forward.1} parent=1 // pred_region
      %101 = dma.done [#allocation5], 32768
    $region53: #{net_forward.1} parent=1 // pred_fallthru
      _
    // Predicated region
    $region54: #{net_forward.1} parent=1 // pred_check
      _
    $region55: #{net_forward.1} parent=1 // pred_check_branch
      %103 = sbr.rel (0) target = $region57
    $region56: #{net_forward.1} parent=1 // pred_region
      %104 = dma.done [#allocation5], 64
    $region57: #{net_forward.1} parent=1 // pred_fallthru
      _
    // Predicated region
    $region58: #{net_forward.1} parent=1 // pred_check
      _
    $region59: #{net_forward.1} parent=1 // pred_check_branch
      %106 = sbr.rel (0) target = $region61
    $region60: #{net_forward.1} parent=1 // pred_region
      %107 = dma.done [#allocation8], 4096
    $region61: #{net_forward.1} parent=1 // pred_fallthru
      _
    // Predicated region
    $region62: #{net_forward.1} parent=1 // pred_check
      _
    $region63: #{net_forward.1} parent=1 // pred_check_branch
      %109 = sbr.rel (0) target = $region65
    $region64: #{net_forward.1} parent=1 // pred_region
      %110 = dma.done [#allocation8], 32
    $region65: #{net_forward.1} parent=1 // pred_fallthru
      _
    // Predicated region
    $region66: #{net_forward.1} parent=1 // pred_check
      _
    $region67: #{net_forward.1} parent=1 // pred_check_branch
      %112 = sbr.rel (0) target = $region69
    $region68: #{net_forward.1} parent=1 // pred_region
      %113 = dma.done [#allocation11], 16
    $region69: #{net_forward.1} parent=1 // pred_fallthru
      _
    %v115 = vld [vmem:[%s0] sm:$0xff]
    %v116 = vld [vmem:[%s0 + $0x8] sm:$0xff]
    %v117 = vld [vmem:[%s0 + $0x10] sm:$0xff]
    %v118 = vld [vmem:[%s0 + $0x18] sm:$0xff]
    %v119 = vld [vmem:[%s0 + $0x20] sm:$0xff]
    %v120 = vlaneseq
    %v121 = vshrl.u32 %v120, 7
    %v122 = vadd.s32 %v121, 8
    %v123 = vadd.s32 %v121, 16
    %v124 = vadd.s32 %v121, 24
    %v125 = vadd.s32 %v121, 32
    %vm126 = vcmp.lt.s32.totalorder %v121, 8
    %vm127 = vcmp.lt.s32.totalorder %v122, 8
    %vm128 = vcmp.lt.s32.totalorder %v123, 8
    %vm129 = vcmp.lt.s32.totalorder %v124, 8
    %vm130 = vcmp.lt.s32.totalorder %v125, 8
    %v131 = vld [vmem:[%s1] sm:$0xff]
    %v132 = vld [vmem:[%s1 + $0x8] sm:$0xff]
    %v133 = vld [vmem:[%s1 + $0x10] sm:$0xff]
    %v134 = vld [vmem:[%s1 + $0x18] sm:$0xff]
    %v135 = vld [vmem:[%s1 + $0x20] sm:$0xff]
    %v136 = vld [vmem:[%s1 + $0x28] sm:$0xff]
    %v137 = vld [vmem:[%s1 + $0x30] sm:$0xff]
    %v138 = vld [vmem:[%s1 + $0x38] sm:$0xff]
    %v139 = vld [vmem:[%s1 + $0x40] sm:$0xff]
    %v140 = vld [vmem:[%s1 + $0x48] sm:$0xff]
    %v141 = vld [vmem:[%s1 + $0x50] sm:$0xff]
    %v142 = vld [vmem:[%s1 + $0x58] sm:$0xff]
    %v143 = vld [vmem:[%s1 + $0x60] sm:$0xff]
    %v144 = vld [vmem:[%s1 + $0x68] sm:$0xff]
    %v145 = vld [vmem:[%s1 + $0x70] sm:$0xff]
    %v146 = vld [vmem:[%s1 + $0x78] sm:$0xff]
    %v147 = vld [vmem:[%s1 + $0x80] sm:$0xff]
    %v148 = vld [vmem:[%s1 + $0x88] sm:$0xff]
    %v149 = vld [vmem:[%s1 + $0x90] sm:$0xff]
    %v150 = vld [vmem:[%s1 + $0x98] sm:$0xff]
    %v151 = vld [vmem:[%s1 + $0xa0] sm:$0xff]
    %v152 = vld [vmem:[%s1 + $0xa8] sm:$0xff]
    %v153 = vld [vmem:[%s1 + $0xb0] sm:$0xff]
    %v154 = vld [vmem:[%s1 + $0xb8] sm:$0xff]
    %v155 = vld [vmem:[%s1 + $0xc0] sm:$0xff]
    %v156 = vld [vmem:[%s1 + $0xc8] sm:$0xff]
    %v157 = vld [vmem:[%s1 + $0xd0] sm:$0xff]
    %v158 = vld [vmem:[%s1 + $0xd8] sm:$0xff]
    %v159 = vld [vmem:[%s1 + $0xe0] sm:$0xff]
    %v160 = vld [vmem:[%s1 + $0xe8] sm:$0xff]
    %v161 = vld [vmem:[%s1 + $0xf0] sm:$0xff]
    %v162 = vld [vmem:[%s1 + $0xf8] sm:$0xff]
    %v163 = vld [vmem:[%s1 + $0x100] sm:$0xff]
    %v164 = vld [vmem:[%s1 + $0x108] sm:$0xff]
    %v165 = vld [vmem:[%s1 + $0x110] sm:$0xff]
    %v166 = vld [vmem:[%s1 + $0x118] sm:$0xff]
    %v167 = vld [vmem:[%s1 + $0x120] sm:$0xff]
    %v168 = vld [vmem:[%s1 + $0x128] sm:$0xff]
    %v169 = vld [vmem:[%s1 + $0x130] sm:$0xff]
    %v170 = vld [vmem:[%s1 + $0x138] sm:$0xff]
    %v171 = vld [vmem:[%s1 + $0x140] sm:$0xff]
    %v172 = vld [vmem:[%s1 + $0x148] sm:$0xff]
    %v173 = vld [vmem:[%s1 + $0x150] sm:$0xff]
    %v174 = vld [vmem:[%s1 + $0x158] sm:$0xff]
    %v175 = vld [vmem:[%s1 + $0x160] sm:$0xff]
    %v176 = vld [vmem:[%s1 + $0x168] sm:$0xff]
    %v177 = vld [vmem:[%s1 + $0x170] sm:$0xff]
    %v178 = vld [vmem:[%s1 + $0x178] sm:$0xff]
    %v179 = vld [vmem:[%s1 + $0x180] sm:$0xff]
    %v180 = vld [vmem:[%s1 + $0x188] sm:$0xff]
    %v181 = vld [vmem:[%s1 + $0x190] sm:$0xff]
    %v182 = vld [vmem:[%s1 + $0x198] sm:$0xff]
    %v183 = vld [vmem:[%s1 + $0x1a0] sm:$0xff]
    %v184 = vld [vmem:[%s1 + $0x1a8] sm:$0xff]
    %v185 = vld [vmem:[%s1 + $0x1b0] sm:$0xff]
    %v186 = vld [vmem:[%s1 + $0x1b8] sm:$0xff]
    %v187 = vld [vmem:[%s1 + $0x1c0] sm:$0xff]
    %v188 = vld [vmem:[%s1 + $0x1c8] sm:$0xff]
    %v189 = vld [vmem:[%s1 + $0x1d0] sm:$0xff]
    %v190 = vld [vmem:[%s1 + $0x1d8] sm:$0xff]
    %v191 = vld [vmem:[%s1 + $0x1e0] sm:$0xff]
    %v192 = vld [vmem:[%s1 + $0x1e8] sm:$0xff]
    %v193 = vld [vmem:[%s1 + $0x1f0] sm:$0xff]
    %v194 = vld [vmem:[%s1 + $0x1f8] sm:$0xff]
    %v195 = vld [vmem:[%s1 + $0x200] sm:$0xff]
    %v196 = vld [vmem:[%s1 + $0x208] sm:$0xff]
    %v197 = vld [vmem:[%s1 + $0x210] sm:$0xff]
    %v198 = vld [vmem:[%s1 + $0x218] sm:$0xff]
    %v199 = vld [vmem:[%s1 + $0x220] sm:$0xff]
    %v200 = vld [vmem:[%s1 + $0x228] sm:$0xff]
    %v201 = vld [vmem:[%s1 + $0x230] sm:$0xff]
    %v202 = vld [vmem:[%s1 + $0x238] sm:$0xff]
    %v203 = vld [vmem:[%s1 + $0x240] sm:$0xff]
    %v204 = vld [vmem:[%s1 + $0x248] sm:$0xff]
    %v205 = vld [vmem:[%s1 + $0x250] sm:$0xff]
    %v206 = vld [vmem:[%s1 + $0x258] sm:$0xff]
    %v207 = vld [vmem:[%s1 + $0x260] sm:$0xff]
    %v208 = vld [vmem:[%s1 + $0x268] sm:$0xff]
    %v209 = vld [vmem:[%s1 + $0x270] sm:$0xff]
    %v210 = vld [vmem:[%s1 + $0x278] sm:$0xff]
    %v211 = vld [vmem:[%s1 + $0x280] sm:$0xff]
    %v212 = vld [vmem:[%s1 + $0x288] sm:$0xff]
    %v213 = vld [vmem:[%s1 + $0x290] sm:$0xff]
    %v214 = vld [vmem:[%s1 + $0x298] sm:$0xff]
    %v215 = vld [vmem:[%s1 + $0x2a0] sm:$0xff]
    %v216 = vld [vmem:[%s1 + $0x2a8] sm:$0xff]
    %v217 = vld [vmem:[%s1 + $0x2b0] sm:$0xff]
    %v218 = vld [vmem:[%s1 + $0x2b8] sm:$0xff]
    %v219 = vld [vmem:[%s1 + $0x2c0] sm:$0xff]
    %v220 = vld [vmem:[%s1 + $0x2c8] sm:$0xff]
    %v221 = vld [vmem:[%s1 + $0x2d0] sm:$0xff]
    %v222 = vld [vmem:[%s1 + $0x2d8] sm:$0xff]
    %v223 = vld [vmem:[%s1 + $0x2e0] sm:$0xff]
    %v224 = vld [vmem:[%s1 + $0x2e8] sm:$0xff]
    %v225 = vld [vmem:[%s1 + $0x2f0] sm:$0xff]
    %v226 = vld [vmem:[%s1 + $0x2f8] sm:$0xff]
    %v227 = vld [vmem:[%s1 + $0x300] sm:$0xff]
    %v228 = vld [vmem:[%s1 + $0x308] sm:$0xff]
    %v229 = vld [vmem:[%s1 + $0x310] sm:$0xff]
    %v230 = vld [vmem:[%s1 + $0x318] sm:$0xff]
    %v231 = vld [vmem:[%s1 + $0x320] sm:$0xff]
    %v232 = vld [vmem:[%s1 + $0x328] sm:$0xff]
    %v233 = vld [vmem:[%s1 + $0x330] sm:$0xff]
    %v234 = vld [vmem:[%s1 + $0x338] sm:$0xff]
    %v235 = vld [vmem:[%s1 + $0x340] sm:$0xff]
    %v236 = vld [vmem:[%s1 + $0x348] sm:$0xff]
    %v237 = vld [vmem:[%s1 + $0x350] sm:$0xff]
    %v238 = vld [vmem:[%s1 + $0x358] sm:$0xff]
    %v239 = vld [vmem:[%s1 + $0x360] sm:$0xff]
    %v240 = vld [vmem:[%s1 + $0x368] sm:$0xff]
    %v241 = vld [vmem:[%s1 + $0x370] sm:$0xff]
    %v242 = vld [vmem:[%s1 + $0x378] sm:$0xff]
    %v243 = vld [vmem:[%s1 + $0x380] sm:$0xff]
    %v244 = vld [vmem:[%s1 + $0x388] sm:$0xff]
    %v245 = vld [vmem:[%s1 + $0x390] sm:$0xff]
    %v246 = vld [vmem:[%s1 + $0x398] sm:$0xff]
    %v247 = vld [vmem:[%s1 + $0x3a0] sm:$0xff]
    %v248 = vld [vmem:[%s1 + $0x3a8] sm:$0xff]
    %v249 = vld [vmem:[%s1 + $0x3b0] sm:$0xff]
    %v250 = vld [vmem:[%s1 + $0x3b8] sm:$0xff]
    %v251 = vld [vmem:[%s1 + $0x3c0] sm:$0xff]
    %v252 = vld [vmem:[%s1 + $0x3c8] sm:$0xff]
    %v253 = vld [vmem:[%s1 + $0x3d0] sm:$0xff]
    %v254 = vld [vmem:[%s1 + $0x3d8] sm:$0xff]
    %v255 = vld [vmem:[%s1 + $0x3e0] sm:$0xff]
    %v256 = vld [vmem:[%s1 + $0x3e8] sm:$0xff]
    %v257 = vld [vmem:[%s1 + $0x3f0] sm:$0xff]
    %v258 = vld [vmem:[%s1 + $0x3f8] sm:$0xff]
    %v259 = vld [vmem:[%s1 + $0x400] sm:$0xff]
    %v260 = vld [vmem:[%s1 + $0x408] sm:$0xff]
    %v261 = vld [vmem:[%s1 + $0x410] sm:$0xff]
    %v262 = vld [vmem:[%s1 + $0x418] sm:$0xff]
    %v263 = vld [vmem:[%s1 + $0x420] sm:$0xff]
    %v264 = vld [vmem:[%s1 + $0x428] sm:$0xff]
    %v265 = vld [vmem:[%s1 + $0x430] sm:$0xff]
    %v266 = vld [vmem:[%s1 + $0x438] sm:$0xff]
    %v267 = vld [vmem:[%s1 + $0x440] sm:$0xff]
    %v268 = vld [vmem:[%s1 + $0x448] sm:$0xff]
    %v269 = vld [vmem:[%s1 + $0x450] sm:$0xff]
    %v270 = vld [vmem:[%s1 + $0x458] sm:$0xff]
    %v271 = vld [vmem:[%s1 + $0x460] sm:$0xff]
    %v272 = vld [vmem:[%s1 + $0x468] sm:$0xff]
    %v273 = vld [vmem:[%s1 + $0x470] sm:$0xff]
    %v274 = vld [vmem:[%s1 + $0x478] sm:$0xff]
    %v275 = vld [vmem:[%s1 + $0x480] sm:$0xff]
    %v276 = vld [vmem:[%s1 + $0x488] sm:$0xff]
    %v277 = vld [vmem:[%s1 + $0x490] sm:$0xff]
    %v278 = vld [vmem:[%s1 + $0x498] sm:$0xff]
    %v279 = vld [vmem:[%s1 + $0x4a0] sm:$0xff]
    %v280 = vld [vmem:[%s1 + $0x4a8] sm:$0xff]
    %v281 = vld [vmem:[%s1 + $0x4b0] sm:$0xff]
    %v282 = vld [vmem:[%s1 + $0x4b8] sm:$0xff]
    %v283 = vld [vmem:[%s1 + $0x4c0] sm:$0xff]
    %v284 = vld [vmem:[%s1 + $0x4c8] sm:$0xff]
    %v285 = vld [vmem:[%s1 + $0x4d0] sm:$0xff]
    %v286 = vld [vmem:[%s1 + $0x4d8] sm:$0xff]
    %v287 = vld [vmem:[%s1 + $0x4e0] sm:$0xff]
    %v288 = vld [vmem:[%s1 + $0x4e8] sm:$0xff]
    %v289 = vld [vmem:[%s1 + $0x4f0] sm:$0xff]
    %v290 = vld [vmem:[%s1 + $0x4f8] sm:$0xff]
    %v291 = vld [vmem:[%s1 + $0x500] sm:$0xff]
    %v292 = vld [vmem:[%s1 + $0x508] sm:$0xff]
    %v293 = vld [vmem:[%s1 + $0x510] sm:$0xff]
    %v294 = vld [vmem:[%s1 + $0x518] sm:$0xff]
    %v295 = vld [vmem:[%s1 + $0x520] sm:$0xff]
    %v296 = vld [vmem:[%s1 + $0x528] sm:$0xff]
    %v297 = vld [vmem:[%s1 + $0x530] sm:$0xff]
    %v298 = vld [vmem:[%s1 + $0x538] sm:$0xff]
    %v299 = vld [vmem:[%s1 + $0x540] sm:$0xff]
    %v300 = vld [vmem:[%s1 + $0x548] sm:$0xff]
    %v301 = vld [vmem:[%s1 + $0x550] sm:$0xff]
    %v302 = vld [vmem:[%s1 + $0x558] sm:$0xff]
    %v303 = vld [vmem:[%s1 + $0x560] sm:$0xff]
    %v304 = vld [vmem:[%s1 + $0x568] sm:$0xff]
    %v305 = vld [vmem:[%s1 + $0x570] sm:$0xff]
    %v306 = vld [vmem:[%s1 + $0x578] sm:$0xff]
    %v307 = vld [vmem:[%s1 + $0x580] sm:$0xff]
    %v308 = vld [vmem:[%s1 + $0x588] sm:$0xff]
    %v309 = vld [vmem:[%s1 + $0x590] sm:$0xff]
    %v310 = vld [vmem:[%s1 + $0x598] sm:$0xff]
    %v311 = vld [vmem:[%s1 + $0x5a0] sm:$0xff]
    %v312 = vld [vmem:[%s1 + $0x5a8] sm:$0xff]
    %v313 = vld [vmem:[%s1 + $0x5b0] sm:$0xff]
    %v314 = vld [vmem:[%s1 + $0x5b8] sm:$0xff]
    %v315 = vld [vmem:[%s1 + $0x5c0] sm:$0xff]
    %v316 = vld [vmem:[%s1 + $0x5c8] sm:$0xff]
    %v317 = vld [vmem:[%s1 + $0x5d0] sm:$0xff]
    %v318 = vld [vmem:[%s1 + $0x5d8] sm:$0xff]
    %v319 = vld [vmem:[%s1 + $0x5e0] sm:$0xff]
    %v320 = vld [vmem:[%s1 + $0x5e8] sm:$0xff]
    %v321 = vld [vmem:[%s1 + $0x5f0] sm:$0xff]
    %v322 = vld [vmem:[%s1 + $0x5f8] sm:$0xff]
    %v323 = vld [vmem:[%s1 + $0x600] sm:$0xff]
    %v324 = vld [vmem:[%s1 + $0x608] sm:$0xff]
    %v325 = vld [vmem:[%s1 + $0x610] sm:$0xff]
    %v326 = vld [vmem:[%s1 + $0x618] sm:$0xff]
    %v327 = vld [vmem:[%s1 + $0x620] sm:$0xff]
    %v328 = vld [vmem:[%s1 + $0x628] sm:$0xff]
    %v329 = vld [vmem:[%s1 + $0x630] sm:$0xff]
    %v330 = vld [vmem:[%s1 + $0x638] sm:$0xff]
    %v331 = vld [vmem:[%s1 + $0x640] sm:$0xff]
    %v332 = vld [vmem:[%s1 + $0x648] sm:$0xff]
    %v333 = vld [vmem:[%s1 + $0x650] sm:$0xff]
    %v334 = vld [vmem:[%s1 + $0x658] sm:$0xff]
    %v335 = vld [vmem:[%s1 + $0x660] sm:$0xff]
    %v336 = vld [vmem:[%s1 + $0x668] sm:$0xff]
    %v337 = vld [vmem:[%s1 + $0x670] sm:$0xff]
    %v338 = vld [vmem:[%s1 + $0x678] sm:$0xff]
    %v339 = vld [vmem:[%s1 + $0x680] sm:$0xff]
    %v340 = vld [vmem:[%s1 + $0x688] sm:$0xff]
    %v341 = vld [vmem:[%s1 + $0x690] sm:$0xff]
    %v342 = vld [vmem:[%s1 + $0x698] sm:$0xff]
    %v343 = vld [vmem:[%s1 + $0x6a0] sm:$0xff]
    %v344 = vld [vmem:[%s1 + $0x6a8] sm:$0xff]
    %v345 = vld [vmem:[%s1 + $0x6b0] sm:$0xff]
    %v346 = vld [vmem:[%s1 + $0x6b8] sm:$0xff]
    %v347 = vld [vmem:[%s1 + $0x6c0] sm:$0xff]
    %v348 = vld [vmem:[%s1 + $0x6c8] sm:$0xff]
    %v349 = vld [vmem:[%s1 + $0x6d0] sm:$0xff]
    %v350 = vld [vmem:[%s1 + $0x6d8] sm:$0xff]
    %v351 = vld [vmem:[%s1 + $0x6e0] sm:$0xff]
    %v352 = vld [vmem:[%s1 + $0x6e8] sm:$0xff]
    %v353 = vld [vmem:[%s1 + $0x6f0] sm:$0xff]
    %v354 = vld [vmem:[%s1 + $0x6f8] sm:$0xff]
    %v355 = vld [vmem:[%s1 + $0x700] sm:$0xff]
    %v356 = vld [vmem:[%s1 + $0x708] sm:$0xff]
    %v357 = vld [vmem:[%s1 + $0x710] sm:$0xff]
    %v358 = vld [vmem:[%s1 + $0x718] sm:$0xff]
    %v359 = vld [vmem:[%s1 + $0x720] sm:$0xff]
    %v360 = vld [vmem:[%s1 + $0x728] sm:$0xff]
    %v361 = vld [vmem:[%s1 + $0x730] sm:$0xff]
    %v362 = vld [vmem:[%s1 + $0x738] sm:$0xff]
    %v363 = vld [vmem:[%s1 + $0x740] sm:$0xff]
    %v364 = vld [vmem:[%s1 + $0x748] sm:$0xff]
    %v365 = vld [vmem:[%s1 + $0x750] sm:$0xff]
    %v366 = vld [vmem:[%s1 + $0x758] sm:$0xff]
    %v367 = vld [vmem:[%s1 + $0x760] sm:$0xff]
    %v368 = vld [vmem:[%s1 + $0x768] sm:$0xff]
    %v369 = vld [vmem:[%s1 + $0x770] sm:$0xff]
    %v370 = vld [vmem:[%s1 + $0x778] sm:$0xff]
    %v371 = vld [vmem:[%s1 + $0x780] sm:$0xff]
    %v372 = vld [vmem:[%s1 + $0x788] sm:$0xff]
    %v373 = vld [vmem:[%s1 + $0x790] sm:$0xff]
    %v374 = vld [vmem:[%s1 + $0x798] sm:$0xff]
    %v375 = vld [vmem:[%s1 + $0x7a0] sm:$0xff]
    %v376 = vld [vmem:[%s1 + $0x7a8] sm:$0xff]
    %v377 = vld [vmem:[%s1 + $0x7b0] sm:$0xff]
    %v378 = vld [vmem:[%s1 + $0x7b8] sm:$0xff]
    %v379 = vld [vmem:[%s1 + $0x7c0] sm:$0xff]
    %v380 = vld [vmem:[%s1 + $0x7c8] sm:$0xff]
    %v381 = vld [vmem:[%s1 + $0x7d0] sm:$0xff]
    %v382 = vld [vmem:[%s1 + $0x7d8] sm:$0xff]
    %v383 = vld [vmem:[%s1 + $0x7e0] sm:$0xff]
    %v384 = vld [vmem:[%s1 + $0x7e8] sm:$0xff]
    %v385 = vld [vmem:[%s1 + $0x7f0] sm:$0xff]
    %v386 = vld [vmem:[%s1 + $0x7f8] sm:$0xff]
    %v387 = vld [vmem:[#allocation2] sm:$0xff]
    %v388 = vld [vmem:[#allocation2 + $0x8] sm:$0xff]
    %v391 = vlaneseq
    %v392 = vshrl.u32 %v391, 7
    %v393 = vsub.s32 0, %v392
    %v394 = vrot.slane %v387, %v393
    %v395 = vlaneseq
    %v396 = vshrl.u32 %v395, 7
    %v397 = vsub.s32 1, %v396
    %v398 = vrot.slane %v387, %v397
    %v399 = vlaneseq
    %v400 = vshrl.u32 %v399, 7
    %v401 = vsub.s32 2, %v400
    %v402 = vrot.slane %v387, %v401
    %v403 = vlaneseq
    %v404 = vshrl.u32 %v403, 7
    %v405 = vsub.s32 3, %v404
    %v406 = vrot.slane %v387, %v405
    %v407 = vlaneseq
    %v408 = vshrl.u32 %v407, 7
    %v409 = vsub.s32 4, %v408
    %v410 = vrot.slane %v387, %v409
    %v411 = vlaneseq
    %v412 = vshrl.u32 %v411, 7
    %v413 = vsub.s32 5, %v412
    %v414 = vrot.slane %v387, %v413
    %v415 = vlaneseq
    %v416 = vshrl.u32 %v415, 7
    %v417 = vsub.s32 6, %v416
    %v418 = vrot.slane %v387, %v417
    %v419 = vlaneseq
    %v420 = vshrl.u32 %v419, 7
    %v421 = vsub.s32 7, %v420
    %v422 = vrot.slane %v387, %v421
    %v423 = vlaneseq
    %v424 = vshrl.u32 %v423, 7
    %v425 = vsub.s32 0, %v424
    %v426 = vrot.slane %v388, %v425
    %v427 = vlaneseq
    %v428 = vshrl.u32 %v427, 7
    %v429 = vsub.s32 1, %v428
    %v430 = vrot.slane %v388, %v429
    %v431 = vlaneseq
    %v432 = vshrl.u32 %v431, 7
    %v433 = vsub.s32 2, %v432
    %v434 = vrot.slane %v388, %v433
    %v435 = vlaneseq
    %v436 = vshrl.u32 %v435, 7
    %v437 = vsub.s32 3, %v436
    %v438 = vrot.slane %v388, %v437
    %v439 = vlaneseq
    %v440 = vshrl.u32 %v439, 7
    %v441 = vsub.s32 4, %v440
    %v442 = vrot.slane %v388, %v441
    %v443 = vlaneseq
    %v444 = vshrl.u32 %v443, 7
    %v445 = vsub.s32 5, %v444
    %v446 = vrot.slane %v388, %v445
    %v447 = vlaneseq
    %v448 = vshrl.u32 %v447, 7
    %v449 = vsub.s32 6, %v448
    %v450 = vrot.slane %v388, %v449
    %v451 = vlaneseq
    %v452 = vshrl.u32 %v451, 7
    %v453 = vsub.s32 7, %v452
    %v454 = vrot.slane %v388, %v453
    %v476 = vunpack.c.l.b16 %v115
    %v477 = vunpack.c.h.b16 %v115
    %v478 = vunpack.c.l.b16 %v116
    %v479 = vunpack.c.h.b16 %v116
    %v480 = vunpack.c.l.b16 %v117
    %v481 = vunpack.c.h.b16 %v117
    %v482 = vunpack.c.l.b16 %v118
    %v483 = vunpack.c.h.b16 %v118
    %v484 = vunpack.c.l.b16 %v119
    %v485 = vunpack.c.h.b16 %v119
    %v486 = vpack.c.b16 %v478, %v476
    %v487 = vpack.c.b16 %v479, %v477
    %v488 = vpack.c.b16 %v482, %v480
    %v489 = vpack.c.b16 %v483, %v481
    %v490 = vpack.c.b16 %v484, %v484
    %v491 = vpack.c.b16 %v485, %v485
    %v754 = vunpack.c.l.b16 %v131
    %v755 = vunpack.c.h.b16 %v131
    %v756 = vunpack.c.l.b16 %v132
    %v757 = vunpack.c.h.b16 %v132
    %v758 = vunpack.c.l.b16 %v133
    %v759 = vunpack.c.h.b16 %v133
    %v760 = vunpack.c.l.b16 %v134
    %v761 = vunpack.c.h.b16 %v134
    %v762 = vunpack.c.l.b16 %v135
    %v763 = vunpack.c.h.b16 %v135
    %v764 = vunpack.c.l.b16 %v136
    %v765 = vunpack.c.h.b16 %v136
    %v766 = vunpack.c.l.b16 %v137
    %v767 = vunpack.c.h.b16 %v137
    %v768 = vunpack.c.l.b16 %v138
    %v769 = vunpack.c.h.b16 %v138
    %v770 = vunpack.c.l.b16 %v139
    %v771 = vunpack.c.h.b16 %v139
    %v772 = vunpack.c.l.b16 %v140
    %v773 = vunpack.c.h.b16 %v140
    %v774 = vunpack.c.l.b16 %v141
    %v775 = vunpack.c.h.b16 %v141
    %v776 = vunpack.c.l.b16 %v142
    %v777 = vunpack.c.h.b16 %v142
    %v778 = vunpack.c.l.b16 %v143
    %v779 = vunpack.c.h.b16 %v143
    %v780 = vunpack.c.l.b16 %v144
    %v781 = vunpack.c.h.b16 %v144
    %v782 = vunpack.c.l.b16 %v145
    %v783 = vunpack.c.h.b16 %v145
    %v784 = vunpack.c.l.b16 %v146
    %v785 = vunpack.c.h.b16 %v146
    %v786 = vunpack.c.l.b16 %v147
    %v787 = vunpack.c.h.b16 %v147
    %v788 = vunpack.c.l.b16 %v148
    %v789 = vunpack.c.h.b16 %v148
    %v790 = vunpack.c.l.b16 %v149
    %v791 = vunpack.c.h.b16 %v149
    %v792 = vunpack.c.l.b16 %v150
    %v793 = vunpack.c.h.b16 %v150
    %v794 = vunpack.c.l.b16 %v151
    %v795 = vunpack.c.h.b16 %v151
    %v796 = vunpack.c.l.b16 %v152
    %v797 = vunpack.c.h.b16 %v152
    %v798 = vunpack.c.l.b16 %v153
    %v799 = vunpack.c.h.b16 %v153
    %v800 = vunpack.c.l.b16 %v154
    %v801 = vunpack.c.h.b16 %v154
    %v802 = vunpack.c.l.b16 %v155
    %v803 = vunpack.c.h.b16 %v155
    %v804 = vunpack.c.l.b16 %v156
    %v805 = vunpack.c.h.b16 %v156
    %v806 = vunpack.c.l.b16 %v157
    %v807 = vunpack.c.h.b16 %v157
    %v808 = vunpack.c.l.b16 %v158
    %v809 = vunpack.c.h.b16 %v158
    %v810 = vunpack.c.l.b16 %v159
    %v811 = vunpack.c.h.b16 %v159
    %v812 = vunpack.c.l.b16 %v160
    %v813 = vunpack.c.h.b16 %v160
    %v814 = vunpack.c.l.b16 %v161
    %v815 = vunpack.c.h.b16 %v161
    %v816 = vunpack.c.l.b16 %v162
    %v817 = vunpack.c.h.b16 %v162
    %v818 = vunpack.c.l.b16 %v163
    %v819 = vunpack.c.h.b16 %v163
    %v820 = vunpack.c.l.b16 %v164
    %v821 = vunpack.c.h.b16 %v164
    %v822 = vunpack.c.l.b16 %v165
    %v823 = vunpack.c.h.b16 %v165
    %v824 = vunpack.c.l.b16 %v166
    %v825 = vunpack.c.h.b16 %v166
    %v826 = vunpack.c.l.b16 %v167
    %v827 = vunpack.c.h.b16 %v167
    %v828 = vunpack.c.l.b16 %v168
    %v829 = vunpack.c.h.b16 %v168
    %v830 = vunpack.c.l.b16 %v169
    %v831 = vunpack.c.h.b16 %v169
    %v832 = vunpack.c.l.b16 %v170
    %v833 = vunpack.c.h.b16 %v170
    %v834 = vunpack.c.l.b16 %v171
    %v835 = vunpack.c.h.b16 %v171
    %v836 = vunpack.c.l.b16 %v172
    %v837 = vunpack.c.h.b16 %v172
    %v838 = vunpack.c.l.b16 %v173
    %v839 = vunpack.c.h.b16 %v173
    %v840 = vunpack.c.l.b16 %v174
    %v841 = vunpack.c.h.b16 %v174
    %v842 = vunpack.c.l.b16 %v175
    %v843 = vunpack.c.h.b16 %v175
    %v844 = vunpack.c.l.b16 %v176
    %v845 = vunpack.c.h.b16 %v176
    %v846 = vunpack.c.l.b16 %v177
    %v847 = vunpack.c.h.b16 %v177
    %v848 = vunpack.c.l.b16 %v178
    %v849 = vunpack.c.h.b16 %v178
    %v850 = vunpack.c.l.b16 %v179
    %v851 = vunpack.c.h.b16 %v179
    %v852 = vunpack.c.l.b16 %v180
    %v853 = vunpack.c.h.b16 %v180
    %v854 = vunpack.c.l.b16 %v181
    %v855 = vunpack.c.h.b16 %v181
    %v856 = vunpack.c.l.b16 %v182
    %v857 = vunpack.c.h.b16 %v182
    %v858 = vunpack.c.l.b16 %v183
    %v859 = vunpack.c.h.b16 %v183
    %v860 = vunpack.c.l.b16 %v184
    %v861 = vunpack.c.h.b16 %v184
    %v862 = vunpack.c.l.b16 %v185
    %v863 = vunpack.c.h.b16 %v185
    %v864 = vunpack.c.l.b16 %v186
    %v865 = vunpack.c.h.b16 %v186
    %v866 = vunpack.c.l.b16 %v187
    %v867 = vunpack.c.h.b16 %v187
    %v868 = vunpack.c.l.b16 %v188
    %v869 = vunpack.c.h.b16 %v188
    %v870 = vunpack.c.l.b16 %v189
    %v871 = vunpack.c.h.b16 %v189
    %v872 = vunpack.c.l.b16 %v190
    %v873 = vunpack.c.h.b16 %v190
    %v874 = vunpack.c.l.b16 %v191
    %v875 = vunpack.c.h.b16 %v191
    %v876 = vunpack.c.l.b16 %v192
    %v877 = vunpack.c.h.b16 %v192
    %v878 = vunpack.c.l.b16 %v193
    %v879 = vunpack.c.h.b16 %v193
    %v880 = vunpack.c.l.b16 %v194
    %v881 = vunpack.c.h.b16 %v194
    %v882 = vunpack.c.l.b16 %v195
    %v883 = vunpack.c.h.b16 %v195
    %v884 = vunpack.c.l.b16 %v196
    %v885 = vunpack.c.h.b16 %v196
    %v886 = vunpack.c.l.b16 %v197
    %v887 = vunpack.c.h.b16 %v197
    %v888 = vunpack.c.l.b16 %v198
    %v889 = vunpack.c.h.b16 %v198
    %v890 = vunpack.c.l.b16 %v199
    %v891 = vunpack.c.h.b16 %v199
    %v892 = vunpack.c.l.b16 %v200
    %v893 = vunpack.c.h.b16 %v200
    %v894 = vunpack.c.l.b16 %v201
    %v895 = vunpack.c.h.b16 %v201
    %v896 = vunpack.c.l.b16 %v202
    %v897 = vunpack.c.h.b16 %v202
    %v898 = vunpack.c.l.b16 %v203
    %v899 = vunpack.c.h.b16 %v203
    %v900 = vunpack.c.l.b16 %v204
    %v901 = vunpack.c.h.b16 %v204
    %v902 = vunpack.c.l.b16 %v205
    %v903 = vunpack.c.h.b16 %v205
    %v904 = vunpack.c.l.b16 %v206
    %v905 = vunpack.c.h.b16 %v206
    %v906 = vunpack.c.l.b16 %v207
    %v907 = vunpack.c.h.b16 %v207
    %v908 = vunpack.c.l.b16 %v208
    %v909 = vunpack.c.h.b16 %v208
    %v910 = vunpack.c.l.b16 %v209
    %v911 = vunpack.c.h.b16 %v209
    %v912 = vunpack.c.l.b16 %v210
    %v913 = vunpack.c.h.b16 %v210
    %v914 = vunpack.c.l.b16 %v211
    %v915 = vunpack.c.h.b16 %v211
    %v916 = vunpack.c.l.b16 %v212
    %v917 = vunpack.c.h.b16 %v212
    %v918 = vunpack.c.l.b16 %v213
    %v919 = vunpack.c.h.b16 %v213
    %v920 = vunpack.c.l.b16 %v214
    %v921 = vunpack.c.h.b16 %v214
    %v922 = vunpack.c.l.b16 %v215
    %v923 = vunpack.c.h.b16 %v215
    %v924 = vunpack.c.l.b16 %v216
    %v925 = vunpack.c.h.b16 %v216
    %v926 = vunpack.c.l.b16 %v217
    %v927 = vunpack.c.h.b16 %v217
    %v928 = vunpack.c.l.b16 %v218
    %v929 = vunpack.c.h.b16 %v218
    %v930 = vunpack.c.l.b16 %v219
    %v931 = vunpack.c.h.b16 %v219
    %v932 = vunpack.c.l.b16 %v220
    %v933 = vunpack.c.h.b16 %v220
    %v934 = vunpack.c.l.b16 %v221
    %v935 = vunpack.c.h.b16 %v221
    %v936 = vunpack.c.l.b16 %v222
    %v937 = vunpack.c.h.b16 %v222
    %v938 = vunpack.c.l.b16 %v223
    %v939 = vunpack.c.h.b16 %v223
    %v940 = vunpack.c.l.b16 %v224
    %v941 = vunpack.c.h.b16 %v224
    %v942 = vunpack.c.l.b16 %v225
    %v943 = vunpack.c.h.b16 %v225
    %v944 = vunpack.c.l.b16 %v226
    %v945 = vunpack.c.h.b16 %v226
    %v946 = vunpack.c.l.b16 %v227
    %v947 = vunpack.c.h.b16 %v227
    %v948 = vunpack.c.l.b16 %v228
    %v949 = vunpack.c.h.b16 %v228
    %v950 = vunpack.c.l.b16 %v229
    %v951 = vunpack.c.h.b16 %v229
    %v952 = vunpack.c.l.b16 %v230
    %v953 = vunpack.c.h.b16 %v230
    %v954 = vunpack.c.l.b16 %v231
    %v955 = vunpack.c.h.b16 %v231
    %v956 = vunpack.c.l.b16 %v232
    %v957 = vunpack.c.h.b16 %v232
    %v958 = vunpack.c.l.b16 %v233
    %v959 = vunpack.c.h.b16 %v233
    %v960 = vunpack.c.l.b16 %v234
    %v961 = vunpack.c.h.b16 %v234
    %v962 = vunpack.c.l.b16 %v235
    %v963 = vunpack.c.h.b16 %v235
    %v964 = vunpack.c.l.b16 %v236
    %v965 = vunpack.c.h.b16 %v236
    %v966 = vunpack.c.l.b16 %v237
    %v967 = vunpack.c.h.b16 %v237
    %v968 = vunpack.c.l.b16 %v238
    %v969 = vunpack.c.h.b16 %v238
    %v970 = vunpack.c.l.b16 %v239
    %v971 = vunpack.c.h.b16 %v239
    %v972 = vunpack.c.l.b16 %v240
    %v973 = vunpack.c.h.b16 %v240
    %v974 = vunpack.c.l.b16 %v241
    %v975 = vunpack.c.h.b16 %v241
    %v976 = vunpack.c.l.b16 %v242
    %v977 = vunpack.c.h.b16 %v242
    %v978 = vunpack.c.l.b16 %v243
    %v979 = vunpack.c.h.b16 %v243
    %v980 = vunpack.c.l.b16 %v244
    %v981 = vunpack.c.h.b16 %v244
    %v982 = vunpack.c.l.b16 %v245
    %v983 = vunpack.c.h.b16 %v245
    %v984 = vunpack.c.l.b16 %v246
    %v985 = vunpack.c.h.b16 %v246
    %v986 = vunpack.c.l.b16 %v247
    %v987 = vunpack.c.h.b16 %v247
    %v988 = vunpack.c.l.b16 %v248
    %v989 = vunpack.c.h.b16 %v248
    %v990 = vunpack.c.l.b16 %v249
    %v991 = vunpack.c.h.b16 %v249
    %v992 = vunpack.c.l.b16 %v250
    %v993 = vunpack.c.h.b16 %v250
    %v994 = vunpack.c.l.b16 %v251
    %v995 = vunpack.c.h.b16 %v251
    %v996 = vunpack.c.l.b16 %v252
    %v997 = vunpack.c.h.b16 %v252
    %v998 = vunpack.c.l.b16 %v253
    %v999 = vunpack.c.h.b16 %v253
    %v1000 = vunpack.c.l.b16 %v254
    %v1001 = vunpack.c.h.b16 %v254
    %v1002 = vunpack.c.l.b16 %v255
    %v1003 = vunpack.c.h.b16 %v255
    %v1004 = vunpack.c.l.b16 %v256
    %v1005 = vunpack.c.h.b16 %v256
    %v1006 = vunpack.c.l.b16 %v257
    %v1007 = vunpack.c.h.b16 %v257
    %v1008 = vunpack.c.l.b16 %v258
    %v1009 = vunpack.c.h.b16 %v258
    %v1010 = vunpack.c.l.b16 %v259
    %v1011 = vunpack.c.h.b16 %v259
    %v1012 = vunpack.c.l.b16 %v260
    %v1013 = vunpack.c.h.b16 %v260
    %v1014 = vunpack.c.l.b16 %v261
    %v1015 = vunpack.c.h.b16 %v261
    %v1016 = vunpack.c.l.b16 %v262
    %v1017 = vunpack.c.h.b16 %v262
    %v1018 = vunpack.c.l.b16 %v263
    %v1019 = vunpack.c.h.b16 %v263
    %v1020 = vunpack.c.l.b16 %v264
    %v1021 = vunpack.c.h.b16 %v264
    %v1022 = vunpack.c.l.b16 %v265
    %v1023 = vunpack.c.h.b16 %v265
    %v1024 = vunpack.c.l.b16 %v266
    %v1025 = vunpack.c.h.b16 %v266
    %v1026 = vunpack.c.l.b16 %v267
    %v1027 = vunpack.c.h.b16 %v267
    %v1028 = vunpack.c.l.b16 %v268
    %v1029 = vunpack.c.h.b16 %v268
    %v1030 = vunpack.c.l.b16 %v269
    %v1031 = vunpack.c.h.b16 %v269
    %v1032 = vunpack.c.l.b16 %v270
    %v1033 = vunpack.c.h.b16 %v270
    %v1034 = vunpack.c.l.b16 %v271
    %v1035 = vunpack.c.h.b16 %v271
    %v1036 = vunpack.c.l.b16 %v272
    %v1037 = vunpack.c.h.b16 %v272
    %v1038 = vunpack.c.l.b16 %v273
    %v1039 = vunpack.c.h.b16 %v273
    %v1040 = vunpack.c.l.b16 %v274
    %v1041 = vunpack.c.h.b16 %v274
    %v1042 = vunpack.c.l.b16 %v275
    %v1043 = vunpack.c.h.b16 %v275
    %v1044 = vunpack.c.l.b16 %v276
    %v1045 = vunpack.c.h.b16 %v276
    %v1046 = vunpack.c.l.b16 %v277
    %v1047 = vunpack.c.h.b16 %v277
    %v1048 = vunpack.c.l.b16 %v278
    %v1049 = vunpack.c.h.b16 %v278
    %v1050 = vunpack.c.l.b16 %v279
    %v1051 = vunpack.c.h.b16 %v279
    %v1052 = vunpack.c.l.b16 %v280
    %v1053 = vunpack.c.h.b16 %v280
    %v1054 = vunpack.c.l.b16 %v281
    %v1055 = vunpack.c.h.b16 %v281
    %v1056 = vunpack.c.l.b16 %v282
    %v1057 = vunpack.c.h.b16 %v282
    %v1058 = vunpack.c.l.b16 %v283
    %v1059 = vunpack.c.h.b16 %v283
    %v1060 = vunpack.c.l.b16 %v284
    %v1061 = vunpack.c.h.b16 %v284
    %v1062 = vunpack.c.l.b16 %v285
    %v1063 = vunpack.c.h.b16 %v285
    %v1064 = vunpack.c.l.b16 %v286
    %v1065 = vunpack.c.h.b16 %v286
    %v1066 = vunpack.c.l.b16 %v287
    %v1067 = vunpack.c.h.b16 %v287
    %v1068 = vunpack.c.l.b16 %v288
    %v1069 = vunpack.c.h.b16 %v288
    %v1070 = vunpack.c.l.b16 %v289
    %v1071 = vunpack.c.h.b16 %v289
    %v1072 = vunpack.c.l.b16 %v290
    %v1073 = vunpack.c.h.b16 %v290
    %v1074 = vunpack.c.l.b16 %v291
    %v1075 = vunpack.c.h.b16 %v291
    %v1076 = vunpack.c.l.b16 %v292
    %v1077 = vunpack.c.h.b16 %v292
    %v1078 = vunpack.c.l.b16 %v293
    %v1079 = vunpack.c.h.b16 %v293
    %v1080 = vunpack.c.l.b16 %v294
    %v1081 = vunpack.c.h.b16 %v294
    %v1082 = vunpack.c.l.b16 %v295
    %v1083 = vunpack.c.h.b16 %v295
    %v1084 = vunpack.c.l.b16 %v296
    %v1085 = vunpack.c.h.b16 %v296
    %v1086 = vunpack.c.l.b16 %v297
    %v1087 = vunpack.c.h.b16 %v297
    %v1088 = vunpack.c.l.b16 %v298
    %v1089 = vunpack.c.h.b16 %v298
    %v1090 = vunpack.c.l.b16 %v299
    %v1091 = vunpack.c.h.b16 %v299
    %v1092 = vunpack.c.l.b16 %v300
    %v1093 = vunpack.c.h.b16 %v300
    %v1094 = vunpack.c.l.b16 %v301
    %v1095 = vunpack.c.h.b16 %v301
    %v1096 = vunpack.c.l.b16 %v302
    %v1097 = vunpack.c.h.b16 %v302
    %v1098 = vunpack.c.l.b16 %v303
    %v1099 = vunpack.c.h.b16 %v303
    %v1100 = vunpack.c.l.b16 %v304
    %v1101 = vunpack.c.h.b16 %v304
    %v1102 = vunpack.c.l.b16 %v305
    %v1103 = vunpack.c.h.b16 %v305
    %v1104 = vunpack.c.l.b16 %v306
    %v1105 = vunpack.c.h.b16 %v306
    %v1106 = vunpack.c.l.b16 %v307
    %v1107 = vunpack.c.h.b16 %v307
    %v1108 = vunpack.c.l.b16 %v308
    %v1109 = vunpack.c.h.b16 %v308
    %v1110 = vunpack.c.l.b16 %v309
    %v1111 = vunpack.c.h.b16 %v309
    %v1112 = vunpack.c.l.b16 %v310
    %v1113 = vunpack.c.h.b16 %v310
    %v1114 = vunpack.c.l.b16 %v311
    %v1115 = vunpack.c.h.b16 %v311
    %v1116 = vunpack.c.l.b16 %v312
    %v1117 = vunpack.c.h.b16 %v312
    %v1118 = vunpack.c.l.b16 %v313
    %v1119 = vunpack.c.h.b16 %v313
    %v1120 = vunpack.c.l.b16 %v314
    %v1121 = vunpack.c.h.b16 %v314
    %v1122 = vunpack.c.l.b16 %v315
    %v1123 = vunpack.c.h.b16 %v315
    %v1124 = vunpack.c.l.b16 %v316
    %v1125 = vunpack.c.h.b16 %v316
    %v1126 = vunpack.c.l.b16 %v317
    %v1127 = vunpack.c.h.b16 %v317
    %v1128 = vunpack.c.l.b16 %v318
    %v1129 = vunpack.c.h.b16 %v318
    %v1130 = vunpack.c.l.b16 %v319
    %v1131 = vunpack.c.h.b16 %v319
    %v1132 = vunpack.c.l.b16 %v320
    %v1133 = vunpack.c.h.b16 %v320
    %v1134 = vunpack.c.l.b16 %v321
    %v1135 = vunpack.c.h.b16 %v321
    %v1136 = vunpack.c.l.b16 %v322
    %v1137 = vunpack.c.h.b16 %v322
    %v1138 = vunpack.c.l.b16 %v323
    %v1139 = vunpack.c.h.b16 %v323
    %v1140 = vunpack.c.l.b16 %v324
    %v1141 = vunpack.c.h.b16 %v324
    %v1142 = vunpack.c.l.b16 %v325
    %v1143 = vunpack.c.h.b16 %v325
    %v1144 = vunpack.c.l.b16 %v326
    %v1145 = vunpack.c.h.b16 %v326
    %v1146 = vunpack.c.l.b16 %v327
    %v1147 = vunpack.c.h.b16 %v327
    %v1148 = vunpack.c.l.b16 %v328
    %v1149 = vunpack.c.h.b16 %v328
    %v1150 = vunpack.c.l.b16 %v329
    %v1151 = vunpack.c.h.b16 %v329
    %v1152 = vunpack.c.l.b16 %v330
    %v1153 = vunpack.c.h.b16 %v330
    %v1154 = vunpack.c.l.b16 %v331
    %v1155 = vunpack.c.h.b16 %v331
    %v1156 = vunpack.c.l.b16 %v332
    %v1157 = vunpack.c.h.b16 %v332
    %v1158 = vunpack.c.l.b16 %v333
    %v1159 = vunpack.c.h.b16 %v333
    %v1160 = vunpack.c.l.b16 %v334
    %v1161 = vunpack.c.h.b16 %v334
    %v1162 = vunpack.c.l.b16 %v335
    %v1163 = vunpack.c.h.b16 %v335
    %v1164 = vunpack.c.l.b16 %v336
    %v1165 = vunpack.c.h.b16 %v336
    %v1166 = vunpack.c.l.b16 %v337
    %v1167 = vunpack.c.h.b16 %v337
    %v1168 = vunpack.c.l.b16 %v338
    %v1169 = vunpack.c.h.b16 %v338
    %v1170 = vunpack.c.l.b16 %v339
    %v1171 = vunpack.c.h.b16 %v339
    %v1172 = vunpack.c.l.b16 %v340
    %v1173 = vunpack.c.h.b16 %v340
    %v1174 = vunpack.c.l.b16 %v341
    %v1175 = vunpack.c.h.b16 %v341
    %v1176 = vunpack.c.l.b16 %v342
    %v1177 = vunpack.c.h.b16 %v342
    %v1178 = vunpack.c.l.b16 %v343
    %v1179 = vunpack.c.h.b16 %v343
    %v1180 = vunpack.c.l.b16 %v344
    %v1181 = vunpack.c.h.b16 %v344
    %v1182 = vunpack.c.l.b16 %v345
    %v1183 = vunpack.c.h.b16 %v345
    %v1184 = vunpack.c.l.b16 %v346
    %v1185 = vunpack.c.h.b16 %v346
    %v1186 = vunpack.c.l.b16 %v347
    %v1187 = vunpack.c.h.b16 %v347
    %v1188 = vunpack.c.l.b16 %v348
    %v1189 = vunpack.c.h.b16 %v348
    %v1190 = vunpack.c.l.b16 %v349
    %v1191 = vunpack.c.h.b16 %v349
    %v1192 = vunpack.c.l.b16 %v350
    %v1193 = vunpack.c.h.b16 %v350
    %v1194 = vunpack.c.l.b16 %v351
    %v1195 = vunpack.c.h.b16 %v351
    %v1196 = vunpack.c.l.b16 %v352
    %v1197 = vunpack.c.h.b16 %v352
    %v1198 = vunpack.c.l.b16 %v353
    %v1199 = vunpack.c.h.b16 %v353
    %v1200 = vunpack.c.l.b16 %v354
    %v1201 = vunpack.c.h.b16 %v354
    %v1202 = vunpack.c.l.b16 %v355
    %v1203 = vunpack.c.h.b16 %v355
    %v1204 = vunpack.c.l.b16 %v356
    %v1205 = vunpack.c.h.b16 %v356
    %v1206 = vunpack.c.l.b16 %v357
    %v1207 = vunpack.c.h.b16 %v357
    %v1208 = vunpack.c.l.b16 %v358
    %v1209 = vunpack.c.h.b16 %v358
    %v1210 = vunpack.c.l.b16 %v359
    %v1211 = vunpack.c.h.b16 %v359
    %v1212 = vunpack.c.l.b16 %v360
    %v1213 = vunpack.c.h.b16 %v360
    %v1214 = vunpack.c.l.b16 %v361
    %v1215 = vunpack.c.h.b16 %v361
    %v1216 = vunpack.c.l.b16 %v362
    %v1217 = vunpack.c.h.b16 %v362
    %v1218 = vunpack.c.l.b16 %v363
    %v1219 = vunpack.c.h.b16 %v363
    %v1220 = vunpack.c.l.b16 %v364
    %v1221 = vunpack.c.h.b16 %v364
    %v1222 = vunpack.c.l.b16 %v365
    %v1223 = vunpack.c.h.b16 %v365
    %v1224 = vunpack.c.l.b16 %v366
    %v1225 = vunpack.c.h.b16 %v366
    %v1226 = vunpack.c.l.b16 %v367
    %v1227 = vunpack.c.h.b16 %v367
    %v1228 = vunpack.c.l.b16 %v368
    %v1229 = vunpack.c.h.b16 %v368
    %v1230 = vunpack.c.l.b16 %v369
    %v1231 = vunpack.c.h.b16 %v369
    %v1232 = vunpack.c.l.b16 %v370
    %v1233 = vunpack.c.h.b16 %v370
    %v1234 = vunpack.c.l.b16 %v371
    %v1235 = vunpack.c.h.b16 %v371
    %v1236 = vunpack.c.l.b16 %v372
    %v1237 = vunpack.c.h.b16 %v372
    %v1238 = vunpack.c.l.b16 %v373
    %v1239 = vunpack.c.h.b16 %v373
    %v1240 = vunpack.c.l.b16 %v374
    %v1241 = vunpack.c.h.b16 %v374
    %v1242 = vunpack.c.l.b16 %v375
    %v1243 = vunpack.c.h.b16 %v375
    %v1244 = vunpack.c.l.b16 %v376
    %v1245 = vunpack.c.h.b16 %v376
    %v1246 = vunpack.c.l.b16 %v377
    %v1247 = vunpack.c.h.b16 %v377
    %v1248 = vunpack.c.l.b16 %v378
    %v1249 = vunpack.c.h.b16 %v378
    %v1250 = vunpack.c.l.b16 %v379
    %v1251 = vunpack.c.h.b16 %v379
    %v1252 = vunpack.c.l.b16 %v380
    %v1253 = vunpack.c.h.b16 %v380
    %v1254 = vunpack.c.l.b16 %v381
    %v1255 = vunpack.c.h.b16 %v381
    %v1256 = vunpack.c.l.b16 %v382
    %v1257 = vunpack.c.h.b16 %v382
    %v1258 = vunpack.c.l.b16 %v383
    %v1259 = vunpack.c.h.b16 %v383
    %v1260 = vunpack.c.l.b16 %v384
    %v1261 = vunpack.c.h.b16 %v384
    %v1262 = vunpack.c.l.b16 %v385
    %v1263 = vunpack.c.h.b16 %v385
    %v1264 = vunpack.c.l.b16 %v386
    %v1265 = vunpack.c.h.b16 %v386
    %v1266 = vpack.c.b16 %v770, %v754
    %v1267 = vpack.c.b16 %v771, %v755
    %v1268 = vpack.c.b16 %v772, %v756
    %v1269 = vpack.c.b16 %v773, %v757
    %v1270 = vpack.c.b16 %v774, %v758
    %v1271 = vpack.c.b16 %v775, %v759
    %v1272 = vpack.c.b16 %v776, %v760
    %v1273 = vpack.c.b16 %v777, %v761
    %v1274 = vpack.c.b16 %v778, %v762
    %v1275 = vpack.c.b16 %v779, %v763
    %v1276 = vpack.c.b16 %v780, %v764
    %v1277 = vpack.c.b16 %v781, %v765
    %v1278 = vpack.c.b16 %v782, %v766
    %v1279 = vpack.c.b16 %v783, %v767
    %v1280 = vpack.c.b16 %v784, %v768
    %v1281 = vpack.c.b16 %v785, %v769
    %v1282 = vpack.c.b16 %v802, %v786
    %v1283 = vpack.c.b16 %v803, %v787
    %v1284 = vpack.c.b16 %v804, %v788
    %v1285 = vpack.c.b16 %v805, %v789
    %v1286 = vpack.c.b16 %v806, %v790
    %v1287 = vpack.c.b16 %v807, %v791
    %v1288 = vpack.c.b16 %v808, %v792
    %v1289 = vpack.c.b16 %v809, %v793
    %v1290 = vpack.c.b16 %v810, %v794
    %v1291 = vpack.c.b16 %v811, %v795
    %v1292 = vpack.c.b16 %v812, %v796
    %v1293 = vpack.c.b16 %v813, %v797
    %v1294 = vpack.c.b16 %v814, %v798
    %v1295 = vpack.c.b16 %v815, %v799
    %v1296 = vpack.c.b16 %v816, %v800
    %v1297 = vpack.c.b16 %v817, %v801
    %v1298 = vpack.c.b16 %v834, %v818
    %v1299 = vpack.c.b16 %v835, %v819
    %v1300 = vpack.c.b16 %v836, %v820
    %v1301 = vpack.c.b16 %v837, %v821
    %v1302 = vpack.c.b16 %v838, %v822
    %v1303 = vpack.c.b16 %v839, %v823
    %v1304 = vpack.c.b16 %v840, %v824
    %v1305 = vpack.c.b16 %v841, %v825
    %v1306 = vpack.c.b16 %v842, %v826
    %v1307 = vpack.c.b16 %v843, %v827
    %v1308 = vpack.c.b16 %v844, %v828
    %v1309 = vpack.c.b16 %v845, %v829
    %v1310 = vpack.c.b16 %v846, %v830
    %v1311 = vpack.c.b16 %v847, %v831
    %v1312 = vpack.c.b16 %v848, %v832
    %v1313 = vpack.c.b16 %v849, %v833
    %v1314 = vpack.c.b16 %v866, %v850
    %v1315 = vpack.c.b16 %v867, %v851
    %v1316 = vpack.c.b16 %v868, %v852
    %v1317 = vpack.c.b16 %v869, %v853
    %v1318 = vpack.c.b16 %v870, %v854
    %v1319 = vpack.c.b16 %v871, %v855
    %v1320 = vpack.c.b16 %v872, %v856
    %v1321 = vpack.c.b16 %v873, %v857
    %v1322 = vpack.c.b16 %v874, %v858
    %v1323 = vpack.c.b16 %v875, %v859
    %v1324 = vpack.c.b16 %v876, %v860
    %v1325 = vpack.c.b16 %v877, %v861
    %v1326 = vpack.c.b16 %v878, %v862
    %v1327 = vpack.c.b16 %v879, %v863
    %v1328 = vpack.c.b16 %v880, %v864
    %v1329 = vpack.c.b16 %v881, %v865
    %v1330 = vpack.c.b16 %v898, %v882
    %v1331 = vpack.c.b16 %v899, %v883
    %v1332 = vpack.c.b16 %v900, %v884
    %v1333 = vpack.c.b16 %v901, %v885
    %v1334 = vpack.c.b16 %v902, %v886
    %v1335 = vpack.c.b16 %v903, %v887
    %v1336 = vpack.c.b16 %v904, %v888
    %v1337 = vpack.c.b16 %v905, %v889
    %v1338 = vpack.c.b16 %v906, %v890
    %v1339 = vpack.c.b16 %v907, %v891
    %v1340 = vpack.c.b16 %v908, %v892
    %v1341 = vpack.c.b16 %v909, %v893
    %v1342 = vpack.c.b16 %v910, %v894
    %v1343 = vpack.c.b16 %v911, %v895
    %v1344 = vpack.c.b16 %v912, %v896
    %v1345 = vpack.c.b16 %v913, %v897
    %v1346 = vpack.c.b16 %v930, %v914
    %v1347 = vpack.c.b16 %v931, %v915
    %v1348 = vpack.c.b16 %v932, %v916
    %v1349 = vpack.c.b16 %v933, %v917
    %v1350 = vpack.c.b16 %v934, %v918
    %v1351 = vpack.c.b16 %v935, %v919
    %v1352 = vpack.c.b16 %v936, %v920
    %v1353 = vpack.c.b16 %v937, %v921
    %v1354 = vpack.c.b16 %v938, %v922
    %v1355 = vpack.c.b16 %v939, %v923
    %v1356 = vpack.c.b16 %v940, %v924
    %v1357 = vpack.c.b16 %v941, %v925
    %v1358 = vpack.c.b16 %v942, %v926
    %v1359 = vpack.c.b16 %v943, %v927
    %v1360 = vpack.c.b16 %v944, %v928
    %v1361 = vpack.c.b16 %v945, %v929
    %v1362 = vpack.c.b16 %v962, %v946
    %v1363 = vpack.c.b16 %v963, %v947
    %v1364 = vpack.c.b16 %v964, %v948
    %v1365 = vpack.c.b16 %v965, %v949
    %v1366 = vpack.c.b16 %v966, %v950
    %v1367 = vpack.c.b16 %v967, %v951
    %v1368 = vpack.c.b16 %v968, %v952
    %v1369 = vpack.c.b16 %v969, %v953
    %v1370 = vpack.c.b16 %v970, %v954
    %v1371 = vpack.c.b16 %v971, %v955
    %v1372 = vpack.c.b16 %v972, %v956
    %v1373 = vpack.c.b16 %v973, %v957
    %v1374 = vpack.c.b16 %v974, %v958
    %v1375 = vpack.c.b16 %v975, %v959
    %v1376 = vpack.c.b16 %v976, %v960
    %v1377 = vpack.c.b16 %v977, %v961
    %v1378 = vpack.c.b16 %v994, %v978
    %v1379 = vpack.c.b16 %v995, %v979
    %v1380 = vpack.c.b16 %v996, %v980
    %v1381 = vpack.c.b16 %v997, %v981
    %v1382 = vpack.c.b16 %v998, %v982
    %v1383 = vpack.c.b16 %v999, %v983
    %v1384 = vpack.c.b16 %v1000, %v984
    %v1385 = vpack.c.b16 %v1001, %v985
    %v1386 = vpack.c.b16 %v1002, %v986
    %v1387 = vpack.c.b16 %v1003, %v987
    %v1388 = vpack.c.b16 %v1004, %v988
    %v1389 = vpack.c.b16 %v1005, %v989
    %v1390 = vpack.c.b16 %v1006, %v990
    %v1391 = vpack.c.b16 %v1007, %v991
    %v1392 = vpack.c.b16 %v1008, %v992
    %v1393 = vpack.c.b16 %v1009, %v993
    %v1394 = vpack.c.b16 %v1026, %v1010
    %v1395 = vpack.c.b16 %v1027, %v1011
    %v1396 = vpack.c.b16 %v1028, %v1012
    %v1397 = vpack.c.b16 %v1029, %v1013
    %v1398 = vpack.c.b16 %v1030, %v1014
    %v1399 = vpack.c.b16 %v1031, %v1015
    %v1400 = vpack.c.b16 %v1032, %v1016
    %v1401 = vpack.c.b16 %v1033, %v1017
    %v1402 = vpack.c.b16 %v1034, %v1018
    %v1403 = vpack.c.b16 %v1035, %v1019
    %v1404 = vpack.c.b16 %v1036, %v1020
    %v1405 = vpack.c.b16 %v1037, %v1021
    %v1406 = vpack.c.b16 %v1038, %v1022
    %v1407 = vpack.c.b16 %v1039, %v1023
    %v1408 = vpack.c.b16 %v1040, %v1024
    %v1409 = vpack.c.b16 %v1041, %v1025
    %v1410 = vpack.c.b16 %v1058, %v1042
    %v1411 = vpack.c.b16 %v1059, %v1043
    %v1412 = vpack.c.b16 %v1060, %v1044
    %v1413 = vpack.c.b16 %v1061, %v1045
    %v1414 = vpack.c.b16 %v1062, %v1046
    %v1415 = vpack.c.b16 %v1063, %v1047
    %v1416 = vpack.c.b16 %v1064, %v1048
    %v1417 = vpack.c.b16 %v1065, %v1049
    %v1418 = vpack.c.b16 %v1066, %v1050
    %v1419 = vpack.c.b16 %v1067, %v1051
    %v1420 = vpack.c.b16 %v1068, %v1052
    %v1421 = vpack.c.b16 %v1069, %v1053
    %v1422 = vpack.c.b16 %v1070, %v1054
    %v1423 = vpack.c.b16 %v1071, %v1055
    %v1424 = vpack.c.b16 %v1072, %v1056
    %v1425 = vpack.c.b16 %v1073, %v1057
    %v1426 = vpack.c.b16 %v1090, %v1074
    %v1427 = vpack.c.b16 %v1091, %v1075
    %v1428 = vpack.c.b16 %v1092, %v1076
    %v1429 = vpack.c.b16 %v1093, %v1077
    %v1430 = vpack.c.b16 %v1094, %v1078
    %v1431 = vpack.c.b16 %v1095, %v1079
    %v1432 = vpack.c.b16 %v1096, %v1080
    %v1433 = vpack.c.b16 %v1097, %v1081
    %v1434 = vpack.c.b16 %v1098, %v1082
    %v1435 = vpack.c.b16 %v1099, %v1083
    %v1436 = vpack.c.b16 %v1100, %v1084
    %v1437 = vpack.c.b16 %v1101, %v1085
    %v1438 = vpack.c.b16 %v1102, %v1086
    %v1439 = vpack.c.b16 %v1103, %v1087
    %v1440 = vpack.c.b16 %v1104, %v1088
    %v1441 = vpack.c.b16 %v1105, %v1089
    %v1442 = vpack.c.b16 %v1122, %v1106
    %v1443 = vpack.c.b16 %v1123, %v1107
    %v1444 = vpack.c.b16 %v1124, %v1108
    %v1445 = vpack.c.b16 %v1125, %v1109
    %v1446 = vpack.c.b16 %v1126, %v1110
    %v1447 = vpack.c.b16 %v1127, %v1111
    %v1448 = vpack.c.b16 %v1128, %v1112
    %v1449 = vpack.c.b16 %v1129, %v1113
    %v1450 = vpack.c.b16 %v1130, %v1114
    %v1451 = vpack.c.b16 %v1131, %v1115
    %v1452 = vpack.c.b16 %v1132, %v1116
    %v1453 = vpack.c.b16 %v1133, %v1117
    %v1454 = vpack.c.b16 %v1134, %v1118
    %v1455 = vpack.c.b16 %v1135, %v1119
    %v1456 = vpack.c.b16 %v1136, %v1120
    %v1457 = vpack.c.b16 %v1137, %v1121
    %v1458 = vpack.c.b16 %v1154, %v1138
    %v1459 = vpack.c.b16 %v1155, %v1139
    %v1460 = vpack.c.b16 %v1156, %v1140
    %v1461 = vpack.c.b16 %v1157, %v1141
    %v1462 = vpack.c.b16 %v1158, %v1142
    %v1463 = vpack.c.b16 %v1159, %v1143
    %v1464 = vpack.c.b16 %v1160, %v1144
    %v1465 = vpack.c.b16 %v1161, %v1145
    %v1466 = vpack.c.b16 %v1162, %v1146
    %v1467 = vpack.c.b16 %v1163, %v1147
    %v1468 = vpack.c.b16 %v1164, %v1148
    %v1469 = vpack.c.b16 %v1165, %v1149
    %v1470 = vpack.c.b16 %v1166, %v1150
    %v1471 = vpack.c.b16 %v1167, %v1151
    %v1472 = vpack.c.b16 %v1168, %v1152
    %v1473 = vpack.c.b16 %v1169, %v1153
    %v1474 = vpack.c.b16 %v1186, %v1170
    %v1475 = vpack.c.b16 %v1187, %v1171
    %v1476 = vpack.c.b16 %v1188, %v1172
    %v1477 = vpack.c.b16 %v1189, %v1173
    %v1478 = vpack.c.b16 %v1190, %v1174
    %v1479 = vpack.c.b16 %v1191, %v1175
    %v1480 = vpack.c.b16 %v1192, %v1176
    %v1481 = vpack.c.b16 %v1193, %v1177
    %v1482 = vpack.c.b16 %v1194, %v1178
    %v1483 = vpack.c.b16 %v1195, %v1179
    %v1484 = vpack.c.b16 %v1196, %v1180
    %v1485 = vpack.c.b16 %v1197, %v1181
    %v1486 = vpack.c.b16 %v1198, %v1182
    %v1487 = vpack.c.b16 %v1199, %v1183
    %v1488 = vpack.c.b16 %v1200, %v1184
    %v1489 = vpack.c.b16 %v1201, %v1185
    %v1490 = vpack.c.b16 %v1218, %v1202
    %v1491 = vpack.c.b16 %v1219, %v1203
    %v1492 = vpack.c.b16 %v1220, %v1204
    %v1493 = vpack.c.b16 %v1221, %v1205
    %v1494 = vpack.c.b16 %v1222, %v1206
    %v1495 = vpack.c.b16 %v1223, %v1207
    %v1496 = vpack.c.b16 %v1224, %v1208
    %v1497 = vpack.c.b16 %v1225, %v1209
    %v1498 = vpack.c.b16 %v1226, %v1210
    %v1499 = vpack.c.b16 %v1227, %v1211
    %v1500 = vpack.c.b16 %v1228, %v1212
    %v1501 = vpack.c.b16 %v1229, %v1213
    %v1502 = vpack.c.b16 %v1230, %v1214
    %v1503 = vpack.c.b16 %v1231, %v1215
    %v1504 = vpack.c.b16 %v1232, %v1216
    %v1505 = vpack.c.b16 %v1233, %v1217
    %v1506 = vpack.c.b16 %v1250, %v1234
    %v1507 = vpack.c.b16 %v1251, %v1235
    %v1508 = vpack.c.b16 %v1252, %v1236
    %v1509 = vpack.c.b16 %v1253, %v1237
    %v1510 = vpack.c.b16 %v1254, %v1238
    %v1511 = vpack.c.b16 %v1255, %v1239
    %v1512 = vpack.c.b16 %v1256, %v1240
    %v1513 = vpack.c.b16 %v1257, %v1241
    %v1514 = vpack.c.b16 %v1258, %v1242
    %v1515 = vpack.c.b16 %v1259, %v1243
    %v1516 = vpack.c.b16 %v1260, %v1244
    %v1517 = vpack.c.b16 %v1261, %v1245
    %v1518 = vpack.c.b16 %v1262, %v1246
    %v1519 = vpack.c.b16 %v1263, %v1247
    %v1520 = vpack.c.b16 %v1264, %v1248
    %v1521 = vpack.c.b16 %v1265, %v1249
    %1778 = vmatprep.subr.bf16.mxu0 %v1267
    %1779 = vmatpush1.bf16.msra.mxu0 %v1266
    %1780 = vmatprep.subr.bf16.mxu0 %v1283
    %1781 = vmatpush1.bf16.msra.mxu0 %v1282
    %1782 = vmatprep.subr.bf16.mxu0 %v1299
    %1783 = vmatpush1.bf16.msra.mxu0 %v1298
    %1784 = vmatprep.subr.bf16.mxu0 %v1315
    %1785 = vmatpush1.bf16.msra.mxu0 %v1314
    %1786 = vmatprep.subr.bf16.mxu0 %v1331
    %1787 = vmatpush1.bf16.msra.mxu0 %v1330
    %1788 = vmatprep.subr.bf16.mxu0 %v1347
    %1789 = vmatpush1.bf16.msra.mxu0 %v1346
    %1790 = vmatprep.subr.bf16.mxu0 %v1363
    %1791 = vmatpush1.bf16.msra.mxu0 %v1362
    %1792 = vmatprep.subr.bf16.mxu0 %v1379
    %1793 = vmatpush1.bf16.msra.mxu0 %v1378
    %1794 = vmatprep.subr.bf16.mxu0 %v1395
    %1795 = vmatpush1.bf16.msra.mxu0 %v1394
    %1796 = vmatprep.subr.bf16.mxu0 %v1411
    %1797 = vmatpush1.bf16.msra.mxu0 %v1410
    %1798 = vmatprep.subr.bf16.mxu0 %v1427
    %1799 = vmatpush1.bf16.msra.mxu0 %v1426
    %1800 = vmatprep.subr.bf16.mxu0 %v1443
    %1801 = vmatpush1.bf16.msra.mxu0 %v1442
    %1802 = vmatprep.subr.bf16.mxu0 %v1459
    %1803 = vmatpush1.bf16.msra.mxu0 %v1458
    %1804 = vmatprep.subr.bf16.mxu0 %v1475
    %1805 = vmatpush1.bf16.msra.mxu0 %v1474
    %1806 = vmatprep.subr.bf16.mxu0 %v1491
    %1807 = vmatpush1.bf16.msra.mxu0 %v1490
    %1808 = vmatprep.subr.bf16.mxu0 %v1507
    %1809 = vmatpush1.bf16.msra.mxu0 %v1506
    %1810 = vmatprep.mubr.bf16.mxu0 %v487
    %1811 = vmatmul.mubr.bf16.gmra.mrb[0].mxu0 %v486
    %v1812 = vpop.f32.mrb[0].mxu0
    %v1813 = vadd.f32 %v394, %v1812
    %v1814 = vpop.f32.mrb[0].mxu0
    %v1815 = vadd.f32 %v398, %v1814
    %v1816 = vpop.f32.mrb[0].mxu0
    %v1817 = vadd.f32 %v394, %v1816
    %v1818 = vpop.f32.mrb[0].mxu0
    %v1819 = vadd.f32 %v398, %v1818
    %1820 = vmatprep.mubr.bf16.mxu0 %v489
    %1821 = vmatmul.mubr.bf16.gmra.mrb[0].mxu0 %v488
    %v1822 = vpop.f32.mrb[0].mxu0
    %v1823 = vadd.f32 %v394, %v1822
    %v1824 = vpop.f32.mrb[0].mxu0
    %v1825 = vadd.f32 %v398, %v1824
    %v1826 = vpop.f32.mrb[0].mxu0
    %v1827 = vadd.f32 %v394, %v1826
    %v1828 = vpop.f32.mrb[0].mxu0
    %v1829 = vadd.f32 %v398, %v1828
    %1830 = vmatprep.mubr.bf16.mxu0 %v491
    %1831 = vmatmul.mubr.bf16.gmra.mrb[0].mxu0 %v490
    %v1832 = vpop.f32.mrb[0].mxu0
    %v1833 = vadd.f32 %v394, %v1832
    %v1834 = vpop.f32.mrb[0].mxu0
    %v1835 = vadd.f32 %v398, %v1834
    %v1836 = vpop.f32.mrb[0].mxu0
    %v1837 = vpop.f32.mrb[0].mxu0
    %1838 = vdwg.mxu0
    %1839 = vmatprep.subr.bf16.mxu0 %v1269
    %1840 = vmatpush1.bf16.msra.mxu0 %v1268
    %1841 = vmatprep.subr.bf16.mxu0 %v1285
    %1842 = vmatpush1.bf16.msra.mxu0 %v1284
    %1843 = vmatprep.subr.bf16.mxu0 %v1301
    %1844 = vmatpush1.bf16.msra.mxu0 %v1300
    %1845 = vmatprep.subr.bf16.mxu0 %v1317
    %1846 = vmatpush1.bf16.msra.mxu0 %v1316
    %1847 = vmatprep.subr.bf16.mxu0 %v1333
    %1848 = vmatpush1.bf16.msra.mxu0 %v1332
    %1849 = vmatprep.subr.bf16.mxu0 %v1349
    %1850 = vmatpush1.bf16.msra.mxu0 %v1348
    %1851 = vmatprep.subr.bf16.mxu0 %v1365
    %1852 = vmatpush1.bf16.msra.mxu0 %v1364
    %1853 = vmatprep.subr.bf16.mxu0 %v1381
    %1854 = vmatpush1.bf16.msra.mxu0 %v1380
    %1855 = vmatprep.subr.bf16.mxu0 %v1397
    %1856 = vmatpush1.bf16.msra.mxu0 %v1396
    %1857 = vmatprep.subr.bf16.mxu0 %v1413
    %1858 = vmatpush1.bf16.msra.mxu0 %v1412
    %1859 = vmatprep.subr.bf16.mxu0 %v1429
    %1860 = vmatpush1.bf16.msra.mxu0 %v1428
    %1861 = vmatprep.subr.bf16.mxu0 %v1445
    %1862 = vmatpush1.bf16.msra.mxu0 %v1444
    %1863 = vmatprep.subr.bf16.mxu0 %v1461
    %1864 = vmatpush1.bf16.msra.mxu0 %v1460
    %1865 = vmatprep.subr.bf16.mxu0 %v1477
    %1866 = vmatpush1.bf16.msra.mxu0 %v1476
    %1867 = vmatprep.subr.bf16.mxu0 %v1493
    %1868 = vmatpush1.bf16.msra.mxu0 %v1492
    %1869 = vmatprep.subr.bf16.mxu0 %v1509
    %1870 = vmatpush1.bf16.msra.mxu0 %v1508
    %1871 = vmatprep.mubr.bf16.mxu0 %v487
    %1872 = vmatmul.mubr.bf16.gmra.mrb[0].mxu0 %v486
    %v1873 = vpop.f32.mrb[0].mxu0
    %v1874 = vadd.f32 %v402, %v1873
    %v1875 = vpop.f32.mrb[0].mxu0
    %v1876 = vadd.f32 %v406, %v1875
    %v1877 = vpop.f32.mrb[0].mxu0
    %v1878 = vadd.f32 %v402, %v1877
    %v1879 = vpop.f32.mrb[0].mxu0
    %v1880 = vadd.f32 %v406, %v1879
    %1881 = vmatprep.mubr.bf16.mxu0 %v489
    %1882 = vmatmul.mubr.bf16.gmra.mrb[0].mxu0 %v488
    %v1883 = vpop.f32.mrb[0].mxu0
    %v1884 = vadd.f32 %v402, %v1883
    %v1885 = vpop.f32.mrb[0].mxu0
    %v1886 = vadd.f32 %v406, %v1885
    %v1887 = vpop.f32.mrb[0].mxu0
    %v1888 = vadd.f32 %v402, %v1887
    %v1889 = vpop.f32.mrb[0].mxu0
    %v1890 = vadd.f32 %v406, %v1889
    %1891 = vmatprep.mubr.bf16.mxu0 %v491
    %1892 = vmatmul.mubr.bf16.gmra.mrb[0].mxu0 %v490
    %v1893 = vpop.f32.mrb[0].mxu0
    %v1894 = vadd.f32 %v402, %v1893
    %v1895 = vpop.f32.mrb[0].mxu0
    %v1896 = vadd.f32 %v406, %v1895
    %v1897 = vpop.f32.mrb[0].mxu0
    %v1898 = vpop.f32.mrb[0].mxu0
    %1899 = vdwg.mxu0
    %1900 = vmatprep.subr.bf16.mxu0 %v1271
    %1901 = vmatpush1.bf16.msra.mxu0 %v1270
    %1902 = vmatprep.subr.bf16.mxu0 %v1287
    %1903 = vmatpush1.bf16.msra.mxu0 %v1286
    %1904 = vmatprep.subr.bf16.mxu0 %v1303
    %1905 = vmatpush1.bf16.msra.mxu0 %v1302
    %1906 = vmatprep.subr.bf16.mxu0 %v1319
    %1907 = vmatpush1.bf16.msra.mxu0 %v1318
    %1908 = vmatprep.subr.bf16.mxu0 %v1335
    %1909 = vmatpush1.bf16.msra.mxu0 %v1334
    %1910 = vmatprep.subr.bf16.mxu0 %v1351
    %1911 = vmatpush1.bf16.msra.mxu0 %v1350
    %1912 = vmatprep.subr.bf16.mxu0 %v1367
    %1913 = vmatpush1.bf16.msra.mxu0 %v1366
    %1914 = vmatprep.subr.bf16.mxu0 %v1383
    %1915 = vmatpush1.bf16.msra.mxu0 %v1382
    %1916 = vmatprep.subr.bf16.mxu0 %v1399
    %1917 = vmatpush1.bf16.msra.mxu0 %v1398
    %1918 = vmatprep.subr.bf16.mxu0 %v1415
    %1919 = vmatpush1.bf16.msra.mxu0 %v1414
    %1920 = vmatprep.subr.bf16.mxu0 %v1431
    %1921 = vmatpush1.bf16.msra.mxu0 %v1430
    %1922 = vmatprep.subr.bf16.mxu0 %v1447
    %1923 = vmatpush1.bf16.msra.mxu0 %v1446
    %1924 = vmatprep.subr.bf16.mxu0 %v1463
    %1925 = vmatpush1.bf16.msra.mxu0 %v1462
    %1926 = vmatprep.subr.bf16.mxu0 %v1479
    %1927 = vmatpush1.bf16.msra.mxu0 %v1478
    %1928 = vmatprep.subr.bf16.mxu0 %v1495
    %1929 = vmatpush1.bf16.msra.mxu0 %v1494
    %1930 = vmatprep.subr.bf16.mxu0 %v1511
    %1931 = vmatpush1.bf16.msra.mxu0 %v1510
    %1932 = vmatprep.mubr.bf16.mxu0 %v487
    %1933 = vmatmul.mubr.bf16.gmra.mrb[0].mxu0 %v486
    %v1934 = vpop.f32.mrb[0].mxu0
    %v1935 = vadd.f32 %v410, %v1934
    %v1936 = vpop.f32.mrb[0].mxu0
    %v1937 = vadd.f32 %v414, %v1936
    %v1938 = vpop.f32.mrb[0].mxu0
    %v1939 = vadd.f32 %v410, %v1938
    %v1940 = vpop.f32.mrb[0].mxu0
    %v1941 = vadd.f32 %v414, %v1940
    %1942 = vmatprep.mubr.bf16.mxu0 %v489
    %1943 = vmatmul.mubr.bf16.gmra.mrb[0].mxu0 %v488
    %v1944 = vpop.f32.mrb[0].mxu0
    %v1945 = vadd.f32 %v410, %v1944
    %v1946 = vpop.f32.mrb[0].mxu0
    %v1947 = vadd.f32 %v414, %v1946
    %v1948 = vpop.f32.mrb[0].mxu0
    %v1949 = vadd.f32 %v410, %v1948
    %v1950 = vpop.f32.mrb[0].mxu0
    %v1951 = vadd.f32 %v414, %v1950
    %1952 = vmatprep.mubr.bf16.mxu0 %v491
    %1953 = vmatmul.mubr.bf16.gmra.mrb[0].mxu0 %v490
    %v1954 = vpop.f32.mrb[0].mxu0
    %v1955 = vadd.f32 %v410, %v1954
    %v1956 = vpop.f32.mrb[0].mxu0
    %v1957 = vadd.f32 %v414, %v1956
    %v1958 = vpop.f32.mrb[0].mxu0
    %v1959 = vpop.f32.mrb[0].mxu0
    %1960 = vdwg.mxu0
    %1961 = vmatprep.subr.bf16.mxu0 %v1273
    %1962 = vmatpush1.bf16.msra.mxu0 %v1272
    %1963 = vmatprep.subr.bf16.mxu0 %v1289
    %1964 = vmatpush1.bf16.msra.mxu0 %v1288
    %1965 = vmatprep.subr.bf16.mxu0 %v1305
    %1966 = vmatpush1.bf16.msra.mxu0 %v1304
    %1967 = vmatprep.subr.bf16.mxu0 %v1321
    %1968 = vmatpush1.bf16.msra.mxu0 %v1320
    %1969 = vmatprep.subr.bf16.mxu0 %v1337
    %1970 = vmatpush1.bf16.msra.mxu0 %v1336
    %1971 = vmatprep.subr.bf16.mxu0 %v1353
    %1972 = vmatpush1.bf16.msra.mxu0 %v1352
    %1973 = vmatprep.subr.bf16.mxu0 %v1369
    %1974 = vmatpush1.bf16.msra.mxu0 %v1368
    %1975 = vmatprep.subr.bf16.mxu0 %v1385
    %1976 = vmatpush1.bf16.msra.mxu0 %v1384
    %1977 = vmatprep.subr.bf16.mxu0 %v1401
    %1978 = vmatpush1.bf16.msra.mxu0 %v1400
    %1979 = vmatprep.subr.bf16.mxu0 %v1417
    %1980 = vmatpush1.bf16.msra.mxu0 %v1416
    %1981 = vmatprep.subr.bf16.mxu0 %v1433
    %1982 = vmatpush1.bf16.msra.mxu0 %v1432
    %1983 = vmatprep.subr.bf16.mxu0 %v1449
    %1984 = vmatpush1.bf16.msra.mxu0 %v1448
    %1985 = vmatprep.subr.bf16.mxu0 %v1465
    %1986 = vmatpush1.bf16.msra.mxu0 %v1464
    %1987 = vmatprep.subr.bf16.mxu0 %v1481
    %1988 = vmatpush1.bf16.msra.mxu0 %v1480
    %1989 = vmatprep.subr.bf16.mxu0 %v1497
    %1990 = vmatpush1.bf16.msra.mxu0 %v1496
    %1991 = vmatprep.subr.bf16.mxu0 %v1513
    %1992 = vmatpush1.bf16.msra.mxu0 %v1512
    %1993 = vmatprep.mubr.bf16.mxu0 %v487
    %1994 = vmatmul.mubr.bf16.gmra.mrb[0].mxu0 %v486
    %v1995 = vpop.f32.mrb[0].mxu0
    %v1996 = vadd.f32 %v418, %v1995
    %v1997 = vpop.f32.mrb[0].mxu0
    %v1998 = vadd.f32 %v422, %v1997
    %v1999 = vpop.f32.mrb[0].mxu0
    %v2000 = vadd.f32 %v418, %v1999
    %v2001 = vpop.f32.mrb[0].mxu0
    %v2002 = vadd.f32 %v422, %v2001
    %2003 = vmatprep.mubr.bf16.mxu0 %v489
    %2004 = vmatmul.mubr.bf16.gmra.mrb[0].mxu0 %v488
    %v2005 = vpop.f32.mrb[0].mxu0
    %v2006 = vadd.f32 %v418, %v2005
    %v2007 = vpop.f32.mrb[0].mxu0
    %v2008 = vadd.f32 %v422, %v2007
    %v2009 = vpop.f32.mrb[0].mxu0
    %v2010 = vadd.f32 %v418, %v2009
    %v2011 = vpop.f32.mrb[0].mxu0
    %v2012 = vadd.f32 %v422, %v2011
    %2013 = vmatprep.mubr.bf16.mxu0 %v491
    %2014 = vmatmul.mubr.bf16.gmra.mrb[0].mxu0 %v490
    %v2015 = vpop.f32.mrb[0].mxu0
    %v2016 = vadd.f32 %v418, %v2015
    %v2017 = vpop.f32.mrb[0].mxu0
    %v2018 = vadd.f32 %v422, %v2017
    %v2019 = vpop.f32.mrb[0].mxu0
    %v2020 = vpop.f32.mrb[0].mxu0
    %2021 = vdwg.mxu0
    %2022 = vmatprep.subr.bf16.mxu0 %v1275
    %2023 = vmatpush1.bf16.msra.mxu0 %v1274
    %2024 = vmatprep.subr.bf16.mxu0 %v1291
    %2025 = vmatpush1.bf16.msra.mxu0 %v1290
    %2026 = vmatprep.subr.bf16.mxu0 %v1307
    %2027 = vmatpush1.bf16.msra.mxu0 %v1306
    %2028 = vmatprep.subr.bf16.mxu0 %v1323
    %2029 = vmatpush1.bf16.msra.mxu0 %v1322
    %2030 = vmatprep.subr.bf16.mxu0 %v1339
    %2031 = vmatpush1.bf16.msra.mxu0 %v1338
    %2032 = vmatprep.subr.bf16.mxu0 %v1355
    %2033 = vmatpush1.bf16.msra.mxu0 %v1354
    %2034 = vmatprep.subr.bf16.mxu0 %v1371
    %2035 = vmatpush1.bf16.msra.mxu0 %v1370
    %2036 = vmatprep.subr.bf16.mxu0 %v1387
    %2037 = vmatpush1.bf16.msra.mxu0 %v1386
    %2038 = vmatprep.subr.bf16.mxu0 %v1403
    %2039 = vmatpush1.bf16.msra.mxu0 %v1402
    %2040 = vmatprep.subr.bf16.mxu0 %v1419
    %2041 = vmatpush1.bf16.msra.mxu0 %v1418
    %2042 = vmatprep.subr.bf16.mxu0 %v1435
    %2043 = vmatpush1.bf16.msra.mxu0 %v1434
    %2044 = vmatprep.subr.bf16.mxu0 %v1451
    %2045 = vmatpush1.bf16.msra.mxu0 %v1450
    %2046 = vmatprep.subr.bf16.mxu0 %v1467
    %2047 = vmatpush1.bf16.msra.mxu0 %v1466
    %2048 = vmatprep.subr.bf16.mxu0 %v1483
    %2049 = vmatpush1.bf16.msra.mxu0 %v1482
    %2050 = vmatprep.subr.bf16.mxu0 %v1499
    %2051 = vmatpush1.bf16.msra.mxu0 %v1498
    %2052 = vmatprep.subr.bf16.mxu0 %v1515
    %2053 = vmatpush1.bf16.msra.mxu0 %v1514
    %2054 = vmatprep.mubr.bf16.mxu0 %v487
    %2055 = vmatmul.mubr.bf16.gmra.mrb[0].mxu0 %v486
    %v2056 = vpop.f32.mrb[0].mxu0
    %v2057 = vadd.f32 %v426, %v2056
    %v2058 = vpop.f32.mrb[0].mxu0
    %v2059 = vadd.f32 %v430, %v2058
    %v2060 = vpop.f32.mrb[0].mxu0
    %v2061 = vadd.f32 %v426, %v2060
    %v2062 = vpop.f32.mrb[0].mxu0
    %v2063 = vadd.f32 %v430, %v2062
    %2064 = vmatprep.mubr.bf16.mxu0 %v489
    %2065 = vmatmul.mubr.bf16.gmra.mrb[0].mxu0 %v488
    %v2066 = vpop.f32.mrb[0].mxu0
    %v2067 = vadd.f32 %v426, %v2066
    %v2068 = vpop.f32.mrb[0].mxu0
    %v2069 = vadd.f32 %v430, %v2068
    %v2070 = vpop.f32.mrb[0].mxu0
    %v2071 = vadd.f32 %v426, %v2070
    %v2072 = vpop.f32.mrb[0].mxu0
    %v2073 = vadd.f32 %v430, %v2072
    %2074 = vmatprep.mubr.bf16.mxu0 %v491
    %2075 = vmatmul.mubr.bf16.gmra.mrb[0].mxu0 %v490
    %v2076 = vpop.f32.mrb[0].mxu0
    %v2077 = vadd.f32 %v426, %v2076
    %v2078 = vpop.f32.mrb[0].mxu0
    %v2079 = vadd.f32 %v430, %v2078
    %v2080 = vpop.f32.mrb[0].mxu0
    %v2081 = vpop.f32.mrb[0].mxu0
    %2082 = vdwg.mxu0
    %2083 = vmatprep.subr.bf16.mxu0 %v1277
    %2084 = vmatpush1.bf16.msra.mxu0 %v1276
    %2085 = vmatprep.subr.bf16.mxu0 %v1293
    %2086 = vmatpush1.bf16.msra.mxu0 %v1292
    %2087 = vmatprep.subr.bf16.mxu0 %v1309
    %2088 = vmatpush1.bf16.msra.mxu0 %v1308
    %2089 = vmatprep.subr.bf16.mxu0 %v1325
    %2090 = vmatpush1.bf16.msra.mxu0 %v1324
    %2091 = vmatprep.subr.bf16.mxu0 %v1341
    %2092 = vmatpush1.bf16.msra.mxu0 %v1340
    %2093 = vmatprep.subr.bf16.mxu0 %v1357
    %2094 = vmatpush1.bf16.msra.mxu0 %v1356
    %2095 = vmatprep.subr.bf16.mxu0 %v1373
    %2096 = vmatpush1.bf16.msra.mxu0 %v1372
    %2097 = vmatprep.subr.bf16.mxu0 %v1389
    %2098 = vmatpush1.bf16.msra.mxu0 %v1388
    %2099 = vmatprep.subr.bf16.mxu0 %v1405
    %2100 = vmatpush1.bf16.msra.mxu0 %v1404
    %2101 = vmatprep.subr.bf16.mxu0 %v1421
    %2102 = vmatpush1.bf16.msra.mxu0 %v1420
    %2103 = vmatprep.subr.bf16.mxu0 %v1437
    %2104 = vmatpush1.bf16.msra.mxu0 %v1436
    %2105 = vmatprep.subr.bf16.mxu0 %v1453
    %2106 = vmatpush1.bf16.msra.mxu0 %v1452
    %2107 = vmatprep.subr.bf16.mxu0 %v1469
    %2108 = vmatpush1.bf16.msra.mxu0 %v1468
    %2109 = vmatprep.subr.bf16.mxu0 %v1485
    %2110 = vmatpush1.bf16.msra.mxu0 %v1484
    %2111 = vmatprep.subr.bf16.mxu0 %v1501
    %2112 = vmatpush1.bf16.msra.mxu0 %v1500
    %2113 = vmatprep.subr.bf16.mxu0 %v1517
    %2114 = vmatpush1.bf16.msra.mxu0 %v1516
    %2115 = vmatprep.mubr.bf16.mxu0 %v487
    %2116 = vmatmul.mubr.bf16.gmra.mrb[0].mxu0 %v486
    %v2117 = vpop.f32.mrb[0].mxu0
    %v2118 = vadd.f32 %v434, %v2117
    %v2119 = vpop.f32.mrb[0].mxu0
    %v2120 = vadd.f32 %v438, %v2119
    %v2121 = vpop.f32.mrb[0].mxu0
    %v2122 = vadd.f32 %v434, %v2121
    %v2123 = vpop.f32.mrb[0].mxu0
    %v2124 = vadd.f32 %v438, %v2123
    %2125 = vmatprep.mubr.bf16.mxu0 %v489
    %2126 = vmatmul.mubr.bf16.gmra.mrb[0].mxu0 %v488
    %v2127 = vpop.f32.mrb[0].mxu0
    %v2128 = vadd.f32 %v434, %v2127
    %v2129 = vpop.f32.mrb[0].mxu0
    %v2130 = vadd.f32 %v438, %v2129
    %v2131 = vpop.f32.mrb[0].mxu0
    %v2132 = vadd.f32 %v434, %v2131
    %v2133 = vpop.f32.mrb[0].mxu0
    %v2134 = vadd.f32 %v438, %v2133
    %2135 = vmatprep.mubr.bf16.mxu0 %v491
    %2136 = vmatmul.mubr.bf16.gmra.mrb[0].mxu0 %v490
    %v2137 = vpop.f32.mrb[0].mxu0
    %v2138 = vadd.f32 %v434, %v2137
    %v2139 = vpop.f32.mrb[0].mxu0
    %v2140 = vadd.f32 %v438, %v2139
    %v2141 = vpop.f32.mrb[0].mxu0
    %v2142 = vpop.f32.mrb[0].mxu0
    %2143 = vdwg.mxu0
    %2144 = vmatprep.subr.bf16.mxu0 %v1279
    %2145 = vmatpush1.bf16.msra.mxu0 %v1278
    %2146 = vmatprep.subr.bf16.mxu0 %v1295
    %2147 = vmatpush1.bf16.msra.mxu0 %v1294
    %2148 = vmatprep.subr.bf16.mxu0 %v1311
    %2149 = vmatpush1.bf16.msra.mxu0 %v1310
    %2150 = vmatprep.subr.bf16.mxu0 %v1327
    %2151 = vmatpush1.bf16.msra.mxu0 %v1326
    %2152 = vmatprep.subr.bf16.mxu0 %v1343
    %2153 = vmatpush1.bf16.msra.mxu0 %v1342
    %2154 = vmatprep.subr.bf16.mxu0 %v1359
    %2155 = vmatpush1.bf16.msra.mxu0 %v1358
    %2156 = vmatprep.subr.bf16.mxu0 %v1375
    %2157 = vmatpush1.bf16.msra.mxu0 %v1374
    %2158 = vmatprep.subr.bf16.mxu0 %v1391
    %2159 = vmatpush1.bf16.msra.mxu0 %v1390
    %2160 = vmatprep.subr.bf16.mxu0 %v1407
    %2161 = vmatpush1.bf16.msra.mxu0 %v1406
    %2162 = vmatprep.subr.bf16.mxu0 %v1423
    %2163 = vmatpush1.bf16.msra.mxu0 %v1422
    %2164 = vmatprep.subr.bf16.mxu0 %v1439
    %2165 = vmatpush1.bf16.msra.mxu0 %v1438
    %2166 = vmatprep.subr.bf16.mxu0 %v1455
    %2167 = vmatpush1.bf16.msra.mxu0 %v1454
    %2168 = vmatprep.subr.bf16.mxu0 %v1471
    %2169 = vmatpush1.bf16.msra.mxu0 %v1470
    %2170 = vmatprep.subr.bf16.mxu0 %v1487
    %2171 = vmatpush1.bf16.msra.mxu0 %v1486
    %2172 = vmatprep.subr.bf16.mxu0 %v1503
    %2173 = vmatpush1.bf16.msra.mxu0 %v1502
    %2174 = vmatprep.subr.bf16.mxu0 %v1519
    %2175 = vmatpush1.bf16.msra.mxu0 %v1518
    %2176 = vmatprep.mubr.bf16.mxu0 %v487
    %2177 = vmatmul.mubr.bf16.gmra.mrb[0].mxu0 %v486
    %v2178 = vpop.f32.mrb[0].mxu0
    %v2179 = vadd.f32 %v442, %v2178
    %v2180 = vpop.f32.mrb[0].mxu0
    %v2181 = vadd.f32 %v446, %v2180
    %v2182 = vpop.f32.mrb[0].mxu0
    %v2183 = vadd.f32 %v442, %v2182
    %v2184 = vpop.f32.mrb[0].mxu0
    %v2185 = vadd.f32 %v446, %v2184
    %2186 = vmatprep.mubr.bf16.mxu0 %v489
    %2187 = vmatmul.mubr.bf16.gmra.mrb[0].mxu0 %v488
    %v2188 = vpop.f32.mrb[0].mxu0
    %v2189 = vadd.f32 %v442, %v2188
    %v2190 = vpop.f32.mrb[0].mxu0
    %v2191 = vadd.f32 %v446, %v2190
    %v2192 = vpop.f32.mrb[0].mxu0
    %v2193 = vadd.f32 %v442, %v2192
    %v2194 = vpop.f32.mrb[0].mxu0
    %v2195 = vadd.f32 %v446, %v2194
    %2196 = vmatprep.mubr.bf16.mxu0 %v491
    %2197 = vmatmul.mubr.bf16.gmra.mrb[0].mxu0 %v490
    %v2198 = vpop.f32.mrb[0].mxu0
    %v2199 = vadd.f32 %v442, %v2198
    %v2200 = vpop.f32.mrb[0].mxu0
    %v2201 = vadd.f32 %v446, %v2200
    %v2202 = vpop.f32.mrb[0].mxu0
    %v2203 = vpop.f32.mrb[0].mxu0
    %2204 = vdwg.mxu0
    %2205 = vmatprep.subr.bf16.mxu0 %v1281
    %2206 = vmatpush1.bf16.msra.mxu0 %v1280
    %2207 = vmatprep.subr.bf16.mxu0 %v1297
    %2208 = vmatpush1.bf16.msra.mxu0 %v1296
    %2209 = vmatprep.subr.bf16.mxu0 %v1313
    %2210 = vmatpush1.bf16.msra.mxu0 %v1312
    %2211 = vmatprep.subr.bf16.mxu0 %v1329
    %2212 = vmatpush1.bf16.msra.mxu0 %v1328
    %2213 = vmatprep.subr.bf16.mxu0 %v1345
    %2214 = vmatpush1.bf16.msra.mxu0 %v1344
    %2215 = vmatprep.subr.bf16.mxu0 %v1361
    %2216 = vmatpush1.bf16.msra.mxu0 %v1360
    %2217 = vmatprep.subr.bf16.mxu0 %v1377
    %2218 = vmatpush1.bf16.msra.mxu0 %v1376
    %2219 = vmatprep.subr.bf16.mxu0 %v1393
    %2220 = vmatpush1.bf16.msra.mxu0 %v1392
    %2221 = vmatprep.subr.bf16.mxu0 %v1409
    %2222 = vmatpush1.bf16.msra.mxu0 %v1408
    %2223 = vmatprep.subr.bf16.mxu0 %v1425
    %2224 = vmatpush1.bf16.msra.mxu0 %v1424
    %2225 = vmatprep.subr.bf16.mxu0 %v1441
    %2226 = vmatpush1.bf16.msra.mxu0 %v1440
    %2227 = vmatprep.subr.bf16.mxu0 %v1457
    %2228 = vmatpush1.bf16.msra.mxu0 %v1456
    %2229 = vmatprep.subr.bf16.mxu0 %v1473
    %2230 = vmatpush1.bf16.msra.mxu0 %v1472
    %2231 = vmatprep.subr.bf16.mxu0 %v1489
    %2232 = vmatpush1.bf16.msra.mxu0 %v1488
    %2233 = vmatprep.subr.bf16.mxu0 %v1505
    %2234 = vmatpush1.bf16.msra.mxu0 %v1504
    %2235 = vmatprep.subr.bf16.mxu0 %v1521
    %2236 = vmatpush1.bf16.msra.mxu0 %v1520
    %2237 = vmatprep.mubr.bf16.mxu0 %v487
    %2238 = vmatmul.mubr.bf16.gmra.mrb[0].mxu0 %v486
    %v2239 = vpop.f32.mrb[0].mxu0
    %v2240 = vadd.f32 %v450, %v2239
    %v2241 = vpop.f32.mrb[0].mxu0
    %v2242 = vadd.f32 %v454, %v2241
    %v2243 = vpop.f32.mrb[0].mxu0
    %v2244 = vadd.f32 %v450, %v2243
    %v2245 = vpop.f32.mrb[0].mxu0
    %v2246 = vadd.f32 %v454, %v2245
    %2247 = vmatprep.mubr.bf16.mxu0 %v489
    %2248 = vmatmul.mubr.bf16.gmra.mrb[0].mxu0 %v488
    %v2249 = vpop.f32.mrb[0].mxu0
    %v2250 = vadd.f32 %v450, %v2249
    %v2251 = vpop.f32.mrb[0].mxu0
    %v2252 = vadd.f32 %v454, %v2251
    %v2253 = vpop.f32.mrb[0].mxu0
    %v2254 = vadd.f32 %v450, %v2253
    %v2255 = vpop.f32.mrb[0].mxu0
    %v2256 = vadd.f32 %v454, %v2255
    %2257 = vmatprep.mubr.bf16.mxu0 %v491
    %2258 = vmatmul.mubr.bf16.gmra.mrb[0].mxu0 %v490
    %v2259 = vpop.f32.mrb[0].mxu0
    %v2260 = vadd.f32 %v450, %v2259
    %v2261 = vpop.f32.mrb[0].mxu0
    %v2262 = vadd.f32 %v454, %v2261
    %v2263 = vpop.f32.mrb[0].mxu0
    %v2264 = vpop.f32.mrb[0].mxu0
    %2265 = vdwg.mxu0
    %v2266 = vsel %vm126, 1, 0
    %v2267 = vsel %vm127, 1, 0
    %v2268 = vsel %vm128, 1, 0
    %v2269 = vsel %vm129, 1, 0
    %v2270 = vsel %vm130, 1, 0
    %vm2271 = vcmp.eq.s32.totalorder %v2266, 1
    %vm2272 = vcmp.eq.s32.totalorder %v2267, 1
    %vm2273 = vcmp.eq.s32.totalorder %v2268, 1
    %vm2274 = vcmp.eq.s32.totalorder %v2269, 1
    %vm2275 = vcmp.eq.s32.totalorder %v2270, 1
    %v2276 = vsel %vm2271, %v1813, %v2057
    %v2277 = vsel %vm2271, %v1815, %v2059
    %v2278 = vsel %vm2271, %v1874, %v2118
    %v2279 = vsel %vm2271, %v1876, %v2120
    %v2280 = vsel %vm2271, %v1935, %v2179
    %v2281 = vsel %vm2271, %v1937, %v2181
    %v2282 = vsel %vm2271, %v1996, %v2240
    %v2283 = vsel %vm2271, %v1998, %v2242
    %v2284 = vsel %vm2272, %v1817, %v2061
    %v2285 = vsel %vm2272, %v1819, %v2063
    %v2286 = vsel %vm2272, %v1878, %v2122
    %v2287 = vsel %vm2272, %v1880, %v2124
    %v2288 = vsel %vm2272, %v1939, %v2183
    %v2289 = vsel %vm2272, %v1941, %v2185
    %v2290 = vsel %vm2272, %v2000, %v2244
    %v2291 = vsel %vm2272, %v2002, %v2246
    %v2292 = vsel %vm2273, %v1823, %v2067
    %v2293 = vsel %vm2273, %v1825, %v2069
    %v2294 = vsel %vm2273, %v1884, %v2128
    %v2295 = vsel %vm2273, %v1886, %v2130
    %v2296 = vsel %vm2273, %v1945, %v2189
    %v2297 = vsel %vm2273, %v1947, %v2191
    %v2298 = vsel %vm2273, %v2006, %v2250
    %v2299 = vsel %vm2273, %v2008, %v2252
    %v2300 = vsel %vm2274, %v1827, %v2071
    %v2301 = vsel %vm2274, %v1829, %v2073
    %v2302 = vsel %vm2274, %v1888, %v2132
    %v2303 = vsel %vm2274, %v1890, %v2134
    %v2304 = vsel %vm2274, %v1949, %v2193
    %v2305 = vsel %vm2274, %v1951, %v2195
    %v2306 = vsel %vm2274, %v2010, %v2254
    %v2307 = vsel %vm2274, %v2012, %v2256
    %v2308 = vsel %vm2275, %v1833, %v2077
    %v2309 = vsel %vm2275, %v1835, %v2079
    %v2310 = vsel %vm2275, %v1894, %v2138
    %v2311 = vsel %vm2275, %v1896, %v2140
    %v2312 = vsel %vm2275, %v1955, %v2199
    %v2313 = vsel %vm2275, %v1957, %v2201
    %v2314 = vsel %vm2275, %v2016, %v2260
    %v2315 = vsel %vm2275, %v2018, %v2262
    %v2316 = vpack.c.bf16 %v2284, %v2276
    %v2317 = vpack.c.bf16 %v2285, %v2277
    %v2318 = vpack.c.bf16 %v2286, %v2278
    %v2319 = vpack.c.bf16 %v2287, %v2279
    %v2320 = vpack.c.bf16 %v2288, %v2280
    %v2321 = vpack.c.bf16 %v2289, %v2281
    %v2322 = vpack.c.bf16 %v2290, %v2282
    %v2323 = vpack.c.bf16 %v2291, %v2283
    %v2324 = vpack.c.bf16 %v2300, %v2292
    %v2325 = vpack.c.bf16 %v2301, %v2293
    %v2326 = vpack.c.bf16 %v2302, %v2294
    %v2327 = vpack.c.bf16 %v2303, %v2295
    %v2328 = vpack.c.bf16 %v2304, %v2296
    %v2329 = vpack.c.bf16 %v2305, %v2297
    %v2330 = vpack.c.bf16 %v2306, %v2298
    %v2331 = vpack.c.bf16 %v2307, %v2299
    %v2332 = vpack.c.bf16 %v2308, %v2308
    %v2333 = vpack.c.bf16 %v2309, %v2309
    %v2334 = vpack.c.bf16 %v2310, %v2310
    %v2335 = vpack.c.bf16 %v2311, %v2311
    %v2336 = vpack.c.bf16 %v2312, %v2312
    %v2337 = vpack.c.bf16 %v2313, %v2313
    %v2338 = vpack.c.bf16 %v2314, %v2314
    %v2339 = vpack.c.bf16 %v2315, %v2315
    %v2340 = vld [vmem:[#allocation4] sm:$0xff]
    %v2341 = vld [vmem:[#allocation4 + $0x8] sm:$0xff]
    %v2342 = vld [vmem:[#allocation4 + $0x10] sm:$0xff]
    %v2343 = vld [vmem:[#allocation4 + $0x18] sm:$0xff]
    %v2344 = vld [vmem:[#allocation4 + $0x20] sm:$0xff]
    %v2345 = vld [vmem:[#allocation4 + $0x28] sm:$0xff]
    %v2346 = vld [vmem:[#allocation4 + $0x30] sm:$0xff]
    %v2347 = vld [vmem:[#allocation4 + $0x38] sm:$0xff]
    %v2348 = vld [vmem:[#allocation4 + $0x40] sm:$0xff]
    %v2349 = vld [vmem:[#allocation4 + $0x48] sm:$0xff]
    %v2350 = vld [vmem:[#allocation4 + $0x50] sm:$0xff]
    %v2351 = vld [vmem:[#allocation4 + $0x58] sm:$0xff]
    %v2352 = vld [vmem:[#allocation4 + $0x60] sm:$0xff]
    %v2353 = vld [vmem:[#allocation4 + $0x68] sm:$0xff]
    %v2354 = vld [vmem:[#allocation4 + $0x70] sm:$0xff]
    %v2355 = vld [vmem:[#allocation4 + $0x78] sm:$0xff]
    %v2356 = vld [vmem:[#allocation4 + $0x80] sm:$0xff]
    %v2357 = vld [vmem:[#allocation4 + $0x88] sm:$0xff]
    %v2358 = vld [vmem:[#allocation4 + $0x90] sm:$0xff]
    %v2359 = vld [vmem:[#allocation4 + $0x98] sm:$0xff]
    %v2360 = vld [vmem:[#allocation4 + $0xa0] sm:$0xff]
    %v2361 = vld [vmem:[#allocation4 + $0xa8] sm:$0xff]
    %v2362 = vld [vmem:[#allocation4 + $0xb0] sm:$0xff]
    %v2363 = vld [vmem:[#allocation4 + $0xb8] sm:$0xff]
    %v2364 = vld [vmem:[#allocation4 + $0xc0] sm:$0xff]
    %v2365 = vld [vmem:[#allocation4 + $0xc8] sm:$0xff]
    %v2366 = vld [vmem:[#allocation4 + $0xd0] sm:$0xff]
    %v2367 = vld [vmem:[#allocation4 + $0xd8] sm:$0xff]
    %v2368 = vld [vmem:[#allocation4 + $0xe0] sm:$0xff]
    %v2369 = vld [vmem:[#allocation4 + $0xe8] sm:$0xff]
    %v2370 = vld [vmem:[#allocation4 + $0xf0] sm:$0xff]
    %v2371 = vld [vmem:[#allocation4 + $0xf8] sm:$0xff]
    %v2372 = vld [vmem:[#allocation4 + $0x100] sm:$0xff]
    %v2373 = vld [vmem:[#allocation4 + $0x108] sm:$0xff]
    %v2374 = vld [vmem:[#allocation4 + $0x110] sm:$0xff]
    %v2375 = vld [vmem:[#allocation4 + $0x118] sm:$0xff]
    %v2376 = vld [vmem:[#allocation4 + $0x120] sm:$0xff]
    %v2377 = vld [vmem:[#allocation4 + $0x128] sm:$0xff]
    %v2378 = vld [vmem:[#allocation4 + $0x130] sm:$0xff]
    %v2379 = vld [vmem:[#allocation4 + $0x138] sm:$0xff]
    %v2380 = vld [vmem:[#allocation4 + $0x140] sm:$0xff]
    %v2381 = vld [vmem:[#allocation4 + $0x148] sm:$0xff]
    %v2382 = vld [vmem:[#allocation4 + $0x150] sm:$0xff]
    %v2383 = vld [vmem:[#allocation4 + $0x158] sm:$0xff]
    %v2384 = vld [vmem:[#allocation4 + $0x160] sm:$0xff]
    %v2385 = vld [vmem:[#allocation4 + $0x168] sm:$0xff]
    %v2386 = vld [vmem:[#allocation4 + $0x170] sm:$0xff]
    %v2387 = vld [vmem:[#allocation4 + $0x178] sm:$0xff]
    %v2388 = vld [vmem:[#allocation4 + $0x180] sm:$0xff]
    %v2389 = vld [vmem:[#allocation4 + $0x188] sm:$0xff]
    %v2390 = vld [vmem:[#allocation4 + $0x190] sm:$0xff]
    %v2391 = vld [vmem:[#allocation4 + $0x198] sm:$0xff]
    %v2392 = vld [vmem:[#allocation4 + $0x1a0] sm:$0xff]
    %v2393 = vld [vmem:[#allocation4 + $0x1a8] sm:$0xff]
    %v2394 = vld [vmem:[#allocation4 + $0x1b0] sm:$0xff]
    %v2395 = vld [vmem:[#allocation4 + $0x1b8] sm:$0xff]
    %v2396 = vld [vmem:[#allocation4 + $0x1c0] sm:$0xff]
    %v2397 = vld [vmem:[#allocation4 + $0x1c8] sm:$0xff]
    %v2398 = vld [vmem:[#allocation4 + $0x1d0] sm:$0xff]
    %v2399 = vld [vmem:[#allocation4 + $0x1d8] sm:$0xff]
    %v2400 = vld [vmem:[#allocation4 + $0x1e0] sm:$0xff]
    %v2401 = vld [vmem:[#allocation4 + $0x1e8] sm:$0xff]
    %v2402 = vld [vmem:[#allocation4 + $0x1f0] sm:$0xff]
    %v2403 = vld [vmem:[#allocation4 + $0x1f8] sm:$0xff]
    %v2404 = vld [vmem:[#allocation4 + $0x200] sm:$0xff]
    %v2405 = vld [vmem:[#allocation4 + $0x208] sm:$0xff]
    %v2406 = vld [vmem:[#allocation4 + $0x210] sm:$0xff]
    %v2407 = vld [vmem:[#allocation4 + $0x218] sm:$0xff]
    %v2408 = vld [vmem:[#allocation4 + $0x220] sm:$0xff]
    %v2409 = vld [vmem:[#allocation4 + $0x228] sm:$0xff]
    %v2410 = vld [vmem:[#allocation4 + $0x230] sm:$0xff]
    %v2411 = vld [vmem:[#allocation4 + $0x238] sm:$0xff]
    %v2412 = vld [vmem:[#allocation4 + $0x240] sm:$0xff]
    %v2413 = vld [vmem:[#allocation4 + $0x248] sm:$0xff]
    %v2414 = vld [vmem:[#allocation4 + $0x250] sm:$0xff]
    %v2415 = vld [vmem:[#allocation4 + $0x258] sm:$0xff]
    %v2416 = vld [vmem:[#allocation4 + $0x260] sm:$0xff]
    %v2417 = vld [vmem:[#allocation4 + $0x268] sm:$0xff]
    %v2418 = vld [vmem:[#allocation4 + $0x270] sm:$0xff]
    %v2419 = vld [vmem:[#allocation4 + $0x278] sm:$0xff]
    %v2420 = vld [vmem:[#allocation4 + $0x280] sm:$0xff]
    %v2421 = vld [vmem:[#allocation4 + $0x288] sm:$0xff]
    %v2422 = vld [vmem:[#allocation4 + $0x290] sm:$0xff]
    %v2423 = vld [vmem:[#allocation4 + $0x298] sm:$0xff]
    %v2424 = vld [vmem:[#allocation4 + $0x2a0] sm:$0xff]
    %v2425 = vld [vmem:[#allocation4 + $0x2a8] sm:$0xff]
    %v2426 = vld [vmem:[#allocation4 + $0x2b0] sm:$0xff]
    %v2427 = vld [vmem:[#allocation4 + $0x2b8] sm:$0xff]
    %v2428 = vld [vmem:[#allocation4 + $0x2c0] sm:$0xff]
    %v2429 = vld [vmem:[#allocation4 + $0x2c8] sm:$0xff]
    %v2430 = vld [vmem:[#allocation4 + $0x2d0] sm:$0xff]
    %v2431 = vld [vmem:[#allocation4 + $0x2d8] sm:$0xff]
    %v2432 = vld [vmem:[#allocation4 + $0x2e0] sm:$0xff]
    %v2433 = vld [vmem:[#allocation4 + $0x2e8] sm:$0xff]
    %v2434 = vld [vmem:[#allocation4 + $0x2f0] sm:$0xff]
    %v2435 = vld [vmem:[#allocation4 + $0x2f8] sm:$0xff]
    %v2436 = vld [vmem:[#allocation4 + $0x300] sm:$0xff]
    %v2437 = vld [vmem:[#allocation4 + $0x308] sm:$0xff]
    %v2438 = vld [vmem:[#allocation4 + $0x310] sm:$0xff]
    %v2439 = vld [vmem:[#allocation4 + $0x318] sm:$0xff]
    %v2440 = vld [vmem:[#allocation4 + $0x320] sm:$0xff]
    %v2441 = vld [vmem:[#allocation4 + $0x328] sm:$0xff]
    %v2442 = vld [vmem:[#allocation4 + $0x330] sm:$0xff]
    %v2443 = vld [vmem:[#allocation4 + $0x338] sm:$0xff]
    %v2444 = vld [vmem:[#allocation4 + $0x340] sm:$0xff]
    %v2445 = vld [vmem:[#allocation4 + $0x348] sm:$0xff]
    %v2446 = vld [vmem:[#allocation4 + $0x350] sm:$0xff]
    %v2447 = vld [vmem:[#allocation4 + $0x358] sm:$0xff]
    %v2448 = vld [vmem:[#allocation4 + $0x360] sm:$0xff]
    %v2449 = vld [vmem:[#allocation4 + $0x368] sm:$0xff]
    %v2450 = vld [vmem:[#allocation4 + $0x370] sm:$0xff]
    %v2451 = vld [vmem:[#allocation4 + $0x378] sm:$0xff]
    %v2452 = vld [vmem:[#allocation4 + $0x380] sm:$0xff]
    %v2453 = vld [vmem:[#allocation4 + $0x388] sm:$0xff]
    %v2454 = vld [vmem:[#allocation4 + $0x390] sm:$0xff]
    %v2455 = vld [vmem:[#allocation4 + $0x398] sm:$0xff]
    %v2456 = vld [vmem:[#allocation4 + $0x3a0] sm:$0xff]
    %v2457 = vld [vmem:[#allocation4 + $0x3a8] sm:$0xff]
    %v2458 = vld [vmem:[#allocation4 + $0x3b0] sm:$0xff]
    %v2459 = vld [vmem:[#allocation4 + $0x3b8] sm:$0xff]
    %v2460 = vld [vmem:[#allocation4 + $0x3c0] sm:$0xff]
    %v2461 = vld [vmem:[#allocation4 + $0x3c8] sm:$0xff]
    %v2462 = vld [vmem:[#allocation4 + $0x3d0] sm:$0xff]
    %v2463 = vld [vmem:[#allocation4 + $0x3d8] sm:$0xff]
    %v2464 = vld [vmem:[#allocation4 + $0x3e0] sm:$0xff]
    %v2465 = vld [vmem:[#allocation4 + $0x3e8] sm:$0xff]
    %v2466 = vld [vmem:[#allocation4 + $0x3f0] sm:$0xff]
    %v2467 = vld [vmem:[#allocation4 + $0x3f8] sm:$0xff]
    %v2468 = vld [vmem:[#allocation4 + $0x400] sm:$0xff]
    %v2469 = vld [vmem:[#allocation4 + $0x408] sm:$0xff]
    %v2470 = vld [vmem:[#allocation4 + $0x410] sm:$0xff]
    %v2471 = vld [vmem:[#allocation4 + $0x418] sm:$0xff]
    %v2472 = vld [vmem:[#allocation4 + $0x420] sm:$0xff]
    %v2473 = vld [vmem:[#allocation4 + $0x428] sm:$0xff]
    %v2474 = vld [vmem:[#allocation4 + $0x430] sm:$0xff]
    %v2475 = vld [vmem:[#allocation4 + $0x438] sm:$0xff]
    %v2476 = vld [vmem:[#allocation4 + $0x440] sm:$0xff]
    %v2477 = vld [vmem:[#allocation4 + $0x448] sm:$0xff]
    %v2478 = vld [vmem:[#allocation4 + $0x450] sm:$0xff]
    %v2479 = vld [vmem:[#allocation4 + $0x458] sm:$0xff]
    %v2480 = vld [vmem:[#allocation4 + $0x460] sm:$0xff]
    %v2481 = vld [vmem:[#allocation4 + $0x468] sm:$0xff]
    %v2482 = vld [vmem:[#allocation4 + $0x470] sm:$0xff]
    %v2483 = vld [vmem:[#allocation4 + $0x478] sm:$0xff]
    %v2484 = vld [vmem:[#allocation4 + $0x480] sm:$0xff]
    %v2485 = vld [vmem:[#allocation4 + $0x488] sm:$0xff]
    %v2486 = vld [vmem:[#allocation4 + $0x490] sm:$0xff]
    %v2487 = vld [vmem:[#allocation4 + $0x498] sm:$0xff]
    %v2488 = vld [vmem:[#allocation4 + $0x4a0] sm:$0xff]
    %v2489 = vld [vmem:[#allocation4 + $0x4a8] sm:$0xff]
    %v2490 = vld [vmem:[#allocation4 + $0x4b0] sm:$0xff]
    %v2491 = vld [vmem:[#allocation4 + $0x4b8] sm:$0xff]
    %v2492 = vld [vmem:[#allocation4 + $0x4c0] sm:$0xff]
    %v2493 = vld [vmem:[#allocation4 + $0x4c8] sm:$0xff]
    %v2494 = vld [vmem:[#allocation4 + $0x4d0] sm:$0xff]
    %v2495 = vld [vmem:[#allocation4 + $0x4d8] sm:$0xff]
    %v2496 = vld [vmem:[#allocation4 + $0x4e0] sm:$0xff]
    %v2497 = vld [vmem:[#allocation4 + $0x4e8] sm:$0xff]
    %v2498 = vld [vmem:[#allocation4 + $0x4f0] sm:$0xff]
    %v2499 = vld [vmem:[#allocation4 + $0x4f8] sm:$0xff]
    %v2500 = vld [vmem:[#allocation4 + $0x500] sm:$0xff]
    %v2501 = vld [vmem:[#allocation4 + $0x508] sm:$0xff]
    %v2502 = vld [vmem:[#allocation4 + $0x510] sm:$0xff]
    %v2503 = vld [vmem:[#allocation4 + $0x518] sm:$0xff]
    %v2504 = vld [vmem:[#allocation4 + $0x520] sm:$0xff]
    %v2505 = vld [vmem:[#allocation4 + $0x528] sm:$0xff]
    %v2506 = vld [vmem:[#allocation4 + $0x530] sm:$0xff]
    %v2507 = vld [vmem:[#allocation4 + $0x538] sm:$0xff]
    %v2508 = vld [vmem:[#allocation4 + $0x540] sm:$0xff]
    %v2509 = vld [vmem:[#allocation4 + $0x548] sm:$0xff]
    %v2510 = vld [vmem:[#allocation4 + $0x550] sm:$0xff]
    %v2511 = vld [vmem:[#allocation4 + $0x558] sm:$0xff]
    %v2512 = vld [vmem:[#allocation4 + $0x560] sm:$0xff]
    %v2513 = vld [vmem:[#allocation4 + $0x568] sm:$0xff]
    %v2514 = vld [vmem:[#allocation4 + $0x570] sm:$0xff]
    %v2515 = vld [vmem:[#allocation4 + $0x578] sm:$0xff]
    %v2516 = vld [vmem:[#allocation4 + $0x580] sm:$0xff]
    %v2517 = vld [vmem:[#allocation4 + $0x588] sm:$0xff]
    %v2518 = vld [vmem:[#allocation4 + $0x590] sm:$0xff]
    %v2519 = vld [vmem:[#allocation4 + $0x598] sm:$0xff]
    %v2520 = vld [vmem:[#allocation4 + $0x5a0] sm:$0xff]
    %v2521 = vld [vmem:[#allocation4 + $0x5a8] sm:$0xff]
    %v2522 = vld [vmem:[#allocation4 + $0x5b0] sm:$0xff]
    %v2523 = vld [vmem:[#allocation4 + $0x5b8] sm:$0xff]
    %v2524 = vld [vmem:[#allocation4 + $0x5c0] sm:$0xff]
    %v2525 = vld [vmem:[#allocation4 + $0x5c8] sm:$0xff]
    %v2526 = vld [vmem:[#allocation4 + $0x5d0] sm:$0xff]
    %v2527 = vld [vmem:[#allocation4 + $0x5d8] sm:$0xff]
    %v2528 = vld [vmem:[#allocation4 + $0x5e0] sm:$0xff]
    %v2529 = vld [vmem:[#allocation4 + $0x5e8] sm:$0xff]
    %v2530 = vld [vmem:[#allocation4 + $0x5f0] sm:$0xff]
    %v2531 = vld [vmem:[#allocation4 + $0x5f8] sm:$0xff]
    %v2532 = vld [vmem:[#allocation4 + $0x600] sm:$0xff]
    %v2533 = vld [vmem:[#allocation4 + $0x608] sm:$0xff]
    %v2534 = vld [vmem:[#allocation4 + $0x610] sm:$0xff]
    %v2535 = vld [vmem:[#allocation4 + $0x618] sm:$0xff]
    %v2536 = vld [vmem:[#allocation4 + $0x620] sm:$0xff]
    %v2537 = vld [vmem:[#allocation4 + $0x628] sm:$0xff]
    %v2538 = vld [vmem:[#allocation4 + $0x630] sm:$0xff]
    %v2539 = vld [vmem:[#allocation4 + $0x638] sm:$0xff]
    %v2540 = vld [vmem:[#allocation4 + $0x640] sm:$0xff]
    %v2541 = vld [vmem:[#allocation4 + $0x648] sm:$0xff]
    %v2542 = vld [vmem:[#allocation4 + $0x650] sm:$0xff]
    %v2543 = vld [vmem:[#allocation4 + $0x658] sm:$0xff]
    %v2544 = vld [vmem:[#allocation4 + $0x660] sm:$0xff]
    %v2545 = vld [vmem:[#allocation4 + $0x668] sm:$0xff]
    %v2546 = vld [vmem:[#allocation4 + $0x670] sm:$0xff]
    %v2547 = vld [vmem:[#allocation4 + $0x678] sm:$0xff]
    %v2548 = vld [vmem:[#allocation4 + $0x680] sm:$0xff]
    %v2549 = vld [vmem:[#allocation4 + $0x688] sm:$0xff]
    %v2550 = vld [vmem:[#allocation4 + $0x690] sm:$0xff]
    %v2551 = vld [vmem:[#allocation4 + $0x698] sm:$0xff]
    %v2552 = vld [vmem:[#allocation4 + $0x6a0] sm:$0xff]
    %v2553 = vld [vmem:[#allocation4 + $0x6a8] sm:$0xff]
    %v2554 = vld [vmem:[#allocation4 + $0x6b0] sm:$0xff]
    %v2555 = vld [vmem:[#allocation4 + $0x6b8] sm:$0xff]
    %v2556 = vld [vmem:[#allocation4 + $0x6c0] sm:$0xff]
    %v2557 = vld [vmem:[#allocation4 + $0x6c8] sm:$0xff]
    %v2558 = vld [vmem:[#allocation4 + $0x6d0] sm:$0xff]
    %v2559 = vld [vmem:[#allocation4 + $0x6d8] sm:$0xff]
    %v2560 = vld [vmem:[#allocation4 + $0x6e0] sm:$0xff]
    %v2561 = vld [vmem:[#allocation4 + $0x6e8] sm:$0xff]
    %v2562 = vld [vmem:[#allocation4 + $0x6f0] sm:$0xff]
    %v2563 = vld [vmem:[#allocation4 + $0x6f8] sm:$0xff]
    %v2564 = vld [vmem:[#allocation4 + $0x700] sm:$0xff]
    %v2565 = vld [vmem:[#allocation4 + $0x708] sm:$0xff]
    %v2566 = vld [vmem:[#allocation4 + $0x710] sm:$0xff]
    %v2567 = vld [vmem:[#allocation4 + $0x718] sm:$0xff]
    %v2568 = vld [vmem:[#allocation4 + $0x720] sm:$0xff]
    %v2569 = vld [vmem:[#allocation4 + $0x728] sm:$0xff]
    %v2570 = vld [vmem:[#allocation4 + $0x730] sm:$0xff]
    %v2571 = vld [vmem:[#allocation4 + $0x738] sm:$0xff]
    %v2572 = vld [vmem:[#allocation4 + $0x740] sm:$0xff]
    %v2573 = vld [vmem:[#allocation4 + $0x748] sm:$0xff]
    %v2574 = vld [vmem:[#allocation4 + $0x750] sm:$0xff]
    %v2575 = vld [vmem:[#allocation4 + $0x758] sm:$0xff]
    %v2576 = vld [vmem:[#allocation4 + $0x760] sm:$0xff]
    %v2577 = vld [vmem:[#allocation4 + $0x768] sm:$0xff]
    %v2578 = vld [vmem:[#allocation4 + $0x770] sm:$0xff]
    %v2579 = vld [vmem:[#allocation4 + $0x778] sm:$0xff]
    %v2580 = vld [vmem:[#allocation4 + $0x780] sm:$0xff]
    %v2581 = vld [vmem:[#allocation4 + $0x788] sm:$0xff]
    %v2582 = vld [vmem:[#allocation4 + $0x790] sm:$0xff]
    %v2583 = vld [vmem:[#allocation4 + $0x798] sm:$0xff]
    %v2584 = vld [vmem:[#allocation4 + $0x7a0] sm:$0xff]
    %v2585 = vld [vmem:[#allocation4 + $0x7a8] sm:$0xff]
    %v2586 = vld [vmem:[#allocation4 + $0x7b0] sm:$0xff]
    %v2587 = vld [vmem:[#allocation4 + $0x7b8] sm:$0xff]
    %v2588 = vld [vmem:[#allocation4 + $0x7c0] sm:$0xff]
    %v2589 = vld [vmem:[#allocation4 + $0x7c8] sm:$0xff]
    %v2590 = vld [vmem:[#allocation4 + $0x7d0] sm:$0xff]
    %v2591 = vld [vmem:[#allocation4 + $0x7d8] sm:$0xff]
    %v2592 = vld [vmem:[#allocation4 + $0x7e0] sm:$0xff]
    %v2593 = vld [vmem:[#allocation4 + $0x7e8] sm:$0xff]
    %v2594 = vld [vmem:[#allocation4 + $0x7f0] sm:$0xff]
    %v2595 = vld [vmem:[#allocation4 + $0x7f8] sm:$0xff]
    %v2596 = vld [vmem:[#allocation6] sm:$0xf]
    %v2598 = vlaneseq
    %v2599 = vshrl.u32 %v2598, 7
    %v2600 = vsub.s32 0, %v2599
    %v2601 = vrot.slane %v2596, %v2600
    %v2602 = vlaneseq
    %v2603 = vshrl.u32 %v2602, 7
    %v2604 = vsub.s32 1, %v2603
    %v2605 = vrot.slane %v2596, %v2604
    %v2606 = vlaneseq
    %v2607 = vshrl.u32 %v2606, 7
    %v2608 = vsub.s32 2, %v2607
    %v2609 = vrot.slane %v2596, %v2608
    %v2610 = vlaneseq
    %v2611 = vshrl.u32 %v2610, 7
    %v2612 = vsub.s32 3, %v2611
    %v2613 = vrot.slane %v2596, %v2612
    %v2874 = vunpack.c.l.b16 %v2340
    %v2875 = vunpack.c.h.b16 %v2340
    %v2876 = vunpack.c.l.b16 %v2341
    %v2877 = vunpack.c.h.b16 %v2341
    %v2878 = vunpack.c.l.b16 %v2342
    %v2879 = vunpack.c.h.b16 %v2342
    %v2880 = vunpack.c.l.b16 %v2343
    %v2881 = vunpack.c.h.b16 %v2343
    %v2882 = vunpack.c.l.b16 %v2344
    %v2883 = vunpack.c.h.b16 %v2344
    %v2884 = vunpack.c.l.b16 %v2345
    %v2885 = vunpack.c.h.b16 %v2345
    %v2886 = vunpack.c.l.b16 %v2346
    %v2887 = vunpack.c.h.b16 %v2346
    %v2888 = vunpack.c.l.b16 %v2347
    %v2889 = vunpack.c.h.b16 %v2347
    %v2890 = vunpack.c.l.b16 %v2348
    %v2891 = vunpack.c.h.b16 %v2348
    %v2892 = vunpack.c.l.b16 %v2349
    %v2893 = vunpack.c.h.b16 %v2349
    %v2894 = vunpack.c.l.b16 %v2350
    %v2895 = vunpack.c.h.b16 %v2350
    %v2896 = vunpack.c.l.b16 %v2351
    %v2897 = vunpack.c.h.b16 %v2351
    %v2898 = vunpack.c.l.b16 %v2352
    %v2899 = vunpack.c.h.b16 %v2352
    %v2900 = vunpack.c.l.b16 %v2353
    %v2901 = vunpack.c.h.b16 %v2353
    %v2902 = vunpack.c.l.b16 %v2354
    %v2903 = vunpack.c.h.b16 %v2354
    %v2904 = vunpack.c.l.b16 %v2355
    %v2905 = vunpack.c.h.b16 %v2355
    %v2906 = vunpack.c.l.b16 %v2356
    %v2907 = vunpack.c.h.b16 %v2356
    %v2908 = vunpack.c.l.b16 %v2357
    %v2909 = vunpack.c.h.b16 %v2357
    %v2910 = vunpack.c.l.b16 %v2358
    %v2911 = vunpack.c.h.b16 %v2358
    %v2912 = vunpack.c.l.b16 %v2359
    %v2913 = vunpack.c.h.b16 %v2359
    %v2914 = vunpack.c.l.b16 %v2360
    %v2915 = vunpack.c.h.b16 %v2360
    %v2916 = vunpack.c.l.b16 %v2361
    %v2917 = vunpack.c.h.b16 %v2361
    %v2918 = vunpack.c.l.b16 %v2362
    %v2919 = vunpack.c.h.b16 %v2362
    %v2920 = vunpack.c.l.b16 %v2363
    %v2921 = vunpack.c.h.b16 %v2363
    %v2922 = vunpack.c.l.b16 %v2364
    %v2923 = vunpack.c.h.b16 %v2364
    %v2924 = vunpack.c.l.b16 %v2365
    %v2925 = vunpack.c.h.b16 %v2365
    %v2926 = vunpack.c.l.b16 %v2366
    %v2927 = vunpack.c.h.b16 %v2366
    %v2928 = vunpack.c.l.b16 %v2367
    %v2929 = vunpack.c.h.b16 %v2367
    %v2930 = vunpack.c.l.b16 %v2368
    %v2931 = vunpack.c.h.b16 %v2368
    %v2932 = vunpack.c.l.b16 %v2369
    %v2933 = vunpack.c.h.b16 %v2369
    %v2934 = vunpack.c.l.b16 %v2370
    %v2935 = vunpack.c.h.b16 %v2370
    %v2936 = vunpack.c.l.b16 %v2371
    %v2937 = vunpack.c.h.b16 %v2371
    %v2938 = vunpack.c.l.b16 %v2372
    %v2939 = vunpack.c.h.b16 %v2372
    %v2940 = vunpack.c.l.b16 %v2373
    %v2941 = vunpack.c.h.b16 %v2373
    %v2942 = vunpack.c.l.b16 %v2374
    %v2943 = vunpack.c.h.b16 %v2374
    %v2944 = vunpack.c.l.b16 %v2375
    %v2945 = vunpack.c.h.b16 %v2375
    %v2946 = vunpack.c.l.b16 %v2376
    %v2947 = vunpack.c.h.b16 %v2376
    %v2948 = vunpack.c.l.b16 %v2377
    %v2949 = vunpack.c.h.b16 %v2377
    %v2950 = vunpack.c.l.b16 %v2378
    %v2951 = vunpack.c.h.b16 %v2378
    %v2952 = vunpack.c.l.b16 %v2379
    %v2953 = vunpack.c.h.b16 %v2379
    %v2954 = vunpack.c.l.b16 %v2380
    %v2955 = vunpack.c.h.b16 %v2380
    %v2956 = vunpack.c.l.b16 %v2381
    %v2957 = vunpack.c.h.b16 %v2381
    %v2958 = vunpack.c.l.b16 %v2382
    %v2959 = vunpack.c.h.b16 %v2382
    %v2960 = vunpack.c.l.b16 %v2383
    %v2961 = vunpack.c.h.b16 %v2383
    %v2962 = vunpack.c.l.b16 %v2384
    %v2963 = vunpack.c.h.b16 %v2384
    %v2964 = vunpack.c.l.b16 %v2385
    %v2965 = vunpack.c.h.b16 %v2385
    %v2966 = vunpack.c.l.b16 %v2386
    %v2967 = vunpack.c.h.b16 %v2386
    %v2968 = vunpack.c.l.b16 %v2387
    %v2969 = vunpack.c.h.b16 %v2387
    %v2970 = vunpack.c.l.b16 %v2388
    %v2971 = vunpack.c.h.b16 %v2388
    %v2972 = vunpack.c.l.b16 %v2389
    %v2973 = vunpack.c.h.b16 %v2389
    %v2974 = vunpack.c.l.b16 %v2390
    %v2975 = vunpack.c.h.b16 %v2390
    %v2976 = vunpack.c.l.b16 %v2391
    %v2977 = vunpack.c.h.b16 %v2391
    %v2978 = vunpack.c.l.b16 %v2392
    %v2979 = vunpack.c.h.b16 %v2392
    %v2980 = vunpack.c.l.b16 %v2393
    %v2981 = vunpack.c.h.b16 %v2393
    %v2982 = vunpack.c.l.b16 %v2394
    %v2983 = vunpack.c.h.b16 %v2394
    %v2984 = vunpack.c.l.b16 %v2395
    %v2985 = vunpack.c.h.b16 %v2395
    %v2986 = vunpack.c.l.b16 %v2396
    %v2987 = vunpack.c.h.b16 %v2396
    %v2988 = vunpack.c.l.b16 %v2397
    %v2989 = vunpack.c.h.b16 %v2397
    %v2990 = vunpack.c.l.b16 %v2398
    %v2991 = vunpack.c.h.b16 %v2398
    %v2992 = vunpack.c.l.b16 %v2399
    %v2993 = vunpack.c.h.b16 %v2399
    %v2994 = vunpack.c.l.b16 %v2400
    %v2995 = vunpack.c.h.b16 %v2400
    %v2996 = vunpack.c.l.b16 %v2401
    %v2997 = vunpack.c.h.b16 %v2401
    %v2998 = vunpack.c.l.b16 %v2402
    %v2999 = vunpack.c.h.b16 %v2402
    %v3000 = vunpack.c.l.b16 %v2403
    %v3001 = vunpack.c.h.b16 %v2403
    %v3002 = vunpack.c.l.b16 %v2404
    %v3003 = vunpack.c.h.b16 %v2404
    %v3004 = vunpack.c.l.b16 %v2405
    %v3005 = vunpack.c.h.b16 %v2405
    %v3006 = vunpack.c.l.b16 %v2406
    %v3007 = vunpack.c.h.b16 %v2406
    %v3008 = vunpack.c.l.b16 %v2407
    %v3009 = vunpack.c.h.b16 %v2407
    %v3010 = vunpack.c.l.b16 %v2408
    %v3011 = vunpack.c.h.b16 %v2408
    %v3012 = vunpack.c.l.b16 %v2409
    %v3013 = vunpack.c.h.b16 %v2409
    %v3014 = vunpack.c.l.b16 %v2410
    %v3015 = vunpack.c.h.b16 %v2410
    %v3016 = vunpack.c.l.b16 %v2411
    %v3017 = vunpack.c.h.b16 %v2411
    %v3018 = vunpack.c.l.b16 %v2412
    %v3019 = vunpack.c.h.b16 %v2412
    %v3020 = vunpack.c.l.b16 %v2413
    %v3021 = vunpack.c.h.b16 %v2413
    %v3022 = vunpack.c.l.b16 %v2414
    %v3023 = vunpack.c.h.b16 %v2414
    %v3024 = vunpack.c.l.b16 %v2415
    %v3025 = vunpack.c.h.b16 %v2415
    %v3026 = vunpack.c.l.b16 %v2416
    %v3027 = vunpack.c.h.b16 %v2416
    %v3028 = vunpack.c.l.b16 %v2417
    %v3029 = vunpack.c.h.b16 %v2417
    %v3030 = vunpack.c.l.b16 %v2418
    %v3031 = vunpack.c.h.b16 %v2418
    %v3032 = vunpack.c.l.b16 %v2419
    %v3033 = vunpack.c.h.b16 %v2419
    %v3034 = vunpack.c.l.b16 %v2420
    %v3035 = vunpack.c.h.b16 %v2420
    %v3036 = vunpack.c.l.b16 %v2421
    %v3037 = vunpack.c.h.b16 %v2421
    %v3038 = vunpack.c.l.b16 %v2422
    %v3039 = vunpack.c.h.b16 %v2422
    %v3040 = vunpack.c.l.b16 %v2423
    %v3041 = vunpack.c.h.b16 %v2423
    %v3042 = vunpack.c.l.b16 %v2424
    %v3043 = vunpack.c.h.b16 %v2424
    %v3044 = vunpack.c.l.b16 %v2425
    %v3045 = vunpack.c.h.b16 %v2425
    %v3046 = vunpack.c.l.b16 %v2426
    %v3047 = vunpack.c.h.b16 %v2426
    %v3048 = vunpack.c.l.b16 %v2427
    %v3049 = vunpack.c.h.b16 %v2427
    %v3050 = vunpack.c.l.b16 %v2428
    %v3051 = vunpack.c.h.b16 %v2428
    %v3052 = vunpack.c.l.b16 %v2429
    %v3053 = vunpack.c.h.b16 %v2429
    %v3054 = vunpack.c.l.b16 %v2430
    %v3055 = vunpack.c.h.b16 %v2430
    %v3056 = vunpack.c.l.b16 %v2431
    %v3057 = vunpack.c.h.b16 %v2431
    %v3058 = vunpack.c.l.b16 %v2432
    %v3059 = vunpack.c.h.b16 %v2432
    %v3060 = vunpack.c.l.b16 %v2433
    %v3061 = vunpack.c.h.b16 %v2433
    %v3062 = vunpack.c.l.b16 %v2434
    %v3063 = vunpack.c.h.b16 %v2434
    %v3064 = vunpack.c.l.b16 %v2435
    %v3065 = vunpack.c.h.b16 %v2435
    %v3066 = vunpack.c.l.b16 %v2436
    %v3067 = vunpack.c.h.b16 %v2436
    %v3068 = vunpack.c.l.b16 %v2437
    %v3069 = vunpack.c.h.b16 %v2437
    %v3070 = vunpack.c.l.b16 %v2438
    %v3071 = vunpack.c.h.b16 %v2438
    %v3072 = vunpack.c.l.b16 %v2439
    %v3073 = vunpack.c.h.b16 %v2439
    %v3074 = vunpack.c.l.b16 %v2440
    %v3075 = vunpack.c.h.b16 %v2440
    %v3076 = vunpack.c.l.b16 %v2441
    %v3077 = vunpack.c.h.b16 %v2441
    %v3078 = vunpack.c.l.b16 %v2442
    %v3079 = vunpack.c.h.b16 %v2442
    %v3080 = vunpack.c.l.b16 %v2443
    %v3081 = vunpack.c.h.b16 %v2443
    %v3082 = vunpack.c.l.b16 %v2444
    %v3083 = vunpack.c.h.b16 %v2444
    %v3084 = vunpack.c.l.b16 %v2445
    %v3085 = vunpack.c.h.b16 %v2445
    %v3086 = vunpack.c.l.b16 %v2446
    %v3087 = vunpack.c.h.b16 %v2446
    %v3088 = vunpack.c.l.b16 %v2447
    %v3089 = vunpack.c.h.b16 %v2447
    %v3090 = vunpack.c.l.b16 %v2448
    %v3091 = vunpack.c.h.b16 %v2448
    %v3092 = vunpack.c.l.b16 %v2449
    %v3093 = vunpack.c.h.b16 %v2449
    %v3094 = vunpack.c.l.b16 %v2450
    %v3095 = vunpack.c.h.b16 %v2450
    %v3096 = vunpack.c.l.b16 %v2451
    %v3097 = vunpack.c.h.b16 %v2451
    %v3098 = vunpack.c.l.b16 %v2452
    %v3099 = vunpack.c.h.b16 %v2452
    %v3100 = vunpack.c.l.b16 %v2453
    %v3101 = vunpack.c.h.b16 %v2453
    %v3102 = vunpack.c.l.b16 %v2454
    %v3103 = vunpack.c.h.b16 %v2454
    %v3104 = vunpack.c.l.b16 %v2455
    %v3105 = vunpack.c.h.b16 %v2455
    %v3106 = vunpack.c.l.b16 %v2456
    %v3107 = vunpack.c.h.b16 %v2456
    %v3108 = vunpack.c.l.b16 %v2457
    %v3109 = vunpack.c.h.b16 %v2457
    %v3110 = vunpack.c.l.b16 %v2458
    %v3111 = vunpack.c.h.b16 %v2458
    %v3112 = vunpack.c.l.b16 %v2459
    %v3113 = vunpack.c.h.b16 %v2459
    %v3114 = vunpack.c.l.b16 %v2460
    %v3115 = vunpack.c.h.b16 %v2460
    %v3116 = vunpack.c.l.b16 %v2461
    %v3117 = vunpack.c.h.b16 %v2461
    %v3118 = vunpack.c.l.b16 %v2462
    %v3119 = vunpack.c.h.b16 %v2462
    %v3120 = vunpack.c.l.b16 %v2463
    %v3121 = vunpack.c.h.b16 %v2463
    %v3122 = vunpack.c.l.b16 %v2464
    %v3123 = vunpack.c.h.b16 %v2464
    %v3124 = vunpack.c.l.b16 %v2465
    %v3125 = vunpack.c.h.b16 %v2465
    %v3126 = vunpack.c.l.b16 %v2466
    %v3127 = vunpack.c.h.b16 %v2466
    %v3128 = vunpack.c.l.b16 %v2467
    %v3129 = vunpack.c.h.b16 %v2467
    %v3130 = vunpack.c.l.b16 %v2468
    %v3131 = vunpack.c.h.b16 %v2468
    %v3132 = vunpack.c.l.b16 %v2469
    %v3133 = vunpack.c.h.b16 %v2469
    %v3134 = vunpack.c.l.b16 %v2470
    %v3135 = vunpack.c.h.b16 %v2470
    %v3136 = vunpack.c.l.b16 %v2471
    %v3137 = vunpack.c.h.b16 %v2471
    %v3138 = vunpack.c.l.b16 %v2472
    %v3139 = vunpack.c.h.b16 %v2472
    %v3140 = vunpack.c.l.b16 %v2473
    %v3141 = vunpack.c.h.b16 %v2473
    %v3142 = vunpack.c.l.b16 %v2474
    %v3143 = vunpack.c.h.b16 %v2474
    %v3144 = vunpack.c.l.b16 %v2475
    %v3145 = vunpack.c.h.b16 %v2475
    %v3146 = vunpack.c.l.b16 %v2476
    %v3147 = vunpack.c.h.b16 %v2476
    %v3148 = vunpack.c.l.b16 %v2477
    %v3149 = vunpack.c.h.b16 %v2477
    %v3150 = vunpack.c.l.b16 %v2478
    %v3151 = vunpack.c.h.b16 %v2478
    %v3152 = vunpack.c.l.b16 %v2479
    %v3153 = vunpack.c.h.b16 %v2479
    %v3154 = vunpack.c.l.b16 %v2480
    %v3155 = vunpack.c.h.b16 %v2480
    %v3156 = vunpack.c.l.b16 %v2481
    %v3157 = vunpack.c.h.b16 %v2481
    %v3158 = vunpack.c.l.b16 %v2482
    %v3159 = vunpack.c.h.b16 %v2482
    %v3160 = vunpack.c.l.b16 %v2483
    %v3161 = vunpack.c.h.b16 %v2483
    %v3162 = vunpack.c.l.b16 %v2484
    %v3163 = vunpack.c.h.b16 %v2484
    %v3164 = vunpack.c.l.b16 %v2485
    %v3165 = vunpack.c.h.b16 %v2485
    %v3166 = vunpack.c.l.b16 %v2486
    %v3167 = vunpack.c.h.b16 %v2486
    %v3168 = vunpack.c.l.b16 %v2487
    %v3169 = vunpack.c.h.b16 %v2487
    %v3170 = vunpack.c.l.b16 %v2488
    %v3171 = vunpack.c.h.b16 %v2488
    %v3172 = vunpack.c.l.b16 %v2489
    %v3173 = vunpack.c.h.b16 %v2489
    %v3174 = vunpack.c.l.b16 %v2490
    %v3175 = vunpack.c.h.b16 %v2490
    %v3176 = vunpack.c.l.b16 %v2491
    %v3177 = vunpack.c.h.b16 %v2491
    %v3178 = vunpack.c.l.b16 %v2492
    %v3179 = vunpack.c.h.b16 %v2492
    %v3180 = vunpack.c.l.b16 %v2493
    %v3181 = vunpack.c.h.b16 %v2493
    %v3182 = vunpack.c.l.b16 %v2494
    %v3183 = vunpack.c.h.b16 %v2494
    %v3184 = vunpack.c.l.b16 %v2495
    %v3185 = vunpack.c.h.b16 %v2495
    %v3186 = vunpack.c.l.b16 %v2496
    %v3187 = vunpack.c.h.b16 %v2496
    %v3188 = vunpack.c.l.b16 %v2497
    %v3189 = vunpack.c.h.b16 %v2497
    %v3190 = vunpack.c.l.b16 %v2498
    %v3191 = vunpack.c.h.b16 %v2498
    %v3192 = vunpack.c.l.b16 %v2499
    %v3193 = vunpack.c.h.b16 %v2499
    %v3194 = vunpack.c.l.b16 %v2500
    %v3195 = vunpack.c.h.b16 %v2500
    %v3196 = vunpack.c.l.b16 %v2501
    %v3197 = vunpack.c.h.b16 %v2501
    %v3198 = vunpack.c.l.b16 %v2502
    %v3199 = vunpack.c.h.b16 %v2502
    %v3200 = vunpack.c.l.b16 %v2503
    %v3201 = vunpack.c.h.b16 %v2503
    %v3202 = vunpack.c.l.b16 %v2504
    %v3203 = vunpack.c.h.b16 %v2504
    %v3204 = vunpack.c.l.b16 %v2505
    %v3205 = vunpack.c.h.b16 %v2505
    %v3206 = vunpack.c.l.b16 %v2506
    %v3207 = vunpack.c.h.b16 %v2506
    %v3208 = vunpack.c.l.b16 %v2507
    %v3209 = vunpack.c.h.b16 %v2507
    %v3210 = vunpack.c.l.b16 %v2508
    %v3211 = vunpack.c.h.b16 %v2508
    %v3212 = vunpack.c.l.b16 %v2509
    %v3213 = vunpack.c.h.b16 %v2509
    %v3214 = vunpack.c.l.b16 %v2510
    %v3215 = vunpack.c.h.b16 %v2510
    %v3216 = vunpack.c.l.b16 %v2511
    %v3217 = vunpack.c.h.b16 %v2511
    %v3218 = vunpack.c.l.b16 %v2512
    %v3219 = vunpack.c.h.b16 %v2512
    %v3220 = vunpack.c.l.b16 %v2513
    %v3221 = vunpack.c.h.b16 %v2513
    %v3222 = vunpack.c.l.b16 %v2514
    %v3223 = vunpack.c.h.b16 %v2514
    %v3224 = vunpack.c.l.b16 %v2515
    %v3225 = vunpack.c.h.b16 %v2515
    %v3226 = vunpack.c.l.b16 %v2516
    %v3227 = vunpack.c.h.b16 %v2516
    %v3228 = vunpack.c.l.b16 %v2517
    %v3229 = vunpack.c.h.b16 %v2517
    %v3230 = vunpack.c.l.b16 %v2518
    %v3231 = vunpack.c.h.b16 %v2518
    %v3232 = vunpack.c.l.b16 %v2519
    %v3233 = vunpack.c.h.b16 %v2519
    %v3234 = vunpack.c.l.b16 %v2520
    %v3235 = vunpack.c.h.b16 %v2520
    %v3236 = vunpack.c.l.b16 %v2521
    %v3237 = vunpack.c.h.b16 %v2521
    %v3238 = vunpack.c.l.b16 %v2522
    %v3239 = vunpack.c.h.b16 %v2522
    %v3240 = vunpack.c.l.b16 %v2523
    %v3241 = vunpack.c.h.b16 %v2523
    %v3242 = vunpack.c.l.b16 %v2524
    %v3243 = vunpack.c.h.b16 %v2524
    %v3244 = vunpack.c.l.b16 %v2525
    %v3245 = vunpack.c.h.b16 %v2525
    %v3246 = vunpack.c.l.b16 %v2526
    %v3247 = vunpack.c.h.b16 %v2526
    %v3248 = vunpack.c.l.b16 %v2527
    %v3249 = vunpack.c.h.b16 %v2527
    %v3250 = vunpack.c.l.b16 %v2528
    %v3251 = vunpack.c.h.b16 %v2528
    %v3252 = vunpack.c.l.b16 %v2529
    %v3253 = vunpack.c.h.b16 %v2529
    %v3254 = vunpack.c.l.b16 %v2530
    %v3255 = vunpack.c.h.b16 %v2530
    %v3256 = vunpack.c.l.b16 %v2531
    %v3257 = vunpack.c.h.b16 %v2531
    %v3258 = vunpack.c.l.b16 %v2532
    %v3259 = vunpack.c.h.b16 %v2532
    %v3260 = vunpack.c.l.b16 %v2533
    %v3261 = vunpack.c.h.b16 %v2533
    %v3262 = vunpack.c.l.b16 %v2534
    %v3263 = vunpack.c.h.b16 %v2534
    %v3264 = vunpack.c.l.b16 %v2535
    %v3265 = vunpack.c.h.b16 %v2535
    %v3266 = vunpack.c.l.b16 %v2536
    %v3267 = vunpack.c.h.b16 %v2536
    %v3268 = vunpack.c.l.b16 %v2537
    %v3269 = vunpack.c.h.b16 %v2537
    %v3270 = vunpack.c.l.b16 %v2538
    %v3271 = vunpack.c.h.b16 %v2538
    %v3272 = vunpack.c.l.b16 %v2539
    %v3273 = vunpack.c.h.b16 %v2539
    %v3274 = vunpack.c.l.b16 %v2540
    %v3275 = vunpack.c.h.b16 %v2540
    %v3276 = vunpack.c.l.b16 %v2541
    %v3277 = vunpack.c.h.b16 %v2541
    %v3278 = vunpack.c.l.b16 %v2542
    %v3279 = vunpack.c.h.b16 %v2542
    %v3280 = vunpack.c.l.b16 %v2543
    %v3281 = vunpack.c.h.b16 %v2543
    %v3282 = vunpack.c.l.b16 %v2544
    %v3283 = vunpack.c.h.b16 %v2544
    %v3284 = vunpack.c.l.b16 %v2545
    %v3285 = vunpack.c.h.b16 %v2545
    %v3286 = vunpack.c.l.b16 %v2546
    %v3287 = vunpack.c.h.b16 %v2546
    %v3288 = vunpack.c.l.b16 %v2547
    %v3289 = vunpack.c.h.b16 %v2547
    %v3290 = vunpack.c.l.b16 %v2548
    %v3291 = vunpack.c.h.b16 %v2548
    %v3292 = vunpack.c.l.b16 %v2549
    %v3293 = vunpack.c.h.b16 %v2549
    %v3294 = vunpack.c.l.b16 %v2550
    %v3295 = vunpack.c.h.b16 %v2550
    %v3296 = vunpack.c.l.b16 %v2551
    %v3297 = vunpack.c.h.b16 %v2551
    %v3298 = vunpack.c.l.b16 %v2552
    %v3299 = vunpack.c.h.b16 %v2552
    %v3300 = vunpack.c.l.b16 %v2553
    %v3301 = vunpack.c.h.b16 %v2553
    %v3302 = vunpack.c.l.b16 %v2554
    %v3303 = vunpack.c.h.b16 %v2554
    %v3304 = vunpack.c.l.b16 %v2555
    %v3305 = vunpack.c.h.b16 %v2555
    %v3306 = vunpack.c.l.b16 %v2556
    %v3307 = vunpack.c.h.b16 %v2556
    %v3308 = vunpack.c.l.b16 %v2557
    %v3309 = vunpack.c.h.b16 %v2557
    %v3310 = vunpack.c.l.b16 %v2558
    %v3311 = vunpack.c.h.b16 %v2558
    %v3312 = vunpack.c.l.b16 %v2559
    %v3313 = vunpack.c.h.b16 %v2559
    %v3314 = vunpack.c.l.b16 %v2560
    %v3315 = vunpack.c.h.b16 %v2560
    %v3316 = vunpack.c.l.b16 %v2561
    %v3317 = vunpack.c.h.b16 %v2561
    %v3318 = vunpack.c.l.b16 %v2562
    %v3319 = vunpack.c.h.b16 %v2562
    %v3320 = vunpack.c.l.b16 %v2563
    %v3321 = vunpack.c.h.b16 %v2563
    %v3322 = vunpack.c.l.b16 %v2564
    %v3323 = vunpack.c.h.b16 %v2564
    %v3324 = vunpack.c.l.b16 %v2565
    %v3325 = vunpack.c.h.b16 %v2565
    %v3326 = vunpack.c.l.b16 %v2566
    %v3327 = vunpack.c.h.b16 %v2566
    %v3328 = vunpack.c.l.b16 %v2567
    %v3329 = vunpack.c.h.b16 %v2567
    %v3330 = vunpack.c.l.b16 %v2568
    %v3331 = vunpack.c.h.b16 %v2568
    %v3332 = vunpack.c.l.b16 %v2569
    %v3333 = vunpack.c.h.b16 %v2569
    %v3334 = vunpack.c.l.b16 %v2570
    %v3335 = vunpack.c.h.b16 %v2570
    %v3336 = vunpack.c.l.b16 %v2571
    %v3337 = vunpack.c.h.b16 %v2571
    %v3338 = vunpack.c.l.b16 %v2572
    %v3339 = vunpack.c.h.b16 %v2572
    %v3340 = vunpack.c.l.b16 %v2573
    %v3341 = vunpack.c.h.b16 %v2573
    %v3342 = vunpack.c.l.b16 %v2574
    %v3343 = vunpack.c.h.b16 %v2574
    %v3344 = vunpack.c.l.b16 %v2575
    %v3345 = vunpack.c.h.b16 %v2575
    %v3346 = vunpack.c.l.b16 %v2576
    %v3347 = vunpack.c.h.b16 %v2576
    %v3348 = vunpack.c.l.b16 %v2577
    %v3349 = vunpack.c.h.b16 %v2577
    %v3350 = vunpack.c.l.b16 %v2578
    %v3351 = vunpack.c.h.b16 %v2578
    %v3352 = vunpack.c.l.b16 %v2579
    %v3353 = vunpack.c.h.b16 %v2579
    %v3354 = vunpack.c.l.b16 %v2580
    %v3355 = vunpack.c.h.b16 %v2580
    %v3356 = vunpack.c.l.b16 %v2581
    %v3357 = vunpack.c.h.b16 %v2581
    %v3358 = vunpack.c.l.b16 %v2582
    %v3359 = vunpack.c.h.b16 %v2582
    %v3360 = vunpack.c.l.b16 %v2583
    %v3361 = vunpack.c.h.b16 %v2583
    %v3362 = vunpack.c.l.b16 %v2584
    %v3363 = vunpack.c.h.b16 %v2584
    %v3364 = vunpack.c.l.b16 %v2585
    %v3365 = vunpack.c.h.b16 %v2585
    %v3366 = vunpack.c.l.b16 %v2586
    %v3367 = vunpack.c.h.b16 %v2586
    %v3368 = vunpack.c.l.b16 %v2587
    %v3369 = vunpack.c.h.b16 %v2587
    %v3370 = vunpack.c.l.b16 %v2588
    %v3371 = vunpack.c.h.b16 %v2588
    %v3372 = vunpack.c.l.b16 %v2589
    %v3373 = vunpack.c.h.b16 %v2589
    %v3374 = vunpack.c.l.b16 %v2590
    %v3375 = vunpack.c.h.b16 %v2590
    %v3376 = vunpack.c.l.b16 %v2591
    %v3377 = vunpack.c.h.b16 %v2591
    %v3378 = vunpack.c.l.b16 %v2592
    %v3379 = vunpack.c.h.b16 %v2592
    %v3380 = vunpack.c.l.b16 %v2593
    %v3381 = vunpack.c.h.b16 %v2593
    %v3382 = vunpack.c.l.b16 %v2594
    %v3383 = vunpack.c.h.b16 %v2594
    %v3384 = vunpack.c.l.b16 %v2595
    %v3385 = vunpack.c.h.b16 %v2595
    %v3386 = vpack.c.b16 %v2878, %v2874
    %v3387 = vpack.c.b16 %v2879, %v2875
    %v3388 = vpack.c.b16 %v2880, %v2876
    %v3389 = vpack.c.b16 %v2881, %v2877
    %v3390 = vpack.c.b16 %v2886, %v2882
    %v3391 = vpack.c.b16 %v2887, %v2883
    %v3392 = vpack.c.b16 %v2888, %v2884
    %v3393 = vpack.c.b16 %v2889, %v2885
    %v3394 = vpack.c.b16 %v2894, %v2890
    %v3395 = vpack.c.b16 %v2895, %v2891
    %v3396 = vpack.c.b16 %v2896, %v2892
    %v3397 = vpack.c.b16 %v2897, %v2893
    %v3398 = vpack.c.b16 %v2902, %v2898
    %v3399 = vpack.c.b16 %v2903, %v2899
    %v3400 = vpack.c.b16 %v2904, %v2900
    %v3401 = vpack.c.b16 %v2905, %v2901
    %v3402 = vpack.c.b16 %v2910, %v2906
    %v3403 = vpack.c.b16 %v2911, %v2907
    %v3404 = vpack.c.b16 %v2912, %v2908
    %v3405 = vpack.c.b16 %v2913, %v2909
    %v3406 = vpack.c.b16 %v2918, %v2914
    %v3407 = vpack.c.b16 %v2919, %v2915
    %v3408 = vpack.c.b16 %v2920, %v2916
    %v3409 = vpack.c.b16 %v2921, %v2917
    %v3410 = vpack.c.b16 %v2926, %v2922
    %v3411 = vpack.c.b16 %v2927, %v2923
    %v3412 = vpack.c.b16 %v2928, %v2924
    %v3413 = vpack.c.b16 %v2929, %v2925
    %v3414 = vpack.c.b16 %v2934, %v2930
    %v3415 = vpack.c.b16 %v2935, %v2931
    %v3416 = vpack.c.b16 %v2936, %v2932
    %v3417 = vpack.c.b16 %v2937, %v2933
    %v3418 = vpack.c.b16 %v2942, %v2938
    %v3419 = vpack.c.b16 %v2943, %v2939
    %v3420 = vpack.c.b16 %v2944, %v2940
    %v3421 = vpack.c.b16 %v2945, %v2941
    %v3422 = vpack.c.b16 %v2950, %v2946
    %v3423 = vpack.c.b16 %v2951, %v2947
    %v3424 = vpack.c.b16 %v2952, %v2948
    %v3425 = vpack.c.b16 %v2953, %v2949
    %v3426 = vpack.c.b16 %v2958, %v2954
    %v3427 = vpack.c.b16 %v2959, %v2955
    %v3428 = vpack.c.b16 %v2960, %v2956
    %v3429 = vpack.c.b16 %v2961, %v2957
    %v3430 = vpack.c.b16 %v2966, %v2962
    %v3431 = vpack.c.b16 %v2967, %v2963
    %v3432 = vpack.c.b16 %v2968, %v2964
    %v3433 = vpack.c.b16 %v2969, %v2965
    %v3434 = vpack.c.b16 %v2974, %v2970
    %v3435 = vpack.c.b16 %v2975, %v2971
    %v3436 = vpack.c.b16 %v2976, %v2972
    %v3437 = vpack.c.b16 %v2977, %v2973
    %v3438 = vpack.c.b16 %v2982, %v2978
    %v3439 = vpack.c.b16 %v2983, %v2979
    %v3440 = vpack.c.b16 %v2984, %v2980
    %v3441 = vpack.c.b16 %v2985, %v2981
    %v3442 = vpack.c.b16 %v2990, %v2986
    %v3443 = vpack.c.b16 %v2991, %v2987
    %v3444 = vpack.c.b16 %v2992, %v2988
    %v3445 = vpack.c.b16 %v2993, %v2989
    %v3446 = vpack.c.b16 %v2998, %v2994
    %v3447 = vpack.c.b16 %v2999, %v2995
    %v3448 = vpack.c.b16 %v3000, %v2996
    %v3449 = vpack.c.b16 %v3001, %v2997
    %v3450 = vpack.c.b16 %v3006, %v3002
    %v3451 = vpack.c.b16 %v3007, %v3003
    %v3452 = vpack.c.b16 %v3008, %v3004
    %v3453 = vpack.c.b16 %v3009, %v3005
    %v3454 = vpack.c.b16 %v3014, %v3010
    %v3455 = vpack.c.b16 %v3015, %v3011
    %v3456 = vpack.c.b16 %v3016, %v3012
    %v3457 = vpack.c.b16 %v3017, %v3013
    %v3458 = vpack.c.b16 %v3022, %v3018
    %v3459 = vpack.c.b16 %v3023, %v3019
    %v3460 = vpack.c.b16 %v3024, %v3020
    %v3461 = vpack.c.b16 %v3025, %v3021
    %v3462 = vpack.c.b16 %v3030, %v3026
    %v3463 = vpack.c.b16 %v3031, %v3027
    %v3464 = vpack.c.b16 %v3032, %v3028
    %v3465 = vpack.c.b16 %v3033, %v3029
    %v3466 = vpack.c.b16 %v3038, %v3034
    %v3467 = vpack.c.b16 %v3039, %v3035
    %v3468 = vpack.c.b16 %v3040, %v3036
    %v3469 = vpack.c.b16 %v3041, %v3037
    %v3470 = vpack.c.b16 %v3046, %v3042
    %v3471 = vpack.c.b16 %v3047, %v3043
    %v3472 = vpack.c.b16 %v3048, %v3044
    %v3473 = vpack.c.b16 %v3049, %v3045
    %v3474 = vpack.c.b16 %v3054, %v3050
    %v3475 = vpack.c.b16 %v3055, %v3051
    %v3476 = vpack.c.b16 %v3056, %v3052
    %v3477 = vpack.c.b16 %v3057, %v3053
    %v3478 = vpack.c.b16 %v3062, %v3058
    %v3479 = vpack.c.b16 %v3063, %v3059
    %v3480 = vpack.c.b16 %v3064, %v3060
    %v3481 = vpack.c.b16 %v3065, %v3061
    %v3482 = vpack.c.b16 %v3070, %v3066
    %v3483 = vpack.c.b16 %v3071, %v3067
    %v3484 = vpack.c.b16 %v3072, %v3068
    %v3485 = vpack.c.b16 %v3073, %v3069
    %v3486 = vpack.c.b16 %v3078, %v3074
    %v3487 = vpack.c.b16 %v3079, %v3075
    %v3488 = vpack.c.b16 %v3080, %v3076
    %v3489 = vpack.c.b16 %v3081, %v3077
    %v3490 = vpack.c.b16 %v3086, %v3082
    %v3491 = vpack.c.b16 %v3087, %v3083
    %v3492 = vpack.c.b16 %v3088, %v3084
    %v3493 = vpack.c.b16 %v3089, %v3085
    %v3494 = vpack.c.b16 %v3094, %v3090
    %v3495 = vpack.c.b16 %v3095, %v3091
    %v3496 = vpack.c.b16 %v3096, %v3092
    %v3497 = vpack.c.b16 %v3097, %v3093
    %v3498 = vpack.c.b16 %v3102, %v3098
    %v3499 = vpack.c.b16 %v3103, %v3099
    %v3500 = vpack.c.b16 %v3104, %v3100
    %v3501 = vpack.c.b16 %v3105, %v3101
    %v3502 = vpack.c.b16 %v3110, %v3106
    %v3503 = vpack.c.b16 %v3111, %v3107
    %v3504 = vpack.c.b16 %v3112, %v3108
    %v3505 = vpack.c.b16 %v3113, %v3109
    %v3506 = vpack.c.b16 %v3118, %v3114
    %v3507 = vpack.c.b16 %v3119, %v3115
    %v3508 = vpack.c.b16 %v3120, %v3116
    %v3509 = vpack.c.b16 %v3121, %v3117
    %v3510 = vpack.c.b16 %v3126, %v3122
    %v3511 = vpack.c.b16 %v3127, %v3123
    %v3512 = vpack.c.b16 %v3128, %v3124
    %v3513 = vpack.c.b16 %v3129, %v3125
    %v3514 = vpack.c.b16 %v3134, %v3130
    %v3515 = vpack.c.b16 %v3135, %v3131
    %v3516 = vpack.c.b16 %v3136, %v3132
    %v3517 = vpack.c.b16 %v3137, %v3133
    %v3518 = vpack.c.b16 %v3142, %v3138
    %v3519 = vpack.c.b16 %v3143, %v3139
    %v3520 = vpack.c.b16 %v3144, %v3140
    %v3521 = vpack.c.b16 %v3145, %v3141
    %v3522 = vpack.c.b16 %v3150, %v3146
    %v3523 = vpack.c.b16 %v3151, %v3147
    %v3524 = vpack.c.b16 %v3152, %v3148
    %v3525 = vpack.c.b16 %v3153, %v3149
    %v3526 = vpack.c.b16 %v3158, %v3154
    %v3527 = vpack.c.b16 %v3159, %v3155
    %v3528 = vpack.c.b16 %v3160, %v3156
    %v3529 = vpack.c.b16 %v3161, %v3157
    %v3530 = vpack.c.b16 %v3166, %v3162
    %v3531 = vpack.c.b16 %v3167, %v3163
    %v3532 = vpack.c.b16 %v3168, %v3164
    %v3533 = vpack.c.b16 %v3169, %v3165
    %v3534 = vpack.c.b16 %v3174, %v3170
    %v3535 = vpack.c.b16 %v3175, %v3171
    %v3536 = vpack.c.b16 %v3176, %v3172
    %v3537 = vpack.c.b16 %v3177, %v3173
    %v3538 = vpack.c.b16 %v3182, %v3178
    %v3539 = vpack.c.b16 %v3183, %v3179
    %v3540 = vpack.c.b16 %v3184, %v3180
    %v3541 = vpack.c.b16 %v3185, %v3181
    %v3542 = vpack.c.b16 %v3190, %v3186
    %v3543 = vpack.c.b16 %v3191, %v3187
    %v3544 = vpack.c.b16 %v3192, %v3188
    %v3545 = vpack.c.b16 %v3193, %v3189
    %v3546 = vpack.c.b16 %v3198, %v3194
    %v3547 = vpack.c.b16 %v3199, %v3195
    %v3548 = vpack.c.b16 %v3200, %v3196
    %v3549 = vpack.c.b16 %v3201, %v3197
    %v3550 = vpack.c.b16 %v3206, %v3202
    %v3551 = vpack.c.b16 %v3207, %v3203
    %v3552 = vpack.c.b16 %v3208, %v3204
    %v3553 = vpack.c.b16 %v3209, %v3205
    %v3554 = vpack.c.b16 %v3214, %v3210
    %v3555 = vpack.c.b16 %v3215, %v3211
    %v3556 = vpack.c.b16 %v3216, %v3212
    %v3557 = vpack.c.b16 %v3217, %v3213
    %v3558 = vpack.c.b16 %v3222, %v3218
    %v3559 = vpack.c.b16 %v3223, %v3219
    %v3560 = vpack.c.b16 %v3224, %v3220
    %v3561 = vpack.c.b16 %v3225, %v3221
    %v3562 = vpack.c.b16 %v3230, %v3226
    %v3563 = vpack.c.b16 %v3231, %v3227
    %v3564 = vpack.c.b16 %v3232, %v3228
    %v3565 = vpack.c.b16 %v3233, %v3229
    %v3566 = vpack.c.b16 %v3238, %v3234
    %v3567 = vpack.c.b16 %v3239, %v3235
    %v3568 = vpack.c.b16 %v3240, %v3236
    %v3569 = vpack.c.b16 %v3241, %v3237
    %v3570 = vpack.c.b16 %v3246, %v3242
    %v3571 = vpack.c.b16 %v3247, %v3243
    %v3572 = vpack.c.b16 %v3248, %v3244
    %v3573 = vpack.c.b16 %v3249, %v3245
    %v3574 = vpack.c.b16 %v3254, %v3250
    %v3575 = vpack.c.b16 %v3255, %v3251
    %v3576 = vpack.c.b16 %v3256, %v3252
    %v3577 = vpack.c.b16 %v3257, %v3253
    %v3578 = vpack.c.b16 %v3262, %v3258
    %v3579 = vpack.c.b16 %v3263, %v3259
    %v3580 = vpack.c.b16 %v3264, %v3260
    %v3581 = vpack.c.b16 %v3265, %v3261
    %v3582 = vpack.c.b16 %v3270, %v3266
    %v3583 = vpack.c.b16 %v3271, %v3267
    %v3584 = vpack.c.b16 %v3272, %v3268
    %v3585 = vpack.c.b16 %v3273, %v3269
    %v3586 = vpack.c.b16 %v3278, %v3274
    %v3587 = vpack.c.b16 %v3279, %v3275
    %v3588 = vpack.c.b16 %v3280, %v3276
    %v3589 = vpack.c.b16 %v3281, %v3277
    %v3590 = vpack.c.b16 %v3286, %v3282
    %v3591 = vpack.c.b16 %v3287, %v3283
    %v3592 = vpack.c.b16 %v3288, %v3284
    %v3593 = vpack.c.b16 %v3289, %v3285
    %v3594 = vpack.c.b16 %v3294, %v3290
    %v3595 = vpack.c.b16 %v3295, %v3291
    %v3596 = vpack.c.b16 %v3296, %v3292
    %v3597 = vpack.c.b16 %v3297, %v3293
    %v3598 = vpack.c.b16 %v3302, %v3298
    %v3599 = vpack.c.b16 %v3303, %v3299
    %v3600 = vpack.c.b16 %v3304, %v3300
    %v3601 = vpack.c.b16 %v3305, %v3301
    %v3602 = vpack.c.b16 %v3310, %v3306
    %v3603 = vpack.c.b16 %v3311, %v3307
    %v3604 = vpack.c.b16 %v3312, %v3308
    %v3605 = vpack.c.b16 %v3313, %v3309
    %v3606 = vpack.c.b16 %v3318, %v3314
    %v3607 = vpack.c.b16 %v3319, %v3315
    %v3608 = vpack.c.b16 %v3320, %v3316
    %v3609 = vpack.c.b16 %v3321, %v3317
    %v3610 = vpack.c.b16 %v3326, %v3322
    %v3611 = vpack.c.b16 %v3327, %v3323
    %v3612 = vpack.c.b16 %v3328, %v3324
    %v3613 = vpack.c.b16 %v3329, %v3325
    %v3614 = vpack.c.b16 %v3334, %v3330
    %v3615 = vpack.c.b16 %v3335, %v3331
    %v3616 = vpack.c.b16 %v3336, %v3332
    %v3617 = vpack.c.b16 %v3337, %v3333
    %v3618 = vpack.c.b16 %v3342, %v3338
    %v3619 = vpack.c.b16 %v3343, %v3339
    %v3620 = vpack.c.b16 %v3344, %v3340
    %v3621 = vpack.c.b16 %v3345, %v3341
    %v3622 = vpack.c.b16 %v3350, %v3346
    %v3623 = vpack.c.b16 %v3351, %v3347
    %v3624 = vpack.c.b16 %v3352, %v3348
    %v3625 = vpack.c.b16 %v3353, %v3349
    %v3626 = vpack.c.b16 %v3358, %v3354
    %v3627 = vpack.c.b16 %v3359, %v3355
    %v3628 = vpack.c.b16 %v3360, %v3356
    %v3629 = vpack.c.b16 %v3361, %v3357
    %v3630 = vpack.c.b16 %v3366, %v3362
    %v3631 = vpack.c.b16 %v3367, %v3363
    %v3632 = vpack.c.b16 %v3368, %v3364
    %v3633 = vpack.c.b16 %v3369, %v3365
    %v3634 = vpack.c.b16 %v3374, %v3370
    %v3635 = vpack.c.b16 %v3375, %v3371
    %v3636 = vpack.c.b16 %v3376, %v3372
    %v3637 = vpack.c.b16 %v3377, %v3373
    %v3638 = vpack.c.b16 %v3382, %v3378
    %v3639 = vpack.c.b16 %v3383, %v3379
    %v3640 = vpack.c.b16 %v3384, %v3380
    %v3641 = vpack.c.b16 %v3385, %v3381
    %3898 = vmatprep.subr.bf16.mxu0 %v3387
    %3899 = vmatpush1.bf16.msra.mxu0 %v3386
    %3900 = vmatprep.subr.bf16.mxu0 %v3391
    %3901 = vmatpush1.bf16.msra.mxu0 %v3390
    %3902 = vmatprep.subr.bf16.mxu0 %v3395
    %3903 = vmatpush1.bf16.msra.mxu0 %v3394
    %3904 = vmatprep.subr.bf16.mxu0 %v3399
    %3905 = vmatpush1.bf16.msra.mxu0 %v3398
    %3906 = vmatprep.subr.bf16.mxu0 %v3403
    %3907 = vmatpush1.bf16.msra.mxu0 %v3402
    %3908 = vmatprep.subr.bf16.mxu0 %v3407
    %3909 = vmatpush1.bf16.msra.mxu0 %v3406
    %3910 = vmatprep.subr.bf16.mxu0 %v3411
    %3911 = vmatpush1.bf16.msra.mxu0 %v3410
    %3912 = vmatprep.subr.bf16.mxu0 %v3415
    %3913 = vmatpush1.bf16.msra.mxu0 %v3414
    %3914 = vmatprep.subr.bf16.mxu0 %v3419
    %3915 = vmatpush1.bf16.msra.mxu0 %v3418
    %3916 = vmatprep.subr.bf16.mxu0 %v3423
    %3917 = vmatpush1.bf16.msra.mxu0 %v3422
    %3918 = vmatprep.subr.bf16.mxu0 %v3427
    %3919 = vmatpush1.bf16.msra.mxu0 %v3426
    %3920 = vmatprep.subr.bf16.mxu0 %v3431
    %3921 = vmatpush1.bf16.msra.mxu0 %v3430
    %3922 = vmatprep.subr.bf16.mxu0 %v3435
    %3923 = vmatpush1.bf16.msra.mxu0 %v3434
    %3924 = vmatprep.subr.bf16.mxu0 %v3439
    %3925 = vmatpush1.bf16.msra.mxu0 %v3438
    %3926 = vmatprep.subr.bf16.mxu0 %v3443
    %3927 = vmatpush1.bf16.msra.mxu0 %v3442
    %3928 = vmatprep.subr.bf16.mxu0 %v3447
    %3929 = vmatpush1.bf16.msra.mxu0 %v3446
    %3930 = vmatprep.mubr.bf16.mxu0 %v2317
    %3931 = vmatmul.mubr.bf16.gmra.mrb[0].mxu0 %v2316
    %v3932 = vpop.f32.mrb[0].mxu0
    %v3933 = vadd.f32 %v2601, %v3932
    %v3934 = vpop.f32.mrb[0].mxu0
    %v3935 = vadd.f32 %v2605, %v3934
    %v3936 = vpop.f32.mrb[0].mxu0
    %v3937 = vadd.f32 %v2601, %v3936
    %v3938 = vpop.f32.mrb[0].mxu0
    %v3939 = vadd.f32 %v2605, %v3938
    %3940 = vmatprep.mubr.bf16.mxu0 %v2325
    %3941 = vmatmul.mubr.bf16.gmra.mrb[0].mxu0 %v2324
    %v3942 = vpop.f32.mrb[0].mxu0
    %v3943 = vadd.f32 %v2601, %v3942
    %v3944 = vpop.f32.mrb[0].mxu0
    %v3945 = vadd.f32 %v2605, %v3944
    %v3946 = vpop.f32.mrb[0].mxu0
    %v3947 = vadd.f32 %v2601, %v3946
    %v3948 = vpop.f32.mrb[0].mxu0
    %v3949 = vadd.f32 %v2605, %v3948
    %3950 = vmatprep.mubr.bf16.mxu0 %v2333
    %3951 = vmatmul.mubr.bf16.gmra.mrb[0].mxu0 %v2332
    %v3952 = vpop.f32.mrb[0].mxu0
    %v3953 = vadd.f32 %v2601, %v3952
    %v3954 = vpop.f32.mrb[0].mxu0
    %v3955 = vadd.f32 %v2605, %v3954
    %v3956 = vpop.f32.mrb[0].mxu0
    %v3957 = vpop.f32.mrb[0].mxu0
    %3958 = vdwg.mxu0
    %3959 = vmatprep.subr.bf16.mxu0 %v3451
    %3960 = vmatpush1.bf16.msra.mxu0 %v3450
    %3961 = vmatprep.subr.bf16.mxu0 %v3455
    %3962 = vmatpush1.bf16.msra.mxu0 %v3454
    %3963 = vmatprep.subr.bf16.mxu0 %v3459
    %3964 = vmatpush1.bf16.msra.mxu0 %v3458
    %3965 = vmatprep.subr.bf16.mxu0 %v3463
    %3966 = vmatpush1.bf16.msra.mxu0 %v3462
    %3967 = vmatprep.subr.bf16.mxu0 %v3467
    %3968 = vmatpush1.bf16.msra.mxu0 %v3466
    %3969 = vmatprep.subr.bf16.mxu0 %v3471
    %3970 = vmatpush1.bf16.msra.mxu0 %v3470
    %3971 = vmatprep.subr.bf16.mxu0 %v3475
    %3972 = vmatpush1.bf16.msra.mxu0 %v3474
    %3973 = vmatprep.subr.bf16.mxu0 %v3479
    %3974 = vmatpush1.bf16.msra.mxu0 %v3478
    %3975 = vmatprep.subr.bf16.mxu0 %v3483
    %3976 = vmatpush1.bf16.msra.mxu0 %v3482
    %3977 = vmatprep.subr.bf16.mxu0 %v3487
    %3978 = vmatpush1.bf16.msra.mxu0 %v3486
    %3979 = vmatprep.subr.bf16.mxu0 %v3491
    %3980 = vmatpush1.bf16.msra.mxu0 %v3490
    %3981 = vmatprep.subr.bf16.mxu0 %v3495
    %3982 = vmatpush1.bf16.msra.mxu0 %v3494
    %3983 = vmatprep.subr.bf16.mxu0 %v3499
    %3984 = vmatpush1.bf16.msra.mxu0 %v3498
    %3985 = vmatprep.subr.bf16.mxu0 %v3503
    %3986 = vmatpush1.bf16.msra.mxu0 %v3502
    %3987 = vmatprep.subr.bf16.mxu0 %v3507
    %3988 = vmatpush1.bf16.msra.mxu0 %v3506
    %3989 = vmatprep.subr.bf16.mxu0 %v3511
    %3990 = vmatpush1.bf16.msra.mxu0 %v3510
    %3991 = vmatprep.mubr.bf16.mxu0 %v2319
    %3992 = vmatmul.mubr.bf16.gmra.mrb[0].mxu0 %v2318
    %v3993 = vpop.f32.mrb[0].mxu0
    %v3994 = vadd.f32 %v3933, %v3993
    %v3995 = vpop.f32.mrb[0].mxu0
    %v3996 = vadd.f32 %v3935, %v3995
    %v3997 = vpop.f32.mrb[0].mxu0
    %v3998 = vadd.f32 %v3937, %v3997
    %v3999 = vpop.f32.mrb[0].mxu0
    %v4000 = vadd.f32 %v3939, %v3999
    %4001 = vmatprep.mubr.bf16.mxu0 %v2327
    %4002 = vmatmul.mubr.bf16.gmra.mrb[0].mxu0 %v2326
    %v4003 = vpop.f32.mrb[0].mxu0
    %v4004 = vadd.f32 %v3943, %v4003
    %v4005 = vpop.f32.mrb[0].mxu0
    %v4006 = vadd.f32 %v3945, %v4005
    %v4007 = vpop.f32.mrb[0].mxu0
    %v4008 = vadd.f32 %v3947, %v4007
    %v4009 = vpop.f32.mrb[0].mxu0
    %v4010 = vadd.f32 %v3949, %v4009
    %4011 = vmatprep.mubr.bf16.mxu0 %v2335
    %4012 = vmatmul.mubr.bf16.gmra.mrb[0].mxu0 %v2334
    %v4013 = vpop.f32.mrb[0].mxu0
    %v4014 = vadd.f32 %v3953, %v4013
    %v4015 = vpop.f32.mrb[0].mxu0
    %v4016 = vadd.f32 %v3955, %v4015
    %v4017 = vpop.f32.mrb[0].mxu0
    %v4018 = vpop.f32.mrb[0].mxu0
    %4019 = vdwg.mxu0
    %4020 = vmatprep.subr.bf16.mxu0 %v3515
    %4021 = vmatpush1.bf16.msra.mxu0 %v3514
    %4022 = vmatprep.subr.bf16.mxu0 %v3519
    %4023 = vmatpush1.bf16.msra.mxu0 %v3518
    %4024 = vmatprep.subr.bf16.mxu0 %v3523
    %4025 = vmatpush1.bf16.msra.mxu0 %v3522
    %4026 = vmatprep.subr.bf16.mxu0 %v3527
    %4027 = vmatpush1.bf16.msra.mxu0 %v3526
    %4028 = vmatprep.subr.bf16.mxu0 %v3531
    %4029 = vmatpush1.bf16.msra.mxu0 %v3530
    %4030 = vmatprep.subr.bf16.mxu0 %v3535
    %4031 = vmatpush1.bf16.msra.mxu0 %v3534
    %4032 = vmatprep.subr.bf16.mxu0 %v3539
    %4033 = vmatpush1.bf16.msra.mxu0 %v3538
    %4034 = vmatprep.subr.bf16.mxu0 %v3543
    %4035 = vmatpush1.bf16.msra.mxu0 %v3542
    %4036 = vmatprep.subr.bf16.mxu0 %v3547
    %4037 = vmatpush1.bf16.msra.mxu0 %v3546
    %4038 = vmatprep.subr.bf16.mxu0 %v3551
    %4039 = vmatpush1.bf16.msra.mxu0 %v3550
    %4040 = vmatprep.subr.bf16.mxu0 %v3555
    %4041 = vmatpush1.bf16.msra.mxu0 %v3554
    %4042 = vmatprep.subr.bf16.mxu0 %v3559
    %4043 = vmatpush1.bf16.msra.mxu0 %v3558
    %4044 = vmatprep.subr.bf16.mxu0 %v3563
    %4045 = vmatpush1.bf16.msra.mxu0 %v3562
    %4046 = vmatprep.subr.bf16.mxu0 %v3567
    %4047 = vmatpush1.bf16.msra.mxu0 %v3566
    %4048 = vmatprep.subr.bf16.mxu0 %v3571
    %4049 = vmatpush1.bf16.msra.mxu0 %v3570
    %4050 = vmatprep.subr.bf16.mxu0 %v3575
    %4051 = vmatpush1.bf16.msra.mxu0 %v3574
    %4052 = vmatprep.mubr.bf16.mxu0 %v2321
    %4053 = vmatmul.mubr.bf16.gmra.mrb[0].mxu0 %v2320
    %v4054 = vpop.f32.mrb[0].mxu0
    %v4055 = vadd.f32 %v3994, %v4054
    %v4056 = vpop.f32.mrb[0].mxu0
    %v4057 = vadd.f32 %v3996, %v4056
    %v4058 = vpop.f32.mrb[0].mxu0
    %v4059 = vadd.f32 %v3998, %v4058
    %v4060 = vpop.f32.mrb[0].mxu0
    %v4061 = vadd.f32 %v4000, %v4060
    %4062 = vmatprep.mubr.bf16.mxu0 %v2329
    %4063 = vmatmul.mubr.bf16.gmra.mrb[0].mxu0 %v2328
    %v4064 = vpop.f32.mrb[0].mxu0
    %v4065 = vadd.f32 %v4004, %v4064
    %v4066 = vpop.f32.mrb[0].mxu0
    %v4067 = vadd.f32 %v4006, %v4066
    %v4068 = vpop.f32.mrb[0].mxu0
    %v4069 = vadd.f32 %v4008, %v4068
    %v4070 = vpop.f32.mrb[0].mxu0
    %v4071 = vadd.f32 %v4010, %v4070
    %4072 = vmatprep.mubr.bf16.mxu0 %v2337
    %4073 = vmatmul.mubr.bf16.gmra.mrb[0].mxu0 %v2336
    %v4074 = vpop.f32.mrb[0].mxu0
    %v4075 = vadd.f32 %v4014, %v4074
    %v4076 = vpop.f32.mrb[0].mxu0
    %v4077 = vadd.f32 %v4016, %v4076
    %v4078 = vpop.f32.mrb[0].mxu0
    %v4079 = vpop.f32.mrb[0].mxu0
    %4080 = vdwg.mxu0
    %4081 = vmatprep.subr.bf16.mxu0 %v3579
    %4082 = vmatpush1.bf16.msra.mxu0 %v3578
    %4083 = vmatprep.subr.bf16.mxu0 %v3583
    %4084 = vmatpush1.bf16.msra.mxu0 %v3582
    %4085 = vmatprep.subr.bf16.mxu0 %v3587
    %4086 = vmatpush1.bf16.msra.mxu0 %v3586
    %4087 = vmatprep.subr.bf16.mxu0 %v3591
    %4088 = vmatpush1.bf16.msra.mxu0 %v3590
    %4089 = vmatprep.subr.bf16.mxu0 %v3595
    %4090 = vmatpush1.bf16.msra.mxu0 %v3594
    %4091 = vmatprep.subr.bf16.mxu0 %v3599
    %4092 = vmatpush1.bf16.msra.mxu0 %v3598
    %4093 = vmatprep.subr.bf16.mxu0 %v3603
    %4094 = vmatpush1.bf16.msra.mxu0 %v3602
    %4095 = vmatprep.subr.bf16.mxu0 %v3607
    %4096 = vmatpush1.bf16.msra.mxu0 %v3606
    %4097 = vmatprep.subr.bf16.mxu0 %v3611
    %4098 = vmatpush1.bf16.msra.mxu0 %v3610
    %4099 = vmatprep.subr.bf16.mxu0 %v3615
    %4100 = vmatpush1.bf16.msra.mxu0 %v3614
    %4101 = vmatprep.subr.bf16.mxu0 %v3619
    %4102 = vmatpush1.bf16.msra.mxu0 %v3618
    %4103 = vmatprep.subr.bf16.mxu0 %v3623
    %4104 = vmatpush1.bf16.msra.mxu0 %v3622
    %4105 = vmatprep.subr.bf16.mxu0 %v3627
    %4106 = vmatpush1.bf16.msra.mxu0 %v3626
    %4107 = vmatprep.subr.bf16.mxu0 %v3631
    %4108 = vmatpush1.bf16.msra.mxu0 %v3630
    %4109 = vmatprep.subr.bf16.mxu0 %v3635
    %4110 = vmatpush1.bf16.msra.mxu0 %v3634
    %4111 = vmatprep.subr.bf16.mxu0 %v3639
    %4112 = vmatpush1.bf16.msra.mxu0 %v3638
    %4113 = vmatprep.mubr.bf16.mxu0 %v2323
    %4114 = vmatmul.mubr.bf16.gmra.mrb[0].mxu0 %v2322
    %v4115 = vpop.f32.mrb[0].mxu0
    %v4116 = vadd.f32 %v4055, %v4115
    %v4117 = vpop.f32.mrb[0].mxu0
    %v4118 = vadd.f32 %v4057, %v4117
    %v4119 = vpop.f32.mrb[0].mxu0
    %v4120 = vadd.f32 %v4059, %v4119
    %v4121 = vpop.f32.mrb[0].mxu0
    %v4122 = vadd.f32 %v4061, %v4121
    %4123 = vmatprep.mubr.bf16.mxu0 %v2331
    %4124 = vmatmul.mubr.bf16.gmra.mrb[0].mxu0 %v2330
    %v4125 = vpop.f32.mrb[0].mxu0
    %v4126 = vadd.f32 %v4065, %v4125
    %v4127 = vpop.f32.mrb[0].mxu0
    %v4128 = vadd.f32 %v4067, %v4127
    %v4129 = vpop.f32.mrb[0].mxu0
    %v4130 = vadd.f32 %v4069, %v4129
    %v4131 = vpop.f32.mrb[0].mxu0
    %v4132 = vadd.f32 %v4071, %v4131
    %4133 = vmatprep.mubr.bf16.mxu0 %v2339
    %4134 = vmatmul.mubr.bf16.gmra.mrb[0].mxu0 %v2338
    %v4135 = vpop.f32.mrb[0].mxu0
    %v4136 = vadd.f32 %v4075, %v4135
    %v4137 = vpop.f32.mrb[0].mxu0
    %v4138 = vadd.f32 %v4077, %v4137
    %v4139 = vpop.f32.mrb[0].mxu0
    %v4140 = vpop.f32.mrb[0].mxu0
    %4141 = vdwg.mxu0
    %4142 = vmatprep.subr.bf16.mxu0 %v3389
    %4143 = vmatpush1.bf16.msra.mxu0 %v3388
    %4144 = vmatprep.subr.bf16.mxu0 %v3393
    %4145 = vmatpush1.bf16.msra.mxu0 %v3392
    %4146 = vmatprep.subr.bf16.mxu0 %v3397
    %4147 = vmatpush1.bf16.msra.mxu0 %v3396
    %4148 = vmatprep.subr.bf16.mxu0 %v3401
    %4149 = vmatpush1.bf16.msra.mxu0 %v3400
    %4150 = vmatprep.subr.bf16.mxu0 %v3405
    %4151 = vmatpush1.bf16.msra.mxu0 %v3404
    %4152 = vmatprep.subr.bf16.mxu0 %v3409
    %4153 = vmatpush1.bf16.msra.mxu0 %v3408
    %4154 = vmatprep.subr.bf16.mxu0 %v3413
    %4155 = vmatpush1.bf16.msra.mxu0 %v3412
    %4156 = vmatprep.subr.bf16.mxu0 %v3417
    %4157 = vmatpush1.bf16.msra.mxu0 %v3416
    %4158 = vmatprep.subr.bf16.mxu0 %v3421
    %4159 = vmatpush1.bf16.msra.mxu0 %v3420
    %4160 = vmatprep.subr.bf16.mxu0 %v3425
    %4161 = vmatpush1.bf16.msra.mxu0 %v3424
    %4162 = vmatprep.subr.bf16.mxu0 %v3429
    %4163 = vmatpush1.bf16.msra.mxu0 %v3428
    %4164 = vmatprep.subr.bf16.mxu0 %v3433
    %4165 = vmatpush1.bf16.msra.mxu0 %v3432
    %4166 = vmatprep.subr.bf16.mxu0 %v3437
    %4167 = vmatpush1.bf16.msra.mxu0 %v3436
    %4168 = vmatprep.subr.bf16.mxu0 %v3441
    %4169 = vmatpush1.bf16.msra.mxu0 %v3440
    %4170 = vmatprep.subr.bf16.mxu0 %v3445
    %4171 = vmatpush1.bf16.msra.mxu0 %v3444
    %4172 = vmatprep.subr.bf16.mxu0 %v3449
    %4173 = vmatpush1.bf16.msra.mxu0 %v3448
    %4174 = vmatprep.mubr.bf16.mxu0 %v2317
    %4175 = vmatmul.mubr.bf16.gmra.mrb[0].mxu0 %v2316
    %v4176 = vpop.f32.mrb[0].mxu0
    %v4177 = vadd.f32 %v2609, %v4176
    %v4178 = vpop.f32.mrb[0].mxu0
    %v4179 = vadd.f32 %v2613, %v4178
    %v4180 = vpop.f32.mrb[0].mxu0
    %v4181 = vadd.f32 %v2609, %v4180
    %v4182 = vpop.f32.mrb[0].mxu0
    %v4183 = vadd.f32 %v2613, %v4182
    %4184 = vmatprep.mubr.bf16.mxu0 %v2325
    %4185 = vmatmul.mubr.bf16.gmra.mrb[0].mxu0 %v2324
    %v4186 = vpop.f32.mrb[0].mxu0
    %v4187 = vadd.f32 %v2609, %v4186
    %v4188 = vpop.f32.mrb[0].mxu0
    %v4189 = vadd.f32 %v2613, %v4188
    %v4190 = vpop.f32.mrb[0].mxu0
    %v4191 = vadd.f32 %v2609, %v4190
    %v4192 = vpop.f32.mrb[0].mxu0
    %v4193 = vadd.f32 %v2613, %v4192
    %4194 = vmatprep.mubr.bf16.mxu0 %v2333
    %4195 = vmatmul.mubr.bf16.gmra.mrb[0].mxu0 %v2332
    %v4196 = vpop.f32.mrb[0].mxu0
    %v4197 = vadd.f32 %v2609, %v4196
    %v4198 = vpop.f32.mrb[0].mxu0
    %v4199 = vadd.f32 %v2613, %v4198
    %v4200 = vpop.f32.mrb[0].mxu0
    %v4201 = vpop.f32.mrb[0].mxu0
    %4202 = vdwg.mxu0
    %4203 = vmatprep.subr.bf16.mxu0 %v3453
    %4204 = vmatpush1.bf16.msra.mxu0 %v3452
    %4205 = vmatprep.subr.bf16.mxu0 %v3457
    %4206 = vmatpush1.bf16.msra.mxu0 %v3456
    %4207 = vmatprep.subr.bf16.mxu0 %v3461
    %4208 = vmatpush1.bf16.msra.mxu0 %v3460
    %4209 = vmatprep.subr.bf16.mxu0 %v3465
    %4210 = vmatpush1.bf16.msra.mxu0 %v3464
    %4211 = vmatprep.subr.bf16.mxu0 %v3469
    %4212 = vmatpush1.bf16.msra.mxu0 %v3468
    %4213 = vmatprep.subr.bf16.mxu0 %v3473
    %4214 = vmatpush1.bf16.msra.mxu0 %v3472
    %4215 = vmatprep.subr.bf16.mxu0 %v3477
    %4216 = vmatpush1.bf16.msra.mxu0 %v3476
    %4217 = vmatprep.subr.bf16.mxu0 %v3481
    %4218 = vmatpush1.bf16.msra.mxu0 %v3480
    %4219 = vmatprep.subr.bf16.mxu0 %v3485
    %4220 = vmatpush1.bf16.msra.mxu0 %v3484
    %4221 = vmatprep.subr.bf16.mxu0 %v3489
    %4222 = vmatpush1.bf16.msra.mxu0 %v3488
    %4223 = vmatprep.subr.bf16.mxu0 %v3493
    %4224 = vmatpush1.bf16.msra.mxu0 %v3492
    %4225 = vmatprep.subr.bf16.mxu0 %v3497
    %4226 = vmatpush1.bf16.msra.mxu0 %v3496
    %4227 = vmatprep.subr.bf16.mxu0 %v3501
    %4228 = vmatpush1.bf16.msra.mxu0 %v3500
    %4229 = vmatprep.subr.bf16.mxu0 %v3505
    %4230 = vmatpush1.bf16.msra.mxu0 %v3504
    %4231 = vmatprep.subr.bf16.mxu0 %v3509
    %4232 = vmatpush1.bf16.msra.mxu0 %v3508
    %4233 = vmatprep.subr.bf16.mxu0 %v3513
    %4234 = vmatpush1.bf16.msra.mxu0 %v3512
    %4235 = vmatprep.mubr.bf16.mxu0 %v2319
    %4236 = vmatmul.mubr.bf16.gmra.mrb[0].mxu0 %v2318
    %v4237 = vpop.f32.mrb[0].mxu0
    %v4238 = vadd.f32 %v4177, %v4237
    %v4239 = vpop.f32.mrb[0].mxu0
    %v4240 = vadd.f32 %v4179, %v4239
    %v4241 = vpop.f32.mrb[0].mxu0
    %v4242 = vadd.f32 %v4181, %v4241
    %v4243 = vpop.f32.mrb[0].mxu0
    %v4244 = vadd.f32 %v4183, %v4243
    %4245 = vmatprep.mubr.bf16.mxu0 %v2327
    %4246 = vmatmul.mubr.bf16.gmra.mrb[0].mxu0 %v2326
    %v4247 = vpop.f32.mrb[0].mxu0
    %v4248 = vadd.f32 %v4187, %v4247
    %v4249 = vpop.f32.mrb[0].mxu0
    %v4250 = vadd.f32 %v4189, %v4249
    %v4251 = vpop.f32.mrb[0].mxu0
    %v4252 = vadd.f32 %v4191, %v4251
    %v4253 = vpop.f32.mrb[0].mxu0
    %v4254 = vadd.f32 %v4193, %v4253
    %4255 = vmatprep.mubr.bf16.mxu0 %v2335
    %4256 = vmatmul.mubr.bf16.gmra.mrb[0].mxu0 %v2334
    %v4257 = vpop.f32.mrb[0].mxu0
    %v4258 = vadd.f32 %v4197, %v4257
    %v4259 = vpop.f32.mrb[0].mxu0
    %v4260 = vadd.f32 %v4199, %v4259
    %v4261 = vpop.f32.mrb[0].mxu0
    %v4262 = vpop.f32.mrb[0].mxu0
    %4263 = vdwg.mxu0
    %4264 = vmatprep.subr.bf16.mxu0 %v3517
    %4265 = vmatpush1.bf16.msra.mxu0 %v3516
    %4266 = vmatprep.subr.bf16.mxu0 %v3521
    %4267 = vmatpush1.bf16.msra.mxu0 %v3520
    %4268 = vmatprep.subr.bf16.mxu0 %v3525
    %4269 = vmatpush1.bf16.msra.mxu0 %v3524
    %4270 = vmatprep.subr.bf16.mxu0 %v3529
    %4271 = vmatpush1.bf16.msra.mxu0 %v3528
    %4272 = vmatprep.subr.bf16.mxu0 %v3533
    %4273 = vmatpush1.bf16.msra.mxu0 %v3532
    %4274 = vmatprep.subr.bf16.mxu0 %v3537
    %4275 = vmatpush1.bf16.msra.mxu0 %v3536
    %4276 = vmatprep.subr.bf16.mxu0 %v3541
    %4277 = vmatpush1.bf16.msra.mxu0 %v3540
    %4278 = vmatprep.subr.bf16.mxu0 %v3545
    %4279 = vmatpush1.bf16.msra.mxu0 %v3544
    %4280 = vmatprep.subr.bf16.mxu0 %v3549
    %4281 = vmatpush1.bf16.msra.mxu0 %v3548
    %4282 = vmatprep.subr.bf16.mxu0 %v3553
    %4283 = vmatpush1.bf16.msra.mxu0 %v3552
    %4284 = vmatprep.subr.bf16.mxu0 %v3557
    %4285 = vmatpush1.bf16.msra.mxu0 %v3556
    %4286 = vmatprep.subr.bf16.mxu0 %v3561
    %4287 = vmatpush1.bf16.msra.mxu0 %v3560
    %4288 = vmatprep.subr.bf16.mxu0 %v3565
    %4289 = vmatpush1.bf16.msra.mxu0 %v3564
    %4290 = vmatprep.subr.bf16.mxu0 %v3569
    %4291 = vmatpush1.bf16.msra.mxu0 %v3568
    %4292 = vmatprep.subr.bf16.mxu0 %v3573
    %4293 = vmatpush1.bf16.msra.mxu0 %v3572
    %4294 = vmatprep.subr.bf16.mxu0 %v3577
    %4295 = vmatpush1.bf16.msra.mxu0 %v3576
    %4296 = vmatprep.mubr.bf16.mxu0 %v2321
    %4297 = vmatmul.mubr.bf16.gmra.mrb[0].mxu0 %v2320
    %v4298 = vpop.f32.mrb[0].mxu0
    %v4299 = vadd.f32 %v4238, %v4298
    %v4300 = vpop.f32.mrb[0].mxu0
    %v4301 = vadd.f32 %v4240, %v4300
    %v4302 = vpop.f32.mrb[0].mxu0
    %v4303 = vadd.f32 %v4242, %v4302
    %v4304 = vpop.f32.mrb[0].mxu0
    %v4305 = vadd.f32 %v4244, %v4304
    %4306 = vmatprep.mubr.bf16.mxu0 %v2329
    %4307 = vmatmul.mubr.bf16.gmra.mrb[0].mxu0 %v2328
    %v4308 = vpop.f32.mrb[0].mxu0
    %v4309 = vadd.f32 %v4248, %v4308
    %v4310 = vpop.f32.mrb[0].mxu0
    %v4311 = vadd.f32 %v4250, %v4310
    %v4312 = vpop.f32.mrb[0].mxu0
    %v4313 = vadd.f32 %v4252, %v4312
    %v4314 = vpop.f32.mrb[0].mxu0
    %v4315 = vadd.f32 %v4254, %v4314
    %4316 = vmatprep.mubr.bf16.mxu0 %v2337
    %4317 = vmatmul.mubr.bf16.gmra.mrb[0].mxu0 %v2336
    %v4318 = vpop.f32.mrb[0].mxu0
    %v4319 = vadd.f32 %v4258, %v4318
    %v4320 = vpop.f32.mrb[0].mxu0
    %v4321 = vadd.f32 %v4260, %v4320
    %v4322 = vpop.f32.mrb[0].mxu0
    %v4323 = vpop.f32.mrb[0].mxu0
    %4324 = vdwg.mxu0
    %4325 = vmatprep.subr.bf16.mxu0 %v3581
    %4326 = vmatpush1.bf16.msra.mxu0 %v3580
    %4327 = vmatprep.subr.bf16.mxu0 %v3585
    %4328 = vmatpush1.bf16.msra.mxu0 %v3584
    %4329 = vmatprep.subr.bf16.mxu0 %v3589
    %4330 = vmatpush1.bf16.msra.mxu0 %v3588
    %4331 = vmatprep.subr.bf16.mxu0 %v3593
    %4332 = vmatpush1.bf16.msra.mxu0 %v3592
    %4333 = vmatprep.subr.bf16.mxu0 %v3597
    %4334 = vmatpush1.bf16.msra.mxu0 %v3596
    %4335 = vmatprep.subr.bf16.mxu0 %v3601
    %4336 = vmatpush1.bf16.msra.mxu0 %v3600
    %4337 = vmatprep.subr.bf16.mxu0 %v3605
    %4338 = vmatpush1.bf16.msra.mxu0 %v3604
    %4339 = vmatprep.subr.bf16.mxu0 %v3609
    %4340 = vmatpush1.bf16.msra.mxu0 %v3608
    %4341 = vmatprep.subr.bf16.mxu0 %v3613
    %4342 = vmatpush1.bf16.msra.mxu0 %v3612
    %4343 = vmatprep.subr.bf16.mxu0 %v3617
    %4344 = vmatpush1.bf16.msra.mxu0 %v3616
    %4345 = vmatprep.subr.bf16.mxu0 %v3621
    %4346 = vmatpush1.bf16.msra.mxu0 %v3620
    %4347 = vmatprep.subr.bf16.mxu0 %v3625
    %4348 = vmatpush1.bf16.msra.mxu0 %v3624
    %4349 = vmatprep.subr.bf16.mxu0 %v3629
    %4350 = vmatpush1.bf16.msra.mxu0 %v3628
    %4351 = vmatprep.subr.bf16.mxu0 %v3633
    %4352 = vmatpush1.bf16.msra.mxu0 %v3632
    %4353 = vmatprep.subr.bf16.mxu0 %v3637
    %4354 = vmatpush1.bf16.msra.mxu0 %v3636
    %4355 = vmatprep.subr.bf16.mxu0 %v3641
    %4356 = vmatpush1.bf16.msra.mxu0 %v3640
    %4357 = vmatprep.mubr.bf16.mxu0 %v2323
    %4358 = vmatmul.mubr.bf16.gmra.mrb[0].mxu0 %v2322
    %v4359 = vpop.f32.mrb[0].mxu0
    %v4360 = vadd.f32 %v4299, %v4359
    %v4361 = vpop.f32.mrb[0].mxu0
    %v4362 = vadd.f32 %v4301, %v4361
    %v4363 = vpop.f32.mrb[0].mxu0
    %v4364 = vadd.f32 %v4303, %v4363
    %v4365 = vpop.f32.mrb[0].mxu0
    %v4366 = vadd.f32 %v4305, %v4365
    %4367 = vmatprep.mubr.bf16.mxu0 %v2331
    %4368 = vmatmul.mubr.bf16.gmra.mrb[0].mxu0 %v2330
    %v4369 = vpop.f32.mrb[0].mxu0
    %v4370 = vadd.f32 %v4309, %v4369
    %v4371 = vpop.f32.mrb[0].mxu0
    %v4372 = vadd.f32 %v4311, %v4371
    %v4373 = vpop.f32.mrb[0].mxu0
    %v4374 = vadd.f32 %v4313, %v4373
    %v4375 = vpop.f32.mrb[0].mxu0
    %v4376 = vadd.f32 %v4315, %v4375
    %4377 = vmatprep.mubr.bf16.mxu0 %v2339
    %4378 = vmatmul.mubr.bf16.gmra.mrb[0].mxu0 %v2338
    %v4379 = vpop.f32.mrb[0].mxu0
    %v4380 = vadd.f32 %v4319, %v4379
    %v4381 = vpop.f32.mrb[0].mxu0
    %v4382 = vadd.f32 %v4321, %v4381
    %v4383 = vpop.f32.mrb[0].mxu0
    %v4384 = vpop.f32.mrb[0].mxu0
    %4385 = vdwg.mxu0
    %v4386 = vmax.f32 %v4116, 0.0
    %v4387 = vmax.f32 %v4118, 0.0
    %v4388 = vmax.f32 %v4360, 0.0
    %v4389 = vmax.f32 %v4362, 0.0
    %v4390 = vmax.f32 %v4120, 0.0
    %v4391 = vmax.f32 %v4122, 0.0
    %v4392 = vmax.f32 %v4364, 0.0
    %v4393 = vmax.f32 %v4366, 0.0
    %v4394 = vmax.f32 %v4126, 0.0
    %v4395 = vmax.f32 %v4128, 0.0
    %v4396 = vmax.f32 %v4370, 0.0
    %v4397 = vmax.f32 %v4372, 0.0
    %v4398 = vmax.f32 %v4130, 0.0
    %v4399 = vmax.f32 %v4132, 0.0
    %v4400 = vmax.f32 %v4374, 0.0
    %v4401 = vmax.f32 %v4376, 0.0
    %v4402 = vmax.f32 %v4136, 0.0
    %v4403 = vmax.f32 %v4138, 0.0
    %v4404 = vmax.f32 %v4380, 0.0
    %v4405 = vmax.f32 %v4382, 0.0
    %v4406 = vsel %vm2271, %v4386, %v4388
    %v4407 = vsel %vm2271, %v4387, %v4389
    %v4408 = vsel %vm2272, %v4390, %v4392
    %v4409 = vsel %vm2272, %v4391, %v4393
    %v4410 = vsel %vm2273, %v4394, %v4396
    %v4411 = vsel %vm2273, %v4395, %v4397
    %v4412 = vsel %vm2274, %v4398, %v4400
    %v4413 = vsel %vm2274, %v4399, %v4401
    %v4414 = vsel %vm2275, %v4402, %v4404
    %v4415 = vsel %vm2275, %v4403, %v4405
    %v4416 = vpack.c.bf16 %v4408, %v4406
    %v4417 = vpack.c.bf16 %v4409, %v4407
    %v4418 = vpack.c.bf16 %v4412, %v4410
    %v4419 = vpack.c.bf16 %v4413, %v4411
    %v4420 = vpack.c.bf16 %v4414, %v4414
    %v4421 = vpack.c.bf16 %v4415, %v4415
    %v4422 = vld [vmem:[#allocation7] sm:$0xff]
    %v4423 = vld [vmem:[#allocation7 + $0x8] sm:$0xff]
    %v4424 = vld [vmem:[#allocation7 + $0x10] sm:$0xff]
    %v4425 = vld [vmem:[#allocation7 + $0x18] sm:$0xff]
    %v4426 = vld [vmem:[#allocation7 + $0x20] sm:$0xff]
    %v4427 = vld [vmem:[#allocation7 + $0x28] sm:$0xff]
    %v4428 = vld [vmem:[#allocation7 + $0x30] sm:$0xff]
    %v4429 = vld [vmem:[#allocation7 + $0x38] sm:$0xff]
    %v4430 = vld [vmem:[#allocation7 + $0x40] sm:$0xff]
    %v4431 = vld [vmem:[#allocation7 + $0x48] sm:$0xff]
    %v4432 = vld [vmem:[#allocation7 + $0x50] sm:$0xff]
    %v4433 = vld [vmem:[#allocation7 + $0x58] sm:$0xff]
    %v4434 = vld [vmem:[#allocation7 + $0x60] sm:$0xff]
    %v4435 = vld [vmem:[#allocation7 + $0x68] sm:$0xff]
    %v4436 = vld [vmem:[#allocation7 + $0x70] sm:$0xff]
    %v4437 = vld [vmem:[#allocation7 + $0x78] sm:$0xff]
    %v4438 = vld [vmem:[#allocation7 + $0x80] sm:$0xff]
    %v4439 = vld [vmem:[#allocation7 + $0x88] sm:$0xff]
    %v4440 = vld [vmem:[#allocation7 + $0x90] sm:$0xff]
    %v4441 = vld [vmem:[#allocation7 + $0x98] sm:$0xff]
    %v4442 = vld [vmem:[#allocation7 + $0xa0] sm:$0xff]
    %v4443 = vld [vmem:[#allocation7 + $0xa8] sm:$0xff]
    %v4444 = vld [vmem:[#allocation7 + $0xb0] sm:$0xff]
    %v4445 = vld [vmem:[#allocation7 + $0xb8] sm:$0xff]
    %v4446 = vld [vmem:[#allocation7 + $0xc0] sm:$0xff]
    %v4447 = vld [vmem:[#allocation7 + $0xc8] sm:$0xff]
    %v4448 = vld [vmem:[#allocation7 + $0xd0] sm:$0xff]
    %v4449 = vld [vmem:[#allocation7 + $0xd8] sm:$0xff]
    %v4450 = vld [vmem:[#allocation7 + $0xe0] sm:$0xff]
    %v4451 = vld [vmem:[#allocation7 + $0xe8] sm:$0xff]
    %v4452 = vld [vmem:[#allocation7 + $0xf0] sm:$0xff]
    %v4453 = vld [vmem:[#allocation7 + $0xf8] sm:$0xff]
    %v4454 = vld [vmem:[#allocation9] sm:$0x3]
    %v4456 = vlaneseq
    %v4457 = vshrl.u32 %v4456, 7
    %v4458 = vsub.s32 0, %v4457
    %v4459 = vrot.slane %v4454, %v4458
    %v4460 = vlaneseq
    %v4461 = vshrl.u32 %v4460, 7
    %v4462 = vsub.s32 1, %v4461
    %v4463 = vrot.slane %v4454, %v4462
    %v4498 = vunpack.c.l.b16 %v4422
    %v4499 = vunpack.c.h.b16 %v4422
    %v4500 = vunpack.c.l.b16 %v4423
    %v4501 = vunpack.c.h.b16 %v4423
    %v4502 = vunpack.c.l.b16 %v4424
    %v4503 = vunpack.c.h.b16 %v4424
    %v4504 = vunpack.c.l.b16 %v4425
    %v4505 = vunpack.c.h.b16 %v4425
    %v4506 = vunpack.c.l.b16 %v4426
    %v4507 = vunpack.c.h.b16 %v4426
    %v4508 = vunpack.c.l.b16 %v4427
    %v4509 = vunpack.c.h.b16 %v4427
    %v4510 = vunpack.c.l.b16 %v4428
    %v4511 = vunpack.c.h.b16 %v4428
    %v4512 = vunpack.c.l.b16 %v4429
    %v4513 = vunpack.c.h.b16 %v4429
    %v4514 = vunpack.c.l.b16 %v4430
    %v4515 = vunpack.c.h.b16 %v4430
    %v4516 = vunpack.c.l.b16 %v4431
    %v4517 = vunpack.c.h.b16 %v4431
    %v4518 = vunpack.c.l.b16 %v4432
    %v4519 = vunpack.c.h.b16 %v4432
    %v4520 = vunpack.c.l.b16 %v4433
    %v4521 = vunpack.c.h.b16 %v4433
    %v4522 = vunpack.c.l.b16 %v4434
    %v4523 = vunpack.c.h.b16 %v4434
    %v4524 = vunpack.c.l.b16 %v4435
    %v4525 = vunpack.c.h.b16 %v4435
    %v4526 = vunpack.c.l.b16 %v4436
    %v4527 = vunpack.c.h.b16 %v4436
    %v4528 = vunpack.c.l.b16 %v4437
    %v4529 = vunpack.c.h.b16 %v4437
    %v4530 = vunpack.c.l.b16 %v4438
    %v4531 = vunpack.c.h.b16 %v4438
    %v4532 = vunpack.c.l.b16 %v4439
    %v4533 = vunpack.c.h.b16 %v4439
    %v4534 = vunpack.c.l.b16 %v4440
    %v4535 = vunpack.c.h.b16 %v4440
    %v4536 = vunpack.c.l.b16 %v4441
    %v4537 = vunpack.c.h.b16 %v4441
    %v4538 = vunpack.c.l.b16 %v4442
    %v4539 = vunpack.c.h.b16 %v4442
    %v4540 = vunpack.c.l.b16 %v4443
    %v4541 = vunpack.c.h.b16 %v4443
    %v4542 = vunpack.c.l.b16 %v4444
    %v4543 = vunpack.c.h.b16 %v4444
    %v4544 = vunpack.c.l.b16 %v4445
    %v4545 = vunpack.c.h.b16 %v4445
    %v4546 = vunpack.c.l.b16 %v4446
    %v4547 = vunpack.c.h.b16 %v4446
    %v4548 = vunpack.c.l.b16 %v4447
    %v4549 = vunpack.c.h.b16 %v4447
    %v4550 = vunpack.c.l.b16 %v4448
    %v4551 = vunpack.c.h.b16 %v4448
    %v4552 = vunpack.c.l.b16 %v4449
    %v4553 = vunpack.c.h.b16 %v4449
    %v4554 = vunpack.c.l.b16 %v4450
    %v4555 = vunpack.c.h.b16 %v4450
    %v4556 = vunpack.c.l.b16 %v4451
    %v4557 = vunpack.c.h.b16 %v4451
    %v4558 = vunpack.c.l.b16 %v4452
    %v4559 = vunpack.c.h.b16 %v4452
    %v4560 = vunpack.c.l.b16 %v4453
    %v4561 = vunpack.c.h.b16 %v4453
    %v4562 = vpack.c.b16 %v4500, %v4498
    %v4563 = vpack.c.b16 %v4501, %v4499
    %v4564 = vpack.c.b16 %v4504, %v4502
    %v4565 = vpack.c.b16 %v4505, %v4503
    %v4566 = vpack.c.b16 %v4508, %v4506
    %v4567 = vpack.c.b16 %v4509, %v4507
    %v4568 = vpack.c.b16 %v4512, %v4510
    %v4569 = vpack.c.b16 %v4513, %v4511
    %v4570 = vpack.c.b16 %v4516, %v4514
    %v4571 = vpack.c.b16 %v4517, %v4515
    %v4572 = vpack.c.b16 %v4520, %v4518
    %v4573 = vpack.c.b16 %v4521, %v4519
    %v4574 = vpack.c.b16 %v4524, %v4522
    %v4575 = vpack.c.b16 %v4525, %v4523
    %v4576 = vpack.c.b16 %v4528, %v4526
    %v4577 = vpack.c.b16 %v4529, %v4527
    %v4578 = vpack.c.b16 %v4532, %v4530
    %v4579 = vpack.c.b16 %v4533, %v4531
    %v4580 = vpack.c.b16 %v4536, %v4534
    %v4581 = vpack.c.b16 %v4537, %v4535
    %v4582 = vpack.c.b16 %v4540, %v4538
    %v4583 = vpack.c.b16 %v4541, %v4539
    %v4584 = vpack.c.b16 %v4544, %v4542
    %v4585 = vpack.c.b16 %v4545, %v4543
    %v4586 = vpack.c.b16 %v4548, %v4546
    %v4587 = vpack.c.b16 %v4549, %v4547
    %v4588 = vpack.c.b16 %v4552, %v4550
    %v4589 = vpack.c.b16 %v4553, %v4551
    %v4590 = vpack.c.b16 %v4556, %v4554
    %v4591 = vpack.c.b16 %v4557, %v4555
    %v4592 = vpack.c.b16 %v4560, %v4558
    %v4593 = vpack.c.b16 %v4561, %v4559
    %4626 = vmatprep.subr.bf16.mxu0 %v4563
    %4627 = vmatpush1.bf16.msra.mxu0 %v4562
    %4628 = vmatprep.subr.bf16.mxu0 %v4565
    %4629 = vmatpush1.bf16.msra.mxu0 %v4564
    %4630 = vmatprep.subr.bf16.mxu0 %v4567
    %4631 = vmatpush1.bf16.msra.mxu0 %v4566
    %4632 = vmatprep.subr.bf16.mxu0 %v4569
    %4633 = vmatpush1.bf16.msra.mxu0 %v4568
    %4634 = vmatprep.subr.bf16.mxu0 %v4571
    %4635 = vmatpush1.bf16.msra.mxu0 %v4570
    %4636 = vmatprep.subr.bf16.mxu0 %v4573
    %4637 = vmatpush1.bf16.msra.mxu0 %v4572
    %4638 = vmatprep.subr.bf16.mxu0 %v4575
    %4639 = vmatpush1.bf16.msra.mxu0 %v4574
    %4640 = vmatprep.subr.bf16.mxu0 %v4577
    %4641 = vmatpush1.bf16.msra.mxu0 %v4576
    %4642 = vmatprep.subr.bf16.mxu0 %v4579
    %4643 = vmatpush1.bf16.msra.mxu0 %v4578
    %4644 = vmatprep.subr.bf16.mxu0 %v4581
    %4645 = vmatpush1.bf16.msra.mxu0 %v4580
    %4646 = vmatprep.subr.bf16.mxu0 %v4583
    %4647 = vmatpush1.bf16.msra.mxu0 %v4582
    %4648 = vmatprep.subr.bf16.mxu0 %v4585
    %4649 = vmatpush1.bf16.msra.mxu0 %v4584
    %4650 = vmatprep.subr.bf16.mxu0 %v4587
    %4651 = vmatpush1.bf16.msra.mxu0 %v4586
    %4652 = vmatprep.subr.bf16.mxu0 %v4589
    %4653 = vmatpush1.bf16.msra.mxu0 %v4588
    %4654 = vmatprep.subr.bf16.mxu0 %v4591
    %4655 = vmatpush1.bf16.msra.mxu0 %v4590
    %4656 = vmatprep.subr.bf16.mxu0 %v4593
    %4657 = vmatpush1.bf16.msra.mxu0 %v4592
    %4658 = vmatprep.mubr.bf16.mxu0 %v4417
    %4659 = vmatmul.mubr.bf16.gmra.mrb[0].mxu0 %v4416
    %v4660 = vpop.f32.mrb[0].mxu0
    %v4661 = vadd.f32 %v4459, %v4660
    %v4662 = vpop.f32.mrb[0].mxu0
    %v4663 = vadd.f32 %v4463, %v4662
    %v4664 = vpop.f32.mrb[0].mxu0
    %v4665 = vadd.f32 %v4459, %v4664
    %v4666 = vpop.f32.mrb[0].mxu0
    %v4667 = vadd.f32 %v4463, %v4666
    %4668 = vmatprep.mubr.bf16.mxu0 %v4419
    %4669 = vmatmul.mubr.bf16.gmra.mrb[0].mxu0 %v4418
    %v4670 = vpop.f32.mrb[0].mxu0
    %v4671 = vadd.f32 %v4459, %v4670
    %v4672 = vpop.f32.mrb[0].mxu0
    %v4673 = vadd.f32 %v4463, %v4672
    %v4674 = vpop.f32.mrb[0].mxu0
    %v4675 = vadd.f32 %v4459, %v4674
    %v4676 = vpop.f32.mrb[0].mxu0
    %v4677 = vadd.f32 %v4463, %v4676
    %4678 = vmatprep.mubr.bf16.mxu0 %v4421
    %4679 = vmatmul.mubr.bf16.gmra.mrb[0].mxu0 %v4420
    %v4680 = vpop.f32.mrb[0].mxu0
    %v4681 = vadd.f32 %v4459, %v4680
    %v4682 = vpop.f32.mrb[0].mxu0
    %v4683 = vadd.f32 %v4463, %v4682
    %v4684 = vpop.f32.mrb[0].mxu0
    %v4685 = vpop.f32.mrb[0].mxu0
    %4686 = vdwg.mxu0
    %v4687 = vmax.f32 %v4661, 0.0
    %v4688 = vmax.f32 %v4663, 0.0
    %v4689 = vmax.f32 %v4665, 0.0
    %v4690 = vmax.f32 %v4667, 0.0
    %v4691 = vmax.f32 %v4671, 0.0
    %v4692 = vmax.f32 %v4673, 0.0
    %v4693 = vmax.f32 %v4675, 0.0
    %v4694 = vmax.f32 %v4677, 0.0
    %v4695 = vmax.f32 %v4681, 0.0
    %v4696 = vmax.f32 %v4683, 0.0
    %v4697 = vsel %vm2271, %v4687, %v4688
    %v4698 = vsel %vm2272, %v4689, %v4690
    %v4699 = vsel %vm2273, %v4691, %v4692
    %v4700 = vsel %vm2274, %v4693, %v4694
    %v4701 = vsel %vm2275, %v4695, %v4696
    %4702 = vst [vmem:[%s11] sm:$0xff] %v4697
    %v4703 = vpack.c.bf16 %v4697, %v4697
    %v4704 = vld [vmem:[%s7] sm:$0xf]
    %v4705 = vld [vmem:[%s7 + $0x4] sm:$0xf]
    %v4706 = vld [vmem:[%s7 + $0x8] sm:$0xf]
    %v4707 = vld [vmem:[%s7 + $0xc] sm:$0xf]
    %v4708 = vld [vmem:[%s7 + $0x10] sm:$0xf]
    %v4709 = vld [vmem:[%s7 + $0x14] sm:$0xf]
    %v4710 = vld [vmem:[%s7 + $0x18] sm:$0xf]
    %v4711 = vld [vmem:[%s7 + $0x1c] sm:$0xf]
    %v4712 = vld [vmem:[%s7 + $0x20] sm:$0xf]
    %v4713 = vld [vmem:[%s7 + $0x24] sm:$0xf]
    %v4714 = vld [vmem:[%s7 + $0x28] sm:$0xf]
    %v4715 = vld [vmem:[%s7 + $0x2c] sm:$0xf]
    %v4716 = vld [vmem:[%s7 + $0x30] sm:$0xf]
    %v4717 = vld [vmem:[%s7 + $0x34] sm:$0xf]
    %v4718 = vld [vmem:[%s7 + $0x38] sm:$0xf]
    %v4719 = vld [vmem:[%s7 + $0x3c] sm:$0xf]
    %4720 = vst [vmem:[%s11 + $0x8] sm:$0xff] %v4698
    %v4721 = vpack.c.bf16 %v4698, %v4698
    %v4722 = vld [vmem:[%s7 + $0x40] sm:$0xf]
    %v4723 = vld [vmem:[%s7 + $0x44] sm:$0xf]
    %v4724 = vld [vmem:[%s7 + $0x48] sm:$0xf]
    %v4725 = vld [vmem:[%s7 + $0x4c] sm:$0xf]
    %v4726 = vld [vmem:[%s7 + $0x50] sm:$0xf]
    %v4727 = vld [vmem:[%s7 + $0x54] sm:$0xf]
    %v4728 = vld [vmem:[%s7 + $0x58] sm:$0xf]
    %v4729 = vld [vmem:[%s7 + $0x5c] sm:$0xf]
    %v4730 = vld [vmem:[%s7 + $0x60] sm:$0xf]
    %v4731 = vld [vmem:[%s7 + $0x64] sm:$0xf]
    %v4732 = vld [vmem:[%s7 + $0x68] sm:$0xf]
    %v4733 = vld [vmem:[%s7 + $0x6c] sm:$0xf]
    %v4734 = vld [vmem:[%s7 + $0x70] sm:$0xf]
    %v4735 = vld [vmem:[%s7 + $0x74] sm:$0xf]
    %v4736 = vld [vmem:[%s7 + $0x78] sm:$0xf]
    %v4737 = vld [vmem:[%s7 + $0x7c] sm:$0xf]
    %v4754 = vunpack.c.l.b16 %v4722
    %v4755 = vunpack.c.l.b16 %v4723
    %v4756 = vunpack.c.l.b16 %v4724
    %v4757 = vunpack.c.l.b16 %v4725
    %v4758 = vunpack.c.l.b16 %v4726
    %v4759 = vunpack.c.l.b16 %v4727
    %v4760 = vunpack.c.l.b16 %v4728
    %v4761 = vunpack.c.l.b16 %v4729
    %v4762 = vunpack.c.l.b16 %v4730
    %v4763 = vunpack.c.l.b16 %v4731
    %v4764 = vunpack.c.l.b16 %v4732
    %v4765 = vunpack.c.l.b16 %v4733
    %v4766 = vunpack.c.l.b16 %v4734
    %v4767 = vunpack.c.l.b16 %v4735
    %v4768 = vunpack.c.l.b16 %v4736
    %v4769 = vunpack.c.l.b16 %v4737
    %v4770 = vpack.c.b16 %v4755, %v4754
    %v4771 = vpack.c.b16 %v4757, %v4756
    %v4772 = vpack.c.b16 %v4759, %v4758
    %v4773 = vpack.c.b16 %v4761, %v4760
    %v4774 = vpack.c.b16 %v4763, %v4762
    %v4775 = vpack.c.b16 %v4765, %v4764
    %v4776 = vpack.c.b16 %v4767, %v4766
    %v4777 = vpack.c.b16 %v4769, %v4768
    %4786 = vmatprep.subr.bf16.mxu0 0
    %4787 = vmatpush1.bf16.msra.mxu0 %v4770
    %4788 = vmatprep.subr.bf16.mxu0 0
    %4789 = vmatpush1.bf16.msra.mxu0 %v4771
    %4790 = vmatprep.subr.bf16.mxu0 0
    %4791 = vmatpush1.bf16.msra.mxu0 %v4772
    %4792 = vmatprep.subr.bf16.mxu0 0
    %4793 = vmatpush1.bf16.msra.mxu0 %v4773
    %4794 = vmatprep.subr.bf16.mxu0 0
    %4795 = vmatpush1.bf16.msra.mxu0 %v4774
    %4796 = vmatprep.subr.bf16.mxu0 0
    %4797 = vmatpush1.bf16.msra.mxu0 %v4775
    %4798 = vmatprep.subr.bf16.mxu0 0
    %4799 = vmatpush1.bf16.msra.mxu0 %v4776
    %4800 = vmatprep.subr.bf16.mxu0 0
    %4801 = vmatpush1.bf16.msra.mxu0 %v4777
    %4802 = vmatprep.subr.bf16.mxu0 0
    %4803 = vmatpush1.bf16.msra.mxu0 0
    %4804 = vmatprep.subr.bf16.mxu0 0
    %4805 = vmatpush1.bf16.msra.mxu0 0
    %4806 = vmatprep.subr.bf16.mxu0 0
    %4807 = vmatpush1.bf16.msra.mxu0 0
    %4808 = vmatprep.subr.bf16.mxu0 0
    %4809 = vmatpush1.bf16.msra.mxu0 0
    %4810 = vmatprep.subr.bf16.mxu0 0
    %4811 = vmatpush1.bf16.msra.mxu0 0
    %4812 = vmatprep.subr.bf16.mxu0 0
    %4813 = vmatpush1.bf16.msra.mxu0 0
    %4814 = vmatprep.subr.bf16.mxu0 0
    %4815 = vmatpush1.bf16.msra.mxu0 0
    %4816 = vmatprep.subr.bf16.mxu0 0
    %4817 = vmatpush1.bf16.msra.mxu0 0
    %4818 = vmatprep.mubr.bf16.mxu0 0
    %4819 = vmatmul.mubr.bf16.gmra.mrb[0].mxu0 %v4721
    %v4820 = vpop.f32.mrb[0].mxu0
    %v4821 = vadd.f32 0.0, %v4820
    %v4822 = vpop.f32.mrb[0].mxu0
    %v4823 = vpop.f32.mrb[0].mxu0
    %v4824 = vpop.f32.mrb[0].mxu0
    %4825 = vdwg.mxu0
    %v4842 = vunpack.c.l.b16 %v4704
    %v4843 = vunpack.c.l.b16 %v4705
    %v4844 = vunpack.c.l.b16 %v4706
    %v4845 = vunpack.c.l.b16 %v4707
    %v4846 = vunpack.c.l.b16 %v4708
    %v4847 = vunpack.c.l.b16 %v4709
    %v4848 = vunpack.c.l.b16 %v4710
    %v4849 = vunpack.c.l.b16 %v4711
    %v4850 = vunpack.c.l.b16 %v4712
    %v4851 = vunpack.c.l.b16 %v4713
    %v4852 = vunpack.c.l.b16 %v4714
    %v4853 = vunpack.c.l.b16 %v4715
    %v4854 = vunpack.c.l.b16 %v4716
    %v4855 = vunpack.c.l.b16 %v4717
    %v4856 = vunpack.c.l.b16 %v4718
    %v4857 = vunpack.c.l.b16 %v4719
    %v4858 = vpack.c.b16 %v4843, %v4842
    %v4859 = vpack.c.b16 %v4845, %v4844
    %v4860 = vpack.c.b16 %v4847, %v4846
    %v4861 = vpack.c.b16 %v4849, %v4848
    %v4862 = vpack.c.b16 %v4851, %v4850
    %v4863 = vpack.c.b16 %v4853, %v4852
    %v4864 = vpack.c.b16 %v4855, %v4854
    %v4865 = vpack.c.b16 %v4857, %v4856
    %4874 = vmatprep.subr.bf16.mxu0 0
    %4875 = vmatpush1.bf16.msra.mxu0 %v4858
    %4876 = vmatprep.subr.bf16.mxu0 0
    %4877 = vmatpush1.bf16.msra.mxu0 %v4859
    %4878 = vmatprep.subr.bf16.mxu0 0
    %4879 = vmatpush1.bf16.msra.mxu0 %v4860
    %4880 = vmatprep.subr.bf16.mxu0 0
    %4881 = vmatpush1.bf16.msra.mxu0 %v4861
    %4882 = vmatprep.subr.bf16.mxu0 0
    %4883 = vmatpush1.bf16.msra.mxu0 %v4862
    %4884 = vmatprep.subr.bf16.mxu0 0
    %4885 = vmatpush1.bf16.msra.mxu0 %v4863
    %4886 = vmatprep.subr.bf16.mxu0 0
    %4887 = vmatpush1.bf16.msra.mxu0 %v4864
    %4888 = vmatprep.subr.bf16.mxu0 0
    %4889 = vmatpush1.bf16.msra.mxu0 %v4865
    %4890 = vmatprep.subr.bf16.mxu0 0
    %4891 = vmatpush1.bf16.msra.mxu0 0
    %4892 = vmatprep.subr.bf16.mxu0 0
    %4893 = vmatpush1.bf16.msra.mxu0 0
    %4894 = vmatprep.subr.bf16.mxu0 0
    %4895 = vmatpush1.bf16.msra.mxu0 0
    %4896 = vmatprep.subr.bf16.mxu0 0
    %4897 = vmatpush1.bf16.msra.mxu0 0
    %4898 = vmatprep.subr.bf16.mxu0 0
    %4899 = vmatpush1.bf16.msra.mxu0 0
    %4900 = vmatprep.subr.bf16.mxu0 0
    %4901 = vmatpush1.bf16.msra.mxu0 0
    %4902 = vmatprep.subr.bf16.mxu0 0
    %4903 = vmatpush1.bf16.msra.mxu0 0
    %4904 = vmatprep.subr.bf16.mxu0 0
    %4905 = vmatpush1.bf16.msra.mxu0 0
    %4906 = vmatprep.mubr.bf16.mxu0 0
    %4907 = vmatmul.mubr.bf16.gmra.mrb[0].mxu0 %v4703
    %v4908 = vpop.f32.mrb[0].mxu0
    %v4909 = vadd.f32 %v4821, %v4908
    %v4910 = vpop.f32.mrb[0].mxu0
    %v4911 = vpop.f32.mrb[0].mxu0
    %v4912 = vpop.f32.mrb[0].mxu0
    %4913 = vdwg.mxu0
    %4914 = vst [vmem:[%s11 + $0x10] sm:$0xff] %v4699
    %v4915 = vpack.c.bf16 %v4699, %v4699
    %v4916 = vld [vmem:[%s7 + $0x80] sm:$0xf]
    %v4917 = vld [vmem:[%s7 + $0x84] sm:$0xf]
    %v4918 = vld [vmem:[%s7 + $0x88] sm:$0xf]
    %v4919 = vld [vmem:[%s7 + $0x8c] sm:$0xf]
    %v4920 = vld [vmem:[%s7 + $0x90] sm:$0xf]
    %v4921 = vld [vmem:[%s7 + $0x94] sm:$0xf]
    %v4922 = vld [vmem:[%s7 + $0x98] sm:$0xf]
    %v4923 = vld [vmem:[%s7 + $0x9c] sm:$0xf]
    %v4924 = vld [vmem:[%s7 + $0xa0] sm:$0xf]
    %v4925 = vld [vmem:[%s7 + $0xa4] sm:$0xf]
    %v4926 = vld [vmem:[%s7 + $0xa8] sm:$0xf]
    %v4927 = vld [vmem:[%s7 + $0xac] sm:$0xf]
    %v4928 = vld [vmem:[%s7 + $0xb0] sm:$0xf]
    %v4929 = vld [vmem:[%s7 + $0xb4] sm:$0xf]
    %v4930 = vld [vmem:[%s7 + $0xb8] sm:$0xf]
    %v4931 = vld [vmem:[%s7 + $0xbc] sm:$0xf]
    %v4948 = vunpack.c.l.b16 %v4916
    %v4949 = vunpack.c.l.b16 %v4917
    %v4950 = vunpack.c.l.b16 %v4918
    %v4951 = vunpack.c.l.b16 %v4919
    %v4952 = vunpack.c.l.b16 %v4920
    %v4953 = vunpack.c.l.b16 %v4921
    %v4954 = vunpack.c.l.b16 %v4922
    %v4955 = vunpack.c.l.b16 %v4923
    %v4956 = vunpack.c.l.b16 %v4924
    %v4957 = vunpack.c.l.b16 %v4925
    %v4958 = vunpack.c.l.b16 %v4926
    %v4959 = vunpack.c.l.b16 %v4927
    %v4960 = vunpack.c.l.b16 %v4928
    %v4961 = vunpack.c.l.b16 %v4929
    %v4962 = vunpack.c.l.b16 %v4930
    %v4963 = vunpack.c.l.b16 %v4931
    %v4964 = vpack.c.b16 %v4949, %v4948
    %v4965 = vpack.c.b16 %v4951, %v4950
    %v4966 = vpack.c.b16 %v4953, %v4952
    %v4967 = vpack.c.b16 %v4955, %v4954
    %v4968 = vpack.c.b16 %v4957, %v4956
    %v4969 = vpack.c.b16 %v4959, %v4958
    %v4970 = vpack.c.b16 %v4961, %v4960
    %v4971 = vpack.c.b16 %v4963, %v4962
    %4980 = vmatprep.subr.bf16.mxu0 0
    %4981 = vmatpush1.bf16.msra.mxu0 %v4964
    %4982 = vmatprep.subr.bf16.mxu0 0
    %4983 = vmatpush1.bf16.msra.mxu0 %v4965
    %4984 = vmatprep.subr.bf16.mxu0 0
    %4985 = vmatpush1.bf16.msra.mxu0 %v4966
    %4986 = vmatprep.subr.bf16.mxu0 0
    %4987 = vmatpush1.bf16.msra.mxu0 %v4967
    %4988 = vmatprep.subr.bf16.mxu0 0
    %4989 = vmatpush1.bf16.msra.mxu0 %v4968
    %4990 = vmatprep.subr.bf16.mxu0 0
    %4991 = vmatpush1.bf16.msra.mxu0 %v4969
    %4992 = vmatprep.subr.bf16.mxu0 0
    %4993 = vmatpush1.bf16.msra.mxu0 %v4970
    %4994 = vmatprep.subr.bf16.mxu0 0
    %4995 = vmatpush1.bf16.msra.mxu0 %v4971
    %4996 = vmatprep.subr.bf16.mxu0 0
    %4997 = vmatpush1.bf16.msra.mxu0 0
    %4998 = vmatprep.subr.bf16.mxu0 0
    %4999 = vmatpush1.bf16.msra.mxu0 0
    %5000 = vmatprep.subr.bf16.mxu0 0
    %5001 = vmatpush1.bf16.msra.mxu0 0
    %5002 = vmatprep.subr.bf16.mxu0 0
    %5003 = vmatpush1.bf16.msra.mxu0 0
    %5004 = vmatprep.subr.bf16.mxu0 0
    %5005 = vmatpush1.bf16.msra.mxu0 0
    %5006 = vmatprep.subr.bf16.mxu0 0
    %5007 = vmatpush1.bf16.msra.mxu0 0
    %5008 = vmatprep.subr.bf16.mxu0 0
    %5009 = vmatpush1.bf16.msra.mxu0 0
    %5010 = vmatprep.subr.bf16.mxu0 0
    %5011 = vmatpush1.bf16.msra.mxu0 0
    %5012 = vmatprep.mubr.bf16.mxu0 0
    %5013 = vmatmul.mubr.bf16.gmra.mrb[0].mxu0 %v4915
    %v5014 = vpop.f32.mrb[0].mxu0
    %v5015 = vadd.f32 0.0, %v5014
    %v5016 = vpop.f32.mrb[0].mxu0
    %v5017 = vpop.f32.mrb[0].mxu0
    %v5018 = vpop.f32.mrb[0].mxu0
    %5019 = vdwg.mxu0
    %v5020 = vadd.f32 %v4909, %v5015
    %5021 = vst [vmem:[%s11 + $0x18] sm:$0xff] %v4700
    %v5022 = vpack.c.bf16 %v4700, %v4700
    %v5023 = vld [vmem:[%s7 + $0xc0] sm:$0xf]
    %v5024 = vld [vmem:[%s7 + $0xc4] sm:$0xf]
    %v5025 = vld [vmem:[%s7 + $0xc8] sm:$0xf]
    %v5026 = vld [vmem:[%s7 + $0xcc] sm:$0xf]
    %v5027 = vld [vmem:[%s7 + $0xd0] sm:$0xf]
    %v5028 = vld [vmem:[%s7 + $0xd4] sm:$0xf]
    %v5029 = vld [vmem:[%s7 + $0xd8] sm:$0xf]
    %v5030 = vld [vmem:[%s7 + $0xdc] sm:$0xf]
    %v5031 = vld [vmem:[%s7 + $0xe0] sm:$0xf]
    %v5032 = vld [vmem:[%s7 + $0xe4] sm:$0xf]
    %v5033 = vld [vmem:[%s7 + $0xe8] sm:$0xf]
    %v5034 = vld [vmem:[%s7 + $0xec] sm:$0xf]
    %v5035 = vld [vmem:[%s7 + $0xf0] sm:$0xf]
    %v5036 = vld [vmem:[%s7 + $0xf4] sm:$0xf]
    %v5037 = vld [vmem:[%s7 + $0xf8] sm:$0xf]
    %v5038 = vld [vmem:[%s7 + $0xfc] sm:$0xf]
    %v5055 = vunpack.c.l.b16 %v5023
    %v5056 = vunpack.c.l.b16 %v5024
    %v5057 = vunpack.c.l.b16 %v5025
    %v5058 = vunpack.c.l.b16 %v5026
    %v5059 = vunpack.c.l.b16 %v5027
    %v5060 = vunpack.c.l.b16 %v5028
    %v5061 = vunpack.c.l.b16 %v5029
    %v5062 = vunpack.c.l.b16 %v5030
    %v5063 = vunpack.c.l.b16 %v5031
    %v5064 = vunpack.c.l.b16 %v5032
    %v5065 = vunpack.c.l.b16 %v5033
    %v5066 = vunpack.c.l.b16 %v5034
    %v5067 = vunpack.c.l.b16 %v5035
    %v5068 = vunpack.c.l.b16 %v5036
    %v5069 = vunpack.c.l.b16 %v5037
    %v5070 = vunpack.c.l.b16 %v5038
    %v5071 = vpack.c.b16 %v5056, %v5055
    %v5072 = vpack.c.b16 %v5058, %v5057
    %v5073 = vpack.c.b16 %v5060, %v5059
    %v5074 = vpack.c.b16 %v5062, %v5061
    %v5075 = vpack.c.b16 %v5064, %v5063
    %v5076 = vpack.c.b16 %v5066, %v5065
    %v5077 = vpack.c.b16 %v5068, %v5067
    %v5078 = vpack.c.b16 %v5070, %v5069
    %5087 = vmatprep.subr.bf16.mxu0 0
    %5088 = vmatpush1.bf16.msra.mxu0 %v5071
    %5089 = vmatprep.subr.bf16.mxu0 0
    %5090 = vmatpush1.bf16.msra.mxu0 %v5072
    %5091 = vmatprep.subr.bf16.mxu0 0
    %5092 = vmatpush1.bf16.msra.mxu0 %v5073
    %5093 = vmatprep.subr.bf16.mxu0 0
    %5094 = vmatpush1.bf16.msra.mxu0 %v5074
    %5095 = vmatprep.subr.bf16.mxu0 0
    %5096 = vmatpush1.bf16.msra.mxu0 %v5075
    %5097 = vmatprep.subr.bf16.mxu0 0
    %5098 = vmatpush1.bf16.msra.mxu0 %v5076
    %5099 = vmatprep.subr.bf16.mxu0 0
    %5100 = vmatpush1.bf16.msra.mxu0 %v5077
    %5101 = vmatprep.subr.bf16.mxu0 0
    %5102 = vmatpush1.bf16.msra.mxu0 %v5078
    %5103 = vmatprep.subr.bf16.mxu0 0
    %5104 = vmatpush1.bf16.msra.mxu0 0
    %5105 = vmatprep.subr.bf16.mxu0 0
    %5106 = vmatpush1.bf16.msra.mxu0 0
    %5107 = vmatprep.subr.bf16.mxu0 0
    %5108 = vmatpush1.bf16.msra.mxu0 0
    %5109 = vmatprep.subr.bf16.mxu0 0
    %5110 = vmatpush1.bf16.msra.mxu0 0
    %5111 = vmatprep.subr.bf16.mxu0 0
    %5112 = vmatpush1.bf16.msra.mxu0 0
    %5113 = vmatprep.subr.bf16.mxu0 0
    %5114 = vmatpush1.bf16.msra.mxu0 0
    %5115 = vmatprep.subr.bf16.mxu0 0
    %5116 = vmatpush1.bf16.msra.mxu0 0
    %5117 = vmatprep.subr.bf16.mxu0 0
    %5118 = vmatpush1.bf16.msra.mxu0 0
    %5119 = vmatprep.mubr.bf16.mxu0 0
    %5120 = vmatmul.mubr.bf16.gmra.mrb[0].mxu0 %v5022
    %v5121 = vpop.f32.mrb[0].mxu0
    %v5122 = vadd.f32 0.0, %v5121
    %v5123 = vpop.f32.mrb[0].mxu0
    %v5124 = vpop.f32.mrb[0].mxu0
    %v5125 = vpop.f32.mrb[0].mxu0
    %5126 = vdwg.mxu0
    %v5127 = vadd.f32 %v5020, %v5122
    %5128 = vst [vmem:[%s11 + $0x20] sm:$0xff] %v4701
    %v5129 = vpack.c.bf16 %v4701, %v4701
    %v5130 = vld [vmem:[%s7 + $0x100] sm:$0xf]
    %v5131 = vld [vmem:[%s7 + $0x104] sm:$0xf]
    %v5132 = vld [vmem:[%s7 + $0x108] sm:$0xf]
    %v5133 = vld [vmem:[%s7 + $0x10c] sm:$0xf]
    %v5134 = vld [vmem:[%s7 + $0x110] sm:$0xf]
    %v5135 = vld [vmem:[%s7 + $0x114] sm:$0xf]
    %v5136 = vld [vmem:[%s7 + $0x118] sm:$0xf]
    %v5137 = vld [vmem:[%s7 + $0x11c] sm:$0xf]
    %v5138 = vld [vmem:[%s7 + $0x120] sm:$0xf]
    %v5139 = vld [vmem:[%s7 + $0x124] sm:$0xf]
    %v5140 = vld [vmem:[%s7 + $0x128] sm:$0xf]
    %v5141 = vld [vmem:[%s7 + $0x12c] sm:$0xf]
    %v5142 = vld [vmem:[%s7 + $0x130] sm:$0xf]
    %v5143 = vld [vmem:[%s7 + $0x134] sm:$0xf]
    %v5144 = vld [vmem:[%s7 + $0x138] sm:$0xf]
    %v5145 = vld [vmem:[%s7 + $0x13c] sm:$0xf]
    %v5162 = vunpack.c.l.b16 %v5130
    %v5163 = vunpack.c.l.b16 %v5131
    %v5164 = vunpack.c.l.b16 %v5132
    %v5165 = vunpack.c.l.b16 %v5133
    %v5166 = vunpack.c.l.b16 %v5134
    %v5167 = vunpack.c.l.b16 %v5135
    %v5168 = vunpack.c.l.b16 %v5136
    %v5169 = vunpack.c.l.b16 %v5137
    %v5170 = vunpack.c.l.b16 %v5138
    %v5171 = vunpack.c.l.b16 %v5139
    %v5172 = vunpack.c.l.b16 %v5140
    %v5173 = vunpack.c.l.b16 %v5141
    %v5174 = vunpack.c.l.b16 %v5142
    %v5175 = vunpack.c.l.b16 %v5143
    %v5176 = vunpack.c.l.b16 %v5144
    %v5177 = vunpack.c.l.b16 %v5145
    %v5178 = vpack.c.b16 %v5163, %v5162
    %v5179 = vpack.c.b16 %v5165, %v5164
    %v5180 = vpack.c.b16 %v5167, %v5166
    %v5181 = vpack.c.b16 %v5169, %v5168
    %v5182 = vpack.c.b16 %v5171, %v5170
    %v5183 = vpack.c.b16 %v5173, %v5172
    %v5184 = vpack.c.b16 %v5175, %v5174
    %v5185 = vpack.c.b16 %v5177, %v5176
    %5194 = vmatprep.subr.bf16.mxu0 0
    %5195 = vmatpush1.bf16.msra.mxu0 %v5178
    %5196 = vmatprep.subr.bf16.mxu0 0
    %5197 = vmatpush1.bf16.msra.mxu0 %v5179
    %5198 = vmatprep.subr.bf16.mxu0 0
    %5199 = vmatpush1.bf16.msra.mxu0 %v5180
    %5200 = vmatprep.subr.bf16.mxu0 0
    %5201 = vmatpush1.bf16.msra.mxu0 %v5181
    %5202 = vmatprep.subr.bf16.mxu0 0
    %5203 = vmatpush1.bf16.msra.mxu0 %v5182
    %5204 = vmatprep.subr.bf16.mxu0 0
    %5205 = vmatpush1.bf16.msra.mxu0 %v5183
    %5206 = vmatprep.subr.bf16.mxu0 0
    %5207 = vmatpush1.bf16.msra.mxu0 %v5184
    %5208 = vmatprep.subr.bf16.mxu0 0
    %5209 = vmatpush1.bf16.msra.mxu0 %v5185
    %5210 = vmatprep.subr.bf16.mxu0 0
    %5211 = vmatpush1.bf16.msra.mxu0 0
    %5212 = vmatprep.subr.bf16.mxu0 0
    %5213 = vmatpush1.bf16.msra.mxu0 0
    %5214 = vmatprep.subr.bf16.mxu0 0
    %5215 = vmatpush1.bf16.msra.mxu0 0
    %5216 = vmatprep.subr.bf16.mxu0 0
    %5217 = vmatpush1.bf16.msra.mxu0 0
    %5218 = vmatprep.subr.bf16.mxu0 0
    %5219 = vmatpush1.bf16.msra.mxu0 0
    %5220 = vmatprep.subr.bf16.mxu0 0
    %5221 = vmatpush1.bf16.msra.mxu0 0
    %5222 = vmatprep.subr.bf16.mxu0 0
    %5223 = vmatpush1.bf16.msra.mxu0 0
    %5224 = vmatprep.subr.bf16.mxu0 0
    %5225 = vmatpush1.bf16.msra.mxu0 0
    %5226 = vmatprep.mubr.bf16.mxu0 0
    %5227 = vmatmul.mubr.bf16.gmra.mrb[0].mxu0 %v5129
    %v5228 = vpop.f32.mrb[0].mxu0
    %v5229 = vadd.f32 0.0, %v5228
    %v5230 = vpop.f32.mrb[0].mxu0
    %v5231 = vpop.f32.mrb[0].mxu0
    %v5232 = vpop.f32.mrb[0].mxu0
    %5233 = vdwg.mxu0
    %v5234 = vadd.f32 %v5127, %v5229
    %v5235 = vld [vmem:[%s8] sm:$0x1]
    %v5237 = vlaneseq
    %v5238 = vshrl.u32 %v5237, 7
    %v5239 = vsub.s32 0, %v5238
    %v5240 = vrot.slane %v5235, %v5239
    %v5242 = vadd.f32 %v5234, %v5240
    %v5243 = vmax.f32 %v5242, 0.0
    %v5244 = vpack.c.bf16 %v5243, %v5243
    %v5245 = vld [vmem:[%s9] sm:$0xf]
    %v5246 = vld [vmem:[%s9 + $0x4] sm:$0xf]
    %v5247 = vld [vmem:[%s9 + $0x8] sm:$0xf]
    %v5248 = vld [vmem:[%s9 + $0xc] sm:$0xf]
    %v5249 = vld [vmem:[%s9 + $0x10] sm:$0xf]
    %v5250 = vld [vmem:[%s9 + $0x14] sm:$0xf]
    %v5251 = vld [vmem:[%s9 + $0x18] sm:$0xf]
    %v5252 = vld [vmem:[%s9 + $0x1c] sm:$0xf]
    %v5253 = vld [vmem:[#allocation10] sm:$0x1]
    %v5255 = vlaneseq
    %v5256 = vshrl.u32 %v5255, 7
    %v5257 = vsub.s32 0, %v5256
    %v5258 = vrot.slane %v5253, %v5257
    %v5268 = vunpack.c.l.b16 %v5245
    %v5269 = vunpack.c.l.b16 %v5246
    %v5270 = vunpack.c.l.b16 %v5247
    %v5271 = vunpack.c.l.b16 %v5248
    %v5272 = vunpack.c.l.b16 %v5249
    %v5273 = vunpack.c.l.b16 %v5250
    %v5274 = vunpack.c.l.b16 %v5251
    %v5275 = vunpack.c.l.b16 %v5252
    %v5276 = vpack.c.b16 %v5269, %v5268
    %v5277 = vpack.c.b16 %v5271, %v5270
    %v5278 = vpack.c.b16 %v5273, %v5272
    %v5279 = vpack.c.b16 %v5275, %v5274
    %vm5284 = vcmask 523264
    %v5286 = vsel %vm5284, %v5244, 0
    %5288 = vmatprep.subr.bf16.mxu0 0
    %5289 = vmatpush1.bf16.msra.mxu0 %v5276
    %5290 = vmatprep.subr.bf16.mxu0 0
    %5291 = vmatpush1.bf16.msra.mxu0 %v5277
    %5292 = vmatprep.subr.bf16.mxu0 0
    %5293 = vmatpush1.bf16.msra.mxu0 %v5278
    %5294 = vmatprep.subr.bf16.mxu0 0
    %5295 = vmatpush1.bf16.msra.mxu0 %v5279
    %5296 = vmatprep.subr.bf16.mxu0 0
    %5297 = vmatpush1.bf16.msra.mxu0 0
    %5298 = vmatprep.subr.bf16.mxu0 0
    %5299 = vmatpush1.bf16.msra.mxu0 0
    %5300 = vmatprep.subr.bf16.mxu0 0
    %5301 = vmatpush1.bf16.msra.mxu0 0
    %5302 = vmatprep.subr.bf16.mxu0 0
    %5303 = vmatpush1.bf16.msra.mxu0 0
    %5304 = vmatprep.subr.bf16.mxu0 0
    %5305 = vmatpush1.bf16.msra.mxu0 0
    %5306 = vmatprep.subr.bf16.mxu0 0
    %5307 = vmatpush1.bf16.msra.mxu0 0
    %5308 = vmatprep.subr.bf16.mxu0 0
    %5309 = vmatpush1.bf16.msra.mxu0 0
    %5310 = vmatprep.subr.bf16.mxu0 0
    %5311 = vmatpush1.bf16.msra.mxu0 0
    %5312 = vmatprep.subr.bf16.mxu0 0
    %5313 = vmatpush1.bf16.msra.mxu0 0
    %5314 = vmatprep.subr.bf16.mxu0 0
    %5315 = vmatpush1.bf16.msra.mxu0 0
    %5316 = vmatprep.subr.bf16.mxu0 0
    %5317 = vmatpush1.bf16.msra.mxu0 0
    %5318 = vmatprep.subr.bf16.mxu0 0
    %5319 = vmatpush1.bf16.msra.mxu0 0
    %5320 = vmatprep.mubr.bf16.mxu0 0
    %5321 = vmatmul.mubr.bf16.gmra.mrb[0].mxu0 %v5286
    %v5322 = vpop.f32.mrb[0].mxu0
    %v5323 = vadd.f32 %v5258, %v5322
    %v5324 = vpop.f32.mrb[0].mxu0
    %v5325 = vpop.f32.mrb[0].mxu0
    %v5326 = vpop.f32.mrb[0].mxu0
    %5327 = vdwg.mxu0
    %5328 = vst [vmem:[%s12] sm:$0xff] %v5323
    // Predicated region
    $region70: #{net_forward.1} parent=1 // pred_check
      _
    $region71: #{net_forward.1} parent=1 // pred_check_branch
      %5330 = sbr.rel (0) target = $region73
    $region72: #{net_forward.1} parent=1 // pred_region
      _
    $region73: #{net_forward.1} parent=1 // pred_fallthru
      _
    // Predicated region
    $region74: #{net_forward.1} parent=1 // pred_check
      _
    $region75: #{net_forward.1} parent=1 // pred_check_branch
      %5332 = sbr.rel (0) target = $region77
    $region76: #{net_forward.1} parent=1 // pred_region
      _
    $region77: #{net_forward.1} parent=1 // pred_fallthru
      _
    // Predicated region
    $region78: #{net_forward.1} parent=1 // pred_check
      _
    $region79: #{net_forward.1} parent=1 // pred_check_branch
      %5334 = sbr.rel (0) target = $region81
    $region80: #{net_forward.1} parent=1 // pred_region
      _
    $region81: #{net_forward.1} parent=1 // pred_fallthru
      _
    // Predicated region
    $region82: #{net_forward.1} parent=1 // pred_check
      _
    $region83: #{net_forward.1} parent=1 // pred_check_branch
      %5336 = sbr.rel (0) target = $region85
    $region84: #{net_forward.1} parent=1 // pred_region
      _
    $region85: #{net_forward.1} parent=1 // pred_fallthru
      _
    %5337 = vsyncpa [#allocation3], 1
    %5338 = vsyncpa [#allocation5], 1
    %5339 = vsyncpa [#allocation8], 1
    %5340 = vsyncpa [#allocation11], 1

</llo_original>
